<compile_context>
chip_gen: v7x
topology: tpu7x:2x2x1
jax: 0.10.0
libtpu: 0.0.40
codegen_flags: <defaults>
</compile_context>

<pallas_src>
import functools

import jax
import jax.numpy as jnp
import numpy as np
from jax import lax
from jax.experimental import pallas as pl
from jax.experimental.pallas import tpu as pltpu

EPS = 1e-5
SLOPE = 0.2


# ----------------------------------------------------------------------------
# In-kernel helpers (traced inside the single pallas_call).
# ----------------------------------------------------------------------------
def _lrelu(y):
    return jnp.where(y > 0, y, SLOPE * y)


def _bn_train(y, gamma, beta):
    """Training-mode BatchNorm (biased variance), exact two-pass, all f32."""
    mean = jnp.mean(y, axis=0, keepdims=True)
    diff = y - mean
    var = jnp.mean(diff * diff, axis=0, keepdims=True)
    return diff * lax.rsqrt(var + EPS) * gamma + beta


def _conv3x3_gather(x_f32, idx, w_flat):
    """3x3 / pad=1 conv of a VMEM-resident activation.

    x_f32:  (M_in, Cin)   f32  previous activation, rows ordered (n, h, w)
    idx:    (M_out, 9)    i32  flat source row per output row & tap; -1 == pad
    w_flat: (9*Cin, Cout) bf16 weights, rows ordered (kh, kw, cin)

    The spatial gather is a 0/1 selection matmul (at most one nonzero per row,
    hence exact), so everything stays on the MXU with no strided / dynamic
    addressing.
    """
    m_in, cin = x_f32.shape
    m_out = idx.shape[0]
    cout = w_flat.shape[1]
    xb = x_f32.astype(jnp.bfloat16)          # reference rounds activations too
    col = lax.broadcasted_iota(jnp.int32, (m_out, m_in), 1)
    y = jnp.zeros((m_out, cout), jnp.float32)
    for t in range(9):
        sel = jnp.where(col == idx[:, t:t + 1], 1.0, 0.0).astype(jnp.bfloat16)
        p = jnp.dot(sel, xb, preferred_element_type=jnp.float32)  # exact gather
        y = y + jnp.dot(p.astype(jnp.bfloat16),
                        w_flat[t * cin:(t + 1) * cin, :],
                        preferred_element_type=jnp.float32)
    return y


def _fused_discriminator_kernel(*refs, layer_meta):
    """Whole PatchDiscriminator forward in one VMEM-resident kernel.

    Per layer the inputs appear in order:
      layer 0 : patches (M1, 9*Cin0) bf16, w (9*Cin0, C1) bf16
      layer>0 : idx (M_l, 9) int32,        w (9*C_{l-1}, C_l) bf16
      then, if present: bias (1,C) f32, gamma (1,C) f32, beta (1,C) f32.
    The last ref is the (M_last, C_last) f32 output.
    """
    o_ref = refs[-1]
    it = iter(refs[:-1])
    y = None
    for (is_first, has_bias, use_bn, use_act) in layer_meta:
        if is_first:
            patches = next(it)[...]
            w = next(it)[...]
            y = jnp.dot(patches, w, preferred_element_type=jnp.float32)
        else:
            idx = next(it)[...]
            w = next(it)[...]
            y = _conv3x3_gather(y, idx, w)
        if has_bias:
            y = y + next(it)[...]
        if use_bn:
            gamma = next(it)[...]
            beta = next(it)[...]
            y = _bn_train(y, gamma, beta)
        if use_act:
            y = _lrelu(y)
    o_ref[...] = y


# ----------------------------------------------------------------------------
# Wrapper-side (trace-time) helpers.
# ----------------------------------------------------------------------------
def _out_hw(h, w, stride):
    return (h + 2 - 3) // stride + 1, (w + 2 - 3) // stride + 1


def _im2col_first_layer(x_nhwc_bf16, stride):
    """3x3, pad=1 im2col of the network input (bf16, done in XLA)."""
    N, H, W, Cin = x_nhwc_bf16.shape
    Ho, Wo = _out_hw(H, W, stride)
    xp = jnp.pad(x_nhwc_bf16, ((0, 0), (1, 1), (1, 1), (0, 0)))
    taps = []
    for kh in range(3):
        for kw in range(3):
            taps.append(xp[:, kh:kh + stride * (Ho - 1) + 1:stride,
                           kw:kw + stride * (Wo - 1) + 1:stride, :])
    pat = jnp.concatenate(taps, axis=-1)                  # (N, Ho, Wo, 9*Cin)
    return pat.reshape(N * Ho * Wo, 9 * Cin)


def _tap_indices_np(n, h, w, stride):
    """(N*Ho*Wo, 9) int32 flat source-row table for a 3x3/pad=1 conv.
    Entry = n*H*W + ih*W + iw of the tap's source pixel, or -1 if it lands in
    the zero padding.  Pure NumPy, evaluated at trace time."""
    ho, wo = _out_hw(h, w, stride)
    nn = np.arange(n).reshape(n, 1, 1)
    oh = np.arange(ho).reshape(1, ho, 1)
    ow = np.arange(wo).reshape(1, 1, wo)
    idx = np.empty((n * ho * wo, 9), np.int32)
    for kh in range(3):
        for kw in range(3):
            ih = oh * stride + kh - 1
            iw = ow * stride + kw - 1
            valid = (ih >= 0) & (ih < h) & (iw >= 0) & (iw < w)
            src = nn * (h * w) + ih * w + iw
            src = np.where(valid, src, -1).astype(np.int32)
            idx[:, kh * 3 + kw] = np.broadcast_to(src, (n, ho, wo)).reshape(-1)
    return idx


# ----------------------------------------------------------------------------
# PatchDiscriminator: configs, parameter init, forward.
# ----------------------------------------------------------------------------
def build_layer_cfgs(in_channels, base_channels=16, num_conv=3):
    """Static per-layer config: (cin, cout, stride, has_bias, use_bn, use_act)."""
    cfgs = [(in_channels, base_channels, 2, True, False, True)]
    mult_now = 1
    for n in range(1, num_conv):
        mult_prev, mult_now = mult_now, min(2 ** n, 8)
        cfgs.append((base_channels * mult_prev, base_channels * mult_now,
                     2, False, True, True))
    mult_prev, mult_now = mult_now, min(2 ** num_conv, 8)
    cfgs.append((base_channels * mult_prev, base_channels * mult_now,
                 1, False, True, True))
    cfgs.append((base_channels * mult_now, 1, 1, True, False, False))
    return tuple(cfgs)


def make_params(key, cfgs):
    """'generation_init_weights' normal init:
       conv W ~ N(0, 0.02), conv b = 0, BN gamma ~ N(1, 0.02), BN beta = 0."""
    params = []
    for (cin, cout, _stride, _has_bias, use_bn, _use_act) in cfgs:
        key, kw, kg = jax.random.split(key, 3)
        w = 0.02 * jax.random.normal(kw, (cout, cin, 3, 3), jnp.float32)
        b = jnp.zeros((cout,), jnp.float32)
        if use_bn:
            gamma = 1.0 + 0.02 * jax.random.normal(kg, (cout,), jnp.float32)
        else:
            gamma = jnp.ones((cout,), jnp.float32)
        beta = jnp.zeros((cout,), jnp.float32)
        params.append(dict(w=w, b=b, gamma=gamma, beta=beta))
    return params


def patch_discriminator_forward(x_nchw, params, cfgs):
    """Fused forward pass: one pallas_call for the whole network."""
    N, _, H, W = x_nchw.shape
    x_bf16 = jnp.transpose(x_nchw, (0, 2, 3, 1)).astype(jnp.bfloat16)  # NHWC

    args, layer_meta = [], []
    flops = 0
    bytes_acc = x_nchw.size * 4
    h, w_sp = H, W
    m_in = N * H * W
    for li, (p, cfg) in enumerate(zip(params, cfgs)):
        cin, cout, stride, has_bias, use_bn, use_act = cfg
        ho, wo = _out_hw(h, w_sp, stride)
        m_out = N * ho * wo
        w_flat = (jnp.transpose(p["w"], (2, 3, 1, 0))
                  .reshape(9 * cin, cout).astype(jnp.bfloat16))
        if li == 0:
            patches = _im2col_first_layer(x_bf16, stride)      # (M1, 9*Cin0) bf16
            args += [patches, w_flat]
            bytes_acc += patches.size * 2
        else:
            idx = _tap_indices_np(N, h, w_sp, stride)           # (M_l, 9) int32
            args += [jnp.asarray(idx), w_flat]
            flops += 2 * 9 * m_out * m_in * cin                 # in-kernel gathers
            bytes_acc += idx.size * 4
        bytes_acc += w_flat.size * 2
        flops += 2 * m_out * (9 * cin) * cout
        if has_bias:
            args.append(p["b"].reshape(1, cout).astype(jnp.float32))
            bytes_acc += cout * 4
        if use_bn:
            args.append(p["gamma"].reshape(1, cout).astype(jnp.float32))
            args.append(p["beta"].reshape(1, cout).astype(jnp.float32))
            bytes_acc += 2 * cout * 4
        layer_meta.append((li == 0, has_bias, use_bn, use_act))
        h, w_sp, m_in = ho, wo, m_out

    cout_last = cfgs[-1][1]
    bytes_acc += m_in * cout_last * 4

    out_flat = pl.pallas_call(
        functools.partial(_fused_discriminator_kernel,
                          layer_meta=tuple(layer_meta)),
        out_shape=jax.ShapeDtypeStruct((m_in, cout_last), jnp.float32),
        compiler_params=pltpu.CompilerParams(
            vmem_limit_bytes=32 * 1024 * 1024),
        cost_estimate=pl.CostEstimate(flops=int(flops),
                                      transcendentals=256,
                                      bytes_accessed=int(bytes_acc)),
    )(*args)

    return jnp.transpose(out_flat.reshape(N, h, w_sp, cout_last), (0, 3, 1, 2))


# ----------------------------------------------------------------------------
# Pure-JAX reference (lax.conv, bf16-rounded operands to match the kernel).
# ----------------------------------------------------------------------------
def reference_forward(x_nchw, params, cfgs):
    x = jnp.transpose(x_nchw, (0, 2, 3, 1))
    for p, cfg in zip(params, cfgs):
        _cin, _cout, stride, has_bias, use_bn, use_act = cfg
        xb = x.astype(jnp.bfloat16).astype(jnp.float32)
        wb = jnp.transpose(p["w"], (2, 3, 1, 0)).astype(jnp.bfloat16).astype(jnp.float32)
        y = lax.conv_general_dilated(
            xb, wb, (stride, stride), [(1, 1), (1, 1)],
            dimension_numbers=("NHWC", "HWIO", "NHWC"),
            precision=lax.Precision.HIGHEST)
        if has_bias:
            y = y + p["b"]
        if use_bn:
            mean = jnp.mean(y, axis=(0, 1, 2), keepdims=True)
            var = jnp.mean((y - mean) ** 2, axis=(0, 1, 2), keepdims=True)
            y = (y - mean) * lax.rsqrt(var + EPS) * p["gamma"] + p["beta"]
        if use_act:
            y = jnp.where(y > 0, y, SLOPE * y)
        x = y
    return jnp.transpose(x, (0, 3, 1, 2))


if __name__ == "__main__":
    key = jax.random.PRNGKey(0)
    k_param, k_x = jax.random.split(key)

    in_channels, base_channels, num_conv = 4, 16, 3
    cfgs = build_layer_cfgs(in_channels, base_channels, num_conv)
    params = make_params(k_param, cfgs)

    x = jax.random.normal(k_x, (2, in_channels, 16, 16), jnp.float32)

    fwd = jax.jit(functools.partial(patch_discriminator_forward, cfgs=cfgs))
    out = jax.block_until_ready(fwd(x, params))

    ref = jax.block_until_ready(reference_forward(x, params, cfgs))
    assert out.shape == (2, 1, 2, 2), out.shape
    np.testing.assert_allclose(np.asarray(out), np.asarray(ref),
                               rtol=2e-3, atol=2e-3)
    print("KERNEL_OK")
</pallas_src>

<mosaic_0001>
module attributes {stable_mosaic.version = 11 : i64} {
  func.func @_fused_discriminator_kernel(%arg0: memref<128x36xbf16, #tpu.memory_space<vmem>>, %arg1: memref<36x16xbf16, #tpu.memory_space<vmem>>, %arg2: memref<1x16xf32, #tpu.memory_space<vmem>>, %arg3: memref<32x9xi32, #tpu.memory_space<vmem>>, %arg4: memref<144x32xbf16, #tpu.memory_space<vmem>>, %arg5: memref<1x32xf32, #tpu.memory_space<vmem>>, %arg6: memref<1x32xf32, #tpu.memory_space<vmem>>, %arg7: memref<8x9xi32, #tpu.memory_space<vmem>>, %arg8: memref<288x64xbf16, #tpu.memory_space<vmem>>, %arg9: memref<1x64xf32, #tpu.memory_space<vmem>>, %arg10: memref<1x64xf32, #tpu.memory_space<vmem>>, %arg11: memref<8x9xi32, #tpu.memory_space<vmem>>, %arg12: memref<576x128xbf16, #tpu.memory_space<vmem>>, %arg13: memref<1x128xf32, #tpu.memory_space<vmem>>, %arg14: memref<1x128xf32, #tpu.memory_space<vmem>>, %arg15: memref<8x9xi32, #tpu.memory_space<vmem>>, %arg16: memref<1152x1xbf16, #tpu.memory_space<vmem>>, %arg17: memref<1x1xf32, #tpu.memory_space<vmem>>, %arg18: memref<8x1xf32, #tpu.memory_space<vmem>>) attributes {dimension_semantics = [], scalar_prefetch = 0 : i64, scratch_operands = 0 : i64, tpu.core_type = #tpu.core_type<tc>} {
    %c0 = arith.constant 0 : index
    %c0_0 = arith.constant 0 : index
    %0 = vector.load %arg0[%c0, %c0_0] : memref<128x36xbf16, #tpu.memory_space<vmem>>, vector<128x36xbf16>
    %c0_1 = arith.constant 0 : index
    %c0_2 = arith.constant 0 : index
    %1 = vector.load %arg1[%c0_1, %c0_2] : memref<36x16xbf16, #tpu.memory_space<vmem>>, vector<36x16xbf16>
    %cst = arith.constant dense<0.000000e+00> : vector<128x16xf32>
    %2 = tpu.matmul %0, %1, %cst {dimension_numbers = #tpu.dot_dimension_numbers<[1], [0], [0], [1], [0, 0, 1, 1], [], []>} : vector<128x36xbf16>, vector<36x16xbf16>, vector<128x16xf32> -> vector<128x16xf32>
    %c0_3 = arith.constant 0 : index
    %c0_4 = arith.constant 0 : index
    %3 = vector.load %arg2[%c0_3, %c0_4] : memref<1x16xf32, #tpu.memory_space<vmem>>, vector<1x16xf32>
    %4 = vector.broadcast %3 : vector<1x16xf32> to vector<128x16xf32>
    %5 = arith.addf %2, %4 : vector<128x16xf32>
    %cst_5 = arith.constant 0.000000e+00 : f32
    %6 = vector.broadcast %cst_5 : f32 to vector<128x16xf32>
    %7 = arith.cmpf ogt, %5, %6 : vector<128x16xf32>
    %cst_6 = arith.constant 2.000000e-01 : f32
    %8 = vector.broadcast %cst_6 : f32 to vector<128x16xf32>
    %9 = arith.mulf %8, %5 : vector<128x16xf32>
    %10 = arith.select %7, %5, %9 : vector<128x16xi1>, vector<128x16xf32>
    %c0_7 = arith.constant 0 : index
    %c0_8 = arith.constant 0 : index
    %11 = vector.load %arg3[%c0_7, %c0_8] : memref<32x9xi32, #tpu.memory_space<vmem>>, vector<32x9xi32>
    %c0_9 = arith.constant 0 : index
    %c0_10 = arith.constant 0 : index
    %12 = vector.load %arg4[%c0_9, %c0_10] : memref<144x32xbf16, #tpu.memory_space<vmem>>, vector<144x32xbf16>
    %13 = arith.truncf %10 : vector<128x16xf32> to vector<128x16xbf16>
    %14 = tpu.iota {dimensions = array<i32: 1>} : vector<32x128xi32>
    %cst_11 = arith.constant 0.000000e+00 : f32
    %15 = vector.broadcast %cst_11 : f32 to vector<32x32xf32>
    %16 = vector.extract_strided_slice %11 {offsets = [0, 0], sizes = [32, 1], strides = [1, 1]} : vector<32x9xi32> to vector<32x1xi32>
    %17 = vector.broadcast %16 : vector<32x1xi32> to vector<32x128xi32>
    %18 = arith.cmpi eq, %14, %17 : vector<32x128xi32>
    %cst_12 = arith.constant 1.000000e+00 : f32
    %cst_13 = arith.constant 0.000000e+00 : f32
    %19 = vector.broadcast %cst_12 : f32 to vector<32x128xf32>
    %20 = vector.broadcast %cst_13 : f32 to vector<32x128xf32>
    %21 = arith.select %18, %19, %20 : vector<32x128xi1>, vector<32x128xf32>
    %22 = arith.truncf %21 : vector<32x128xf32> to vector<32x128xbf16>
    %cst_14 = arith.constant dense<0.000000e+00> : vector<32x16xf32>
    %23 = tpu.matmul %22, %13, %cst_14 {dimension_numbers = #tpu.dot_dimension_numbers<[1], [0], [0], [1], [0, 0, 1, 1], [], []>} : vector<32x128xbf16>, vector<128x16xbf16>, vector<32x16xf32> -> vector<32x16xf32>
    %24 = arith.truncf %23 : vector<32x16xf32> to vector<32x16xbf16>
    %25 = vector.extract_strided_slice %12 {offsets = [0, 0], sizes = [16, 32], strides = [1, 1]} : vector<144x32xbf16> to vector<16x32xbf16>
    %cst_15 = arith.constant dense<0.000000e+00> : vector<32x32xf32>
    %26 = tpu.matmul %24, %25, %cst_15 {dimension_numbers = #tpu.dot_dimension_numbers<[1], [0], [0], [1], [0, 0, 1, 1], [], []>} : vector<32x16xbf16>, vector<16x32xbf16>, vector<32x32xf32> -> vector<32x32xf32>
    %27 = arith.addf %15, %26 : vector<32x32xf32>
    %28 = vector.extract_strided_slice %11 {offsets = [0, 1], sizes = [32, 1], strides = [1, 1]} : vector<32x9xi32> to vector<32x1xi32>
    %29 = vector.broadcast %28 : vector<32x1xi32> to vector<32x128xi32>
    %30 = arith.cmpi eq, %14, %29 : vector<32x128xi32>
    %cst_16 = arith.constant 1.000000e+00 : f32
    %cst_17 = arith.constant 0.000000e+00 : f32
    %31 = vector.broadcast %cst_16 : f32 to vector<32x128xf32>
    %32 = vector.broadcast %cst_17 : f32 to vector<32x128xf32>
    %33 = arith.select %30, %31, %32 : vector<32x128xi1>, vector<32x128xf32>
    %34 = arith.truncf %33 : vector<32x128xf32> to vector<32x128xbf16>
    %cst_18 = arith.constant dense<0.000000e+00> : vector<32x16xf32>
    %35 = tpu.matmul %34, %13, %cst_18 {dimension_numbers = #tpu.dot_dimension_numbers<[1], [0], [0], [1], [0, 0, 1, 1], [], []>} : vector<32x128xbf16>, vector<128x16xbf16>, vector<32x16xf32> -> vector<32x16xf32>
    %36 = arith.truncf %35 : vector<32x16xf32> to vector<32x16xbf16>
    %37 = vector.extract_strided_slice %12 {offsets = [16, 0], sizes = [16, 32], strides = [1, 1]} : vector<144x32xbf16> to vector<16x32xbf16>
    %cst_19 = arith.constant dense<0.000000e+00> : vector<32x32xf32>
    %38 = tpu.matmul %36, %37, %cst_19 {dimension_numbers = #tpu.dot_dimension_numbers<[1], [0], [0], [1], [0, 0, 1, 1], [], []>} : vector<32x16xbf16>, vector<16x32xbf16>, vector<32x32xf32> -> vector<32x32xf32>
    %39 = arith.addf %27, %38 : vector<32x32xf32>
    %40 = vector.extract_strided_slice %11 {offsets = [0, 2], sizes = [32, 1], strides = [1, 1]} : vector<32x9xi32> to vector<32x1xi32>
    %41 = vector.broadcast %40 : vector<32x1xi32> to vector<32x128xi32>
    %42 = arith.cmpi eq, %14, %41 : vector<32x128xi32>
    %cst_20 = arith.constant 1.000000e+00 : f32
    %cst_21 = arith.constant 0.000000e+00 : f32
    %43 = vector.broadcast %cst_20 : f32 to vector<32x128xf32>
    %44 = vector.broadcast %cst_21 : f32 to vector<32x128xf32>
    %45 = arith.select %42, %43, %44 : vector<32x128xi1>, vector<32x128xf32>
    %46 = arith.truncf %45 : vector<32x128xf32> to vector<32x128xbf16>
    %cst_22 = arith.constant dense<0.000000e+00> : vector<32x16xf32>
    %47 = tpu.matmul %46, %13, %cst_22 {dimension_numbers = #tpu.dot_dimension_numbers<[1], [0], [0], [1], [0, 0, 1, 1], [], []>} : vector<32x128xbf16>, vector<128x16xbf16>, vector<32x16xf32> -> vector<32x16xf32>
    %48 = arith.truncf %47 : vector<32x16xf32> to vector<32x16xbf16>
    %49 = vector.extract_strided_slice %12 {offsets = [32, 0], sizes = [16, 32], strides = [1, 1]} : vector<144x32xbf16> to vector<16x32xbf16>
    %cst_23 = arith.constant dense<0.000000e+00> : vector<32x32xf32>
    %50 = tpu.matmul %48, %49, %cst_23 {dimension_numbers = #tpu.dot_dimension_numbers<[1], [0], [0], [1], [0, 0, 1, 1], [], []>} : vector<32x16xbf16>, vector<16x32xbf16>, vector<32x32xf32> -> vector<32x32xf32>
    %51 = arith.addf %39, %50 : vector<32x32xf32>
    %52 = vector.extract_strided_slice %11 {offsets = [0, 3], sizes = [32, 1], strides = [1, 1]} : vector<32x9xi32> to vector<32x1xi32>
    %53 = vector.broadcast %52 : vector<32x1xi32> to vector<32x128xi32>
    %54 = arith.cmpi eq, %14, %53 : vector<32x128xi32>
    %cst_24 = arith.constant 1.000000e+00 : f32
    %cst_25 = arith.constant 0.000000e+00 : f32
    %55 = vector.broadcast %cst_24 : f32 to vector<32x128xf32>
    %56 = vector.broadcast %cst_25 : f32 to vector<32x128xf32>
    %57 = arith.select %54, %55, %56 : vector<32x128xi1>, vector<32x128xf32>
    %58 = arith.truncf %57 : vector<32x128xf32> to vector<32x128xbf16>
    %cst_26 = arith.constant dense<0.000000e+00> : vector<32x16xf32>
    %59 = tpu.matmul %58, %13, %cst_26 {dimension_numbers = #tpu.dot_dimension_numbers<[1], [0], [0], [1], [0, 0, 1, 1], [], []>} : vector<32x128xbf16>, vector<128x16xbf16>, vector<32x16xf32> -> vector<32x16xf32>
    %60 = arith.truncf %59 : vector<32x16xf32> to vector<32x16xbf16>
    %61 = vector.extract_strided_slice %12 {offsets = [48, 0], sizes = [16, 32], strides = [1, 1]} : vector<144x32xbf16> to vector<16x32xbf16>
    %cst_27 = arith.constant dense<0.000000e+00> : vector<32x32xf32>
    %62 = tpu.matmul %60, %61, %cst_27 {dimension_numbers = #tpu.dot_dimension_numbers<[1], [0], [0], [1], [0, 0, 1, 1], [], []>} : vector<32x16xbf16>, vector<16x32xbf16>, vector<32x32xf32> -> vector<32x32xf32>
    %63 = arith.addf %51, %62 : vector<32x32xf32>
    %64 = vector.extract_strided_slice %11 {offsets = [0, 4], sizes = [32, 1], strides = [1, 1]} : vector<32x9xi32> to vector<32x1xi32>
    %65 = vector.broadcast %64 : vector<32x1xi32> to vector<32x128xi32>
    %66 = arith.cmpi eq, %14, %65 : vector<32x128xi32>
    %cst_28 = arith.constant 1.000000e+00 : f32
    %cst_29 = arith.constant 0.000000e+00 : f32
    %67 = vector.broadcast %cst_28 : f32 to vector<32x128xf32>
    %68 = vector.broadcast %cst_29 : f32 to vector<32x128xf32>
    %69 = arith.select %66, %67, %68 : vector<32x128xi1>, vector<32x128xf32>
    %70 = arith.truncf %69 : vector<32x128xf32> to vector<32x128xbf16>
    %cst_30 = arith.constant dense<0.000000e+00> : vector<32x16xf32>
    %71 = tpu.matmul %70, %13, %cst_30 {dimension_numbers = #tpu.dot_dimension_numbers<[1], [0], [0], [1], [0, 0, 1, 1], [], []>} : vector<32x128xbf16>, vector<128x16xbf16>, vector<32x16xf32> -> vector<32x16xf32>
    %72 = arith.truncf %71 : vector<32x16xf32> to vector<32x16xbf16>
    %73 = vector.extract_strided_slice %12 {offsets = [64, 0], sizes = [16, 32], strides = [1, 1]} : vector<144x32xbf16> to vector<16x32xbf16>
    %cst_31 = arith.constant dense<0.000000e+00> : vector<32x32xf32>
    %74 = tpu.matmul %72, %73, %cst_31 {dimension_numbers = #tpu.dot_dimension_numbers<[1], [0], [0], [1], [0, 0, 1, 1], [], []>} : vector<32x16xbf16>, vector<16x32xbf16>, vector<32x32xf32> -> vector<32x32xf32>
    %75 = arith.addf %63, %74 : vector<32x32xf32>
    %76 = vector.extract_strided_slice %11 {offsets = [0, 5], sizes = [32, 1], strides = [1, 1]} : vector<32x9xi32> to vector<32x1xi32>
    %77 = vector.broadcast %76 : vector<32x1xi32> to vector<32x128xi32>
    %78 = arith.cmpi eq, %14, %77 : vector<32x128xi32>
    %cst_32 = arith.constant 1.000000e+00 : f32
    %cst_33 = arith.constant 0.000000e+00 : f32
    %79 = vector.broadcast %cst_32 : f32 to vector<32x128xf32>
    %80 = vector.broadcast %cst_33 : f32 to vector<32x128xf32>
    %81 = arith.select %78, %79, %80 : vector<32x128xi1>, vector<32x128xf32>
    %82 = arith.truncf %81 : vector<32x128xf32> to vector<32x128xbf16>
    %cst_34 = arith.constant dense<0.000000e+00> : vector<32x16xf32>
    %83 = tpu.matmul %82, %13, %cst_34 {dimension_numbers = #tpu.dot_dimension_numbers<[1], [0], [0], [1], [0, 0, 1, 1], [], []>} : vector<32x128xbf16>, vector<128x16xbf16>, vector<32x16xf32> -> vector<32x16xf32>
    %84 = arith.truncf %83 : vector<32x16xf32> to vector<32x16xbf16>
    %85 = vector.extract_strided_slice %12 {offsets = [80, 0], sizes = [16, 32], strides = [1, 1]} : vector<144x32xbf16> to vector<16x32xbf16>
    %cst_35 = arith.constant dense<0.000000e+00> : vector<32x32xf32>
    %86 = tpu.matmul %84, %85, %cst_35 {dimension_numbers = #tpu.dot_dimension_numbers<[1], [0], [0], [1], [0, 0, 1, 1], [], []>} : vector<32x16xbf16>, vector<16x32xbf16>, vector<32x32xf32> -> vector<32x32xf32>
    %87 = arith.addf %75, %86 : vector<32x32xf32>
    %88 = vector.extract_strided_slice %11 {offsets = [0, 6], sizes = [32, 1], strides = [1, 1]} : vector<32x9xi32> to vector<32x1xi32>
    %89 = vector.broadcast %88 : vector<32x1xi32> to vector<32x128xi32>
    %90 = arith.cmpi eq, %14, %89 : vector<32x128xi32>
    %cst_36 = arith.constant 1.000000e+00 : f32
    %cst_37 = arith.constant 0.000000e+00 : f32
    %91 = vector.broadcast %cst_36 : f32 to vector<32x128xf32>
    %92 = vector.broadcast %cst_37 : f32 to vector<32x128xf32>
    %93 = arith.select %90, %91, %92 : vector<32x128xi1>, vector<32x128xf32>
    %94 = arith.truncf %93 : vector<32x128xf32> to vector<32x128xbf16>
    %cst_38 = arith.constant dense<0.000000e+00> : vector<32x16xf32>
    %95 = tpu.matmul %94, %13, %cst_38 {dimension_numbers = #tpu.dot_dimension_numbers<[1], [0], [0], [1], [0, 0, 1, 1], [], []>} : vector<32x128xbf16>, vector<128x16xbf16>, vector<32x16xf32> -> vector<32x16xf32>
    %96 = arith.truncf %95 : vector<32x16xf32> to vector<32x16xbf16>
    %97 = vector.extract_strided_slice %12 {offsets = [96, 0], sizes = [16, 32], strides = [1, 1]} : vector<144x32xbf16> to vector<16x32xbf16>
    %cst_39 = arith.constant dense<0.000000e+00> : vector<32x32xf32>
    %98 = tpu.matmul %96, %97, %cst_39 {dimension_numbers = #tpu.dot_dimension_numbers<[1], [0], [0], [1], [0, 0, 1, 1], [], []>} : vector<32x16xbf16>, vector<16x32xbf16>, vector<32x32xf32> -> vector<32x32xf32>
    %99 = arith.addf %87, %98 : vector<32x32xf32>
    %100 = vector.extract_strided_slice %11 {offsets = [0, 7], sizes = [32, 1], strides = [1, 1]} : vector<32x9xi32> to vector<32x1xi32>
    %101 = vector.broadcast %100 : vector<32x1xi32> to vector<32x128xi32>
    %102 = arith.cmpi eq, %14, %101 : vector<32x128xi32>
    %cst_40 = arith.constant 1.000000e+00 : f32
    %cst_41 = arith.constant 0.000000e+00 : f32
    %103 = vector.broadcast %cst_40 : f32 to vector<32x128xf32>
    %104 = vector.broadcast %cst_41 : f32 to vector<32x128xf32>
    %105 = arith.select %102, %103, %104 : vector<32x128xi1>, vector<32x128xf32>
    %106 = arith.truncf %105 : vector<32x128xf32> to vector<32x128xbf16>
    %cst_42 = arith.constant dense<0.000000e+00> : vector<32x16xf32>
    %107 = tpu.matmul %106, %13, %cst_42 {dimension_numbers = #tpu.dot_dimension_numbers<[1], [0], [0], [1], [0, 0, 1, 1], [], []>} : vector<32x128xbf16>, vector<128x16xbf16>, vector<32x16xf32> -> vector<32x16xf32>
    %108 = arith.truncf %107 : vector<32x16xf32> to vector<32x16xbf16>
    %109 = vector.extract_strided_slice %12 {offsets = [112, 0], sizes = [16, 32], strides = [1, 1]} : vector<144x32xbf16> to vector<16x32xbf16>
    %cst_43 = arith.constant dense<0.000000e+00> : vector<32x32xf32>
    %110 = tpu.matmul %108, %109, %cst_43 {dimension_numbers = #tpu.dot_dimension_numbers<[1], [0], [0], [1], [0, 0, 1, 1], [], []>} : vector<32x16xbf16>, vector<16x32xbf16>, vector<32x32xf32> -> vector<32x32xf32>
    %111 = arith.addf %99, %110 : vector<32x32xf32>
    %112 = vector.extract_strided_slice %11 {offsets = [0, 8], sizes = [32, 1], strides = [1, 1]} : vector<32x9xi32> to vector<32x1xi32>
    %113 = vector.broadcast %112 : vector<32x1xi32> to vector<32x128xi32>
    %114 = arith.cmpi eq, %14, %113 : vector<32x128xi32>
    %cst_44 = arith.constant 1.000000e+00 : f32
    %cst_45 = arith.constant 0.000000e+00 : f32
    %115 = vector.broadcast %cst_44 : f32 to vector<32x128xf32>
    %116 = vector.broadcast %cst_45 : f32 to vector<32x128xf32>
    %117 = arith.select %114, %115, %116 : vector<32x128xi1>, vector<32x128xf32>
    %118 = arith.truncf %117 : vector<32x128xf32> to vector<32x128xbf16>
    %cst_46 = arith.constant dense<0.000000e+00> : vector<32x16xf32>
    %119 = tpu.matmul %118, %13, %cst_46 {dimension_numbers = #tpu.dot_dimension_numbers<[1], [0], [0], [1], [0, 0, 1, 1], [], []>} : vector<32x128xbf16>, vector<128x16xbf16>, vector<32x16xf32> -> vector<32x16xf32>
    %120 = arith.truncf %119 : vector<32x16xf32> to vector<32x16xbf16>
    %121 = vector.extract_strided_slice %12 {offsets = [128, 0], sizes = [16, 32], strides = [1, 1]} : vector<144x32xbf16> to vector<16x32xbf16>
    %cst_47 = arith.constant dense<0.000000e+00> : vector<32x32xf32>
    %122 = tpu.matmul %120, %121, %cst_47 {dimension_numbers = #tpu.dot_dimension_numbers<[1], [0], [0], [1], [0, 0, 1, 1], [], []>} : vector<32x16xbf16>, vector<16x32xbf16>, vector<32x32xf32> -> vector<32x32xf32>
    %123 = arith.addf %111, %122 : vector<32x32xf32>
    %c0_48 = arith.constant 0 : index
    %c0_49 = arith.constant 0 : index
    %124 = vector.load %arg5[%c0_48, %c0_49] : memref<1x32xf32, #tpu.memory_space<vmem>>, vector<1x32xf32>
    %c0_50 = arith.constant 0 : index
    %c0_51 = arith.constant 0 : index
    %125 = vector.load %arg6[%c0_50, %c0_51] : memref<1x32xf32, #tpu.memory_space<vmem>>, vector<1x32xf32>
    %cst_52 = arith.constant dense<0.000000e+00> : vector<32xf32>
    %126 = vector.multi_reduction <add>, %123, %cst_52 [0] : vector<32x32xf32> to vector<32xf32>
    %127 = vector.shape_cast %126 : vector<32xf32> to vector<1x32xf32>
    %cst_53 = arith.constant 3.200000e+01 : f32
    %128 = vector.broadcast %cst_53 : f32 to vector<1x32xf32>
    %129 = arith.divf %127, %128 : vector<1x32xf32>
    %130 = vector.broadcast %129 : vector<1x32xf32> to vector<32x32xf32>
    %131 = arith.subf %123, %130 : vector<32x32xf32>
    %132 = arith.mulf %131, %131 : vector<32x32xf32>
    %cst_54 = arith.constant dense<0.000000e+00> : vector<32xf32>
    %133 = vector.multi_reduction <add>, %132, %cst_54 [0] : vector<32x32xf32> to vector<32xf32>
    %134 = vector.shape_cast %133 : vector<32xf32> to vector<1x32xf32>
    %cst_55 = arith.constant 3.200000e+01 : f32
    %135 = vector.broadcast %cst_55 : f32 to vector<1x32xf32>
    %136 = arith.divf %134, %135 : vector<1x32xf32>
    %cst_56 = arith.constant 9.99999974E-6 : f32
    %137 = vector.broadcast %cst_56 : f32 to vector<1x32xf32>
    %138 = arith.addf %136, %137 : vector<1x32xf32>
    %139 = math.rsqrt %138 : vector<1x32xf32>
    %140 = vector.broadcast %139 : vector<1x32xf32> to vector<32x32xf32>
    %141 = arith.mulf %131, %140 : vector<32x32xf32>
    %142 = vector.broadcast %124 : vector<1x32xf32> to vector<32x32xf32>
    %143 = arith.mulf %141, %142 : vector<32x32xf32>
    %144 = vector.broadcast %125 : vector<1x32xf32> to vector<32x32xf32>
    %145 = arith.addf %143, %144 : vector<32x32xf32>
    %cst_57 = arith.constant 0.000000e+00 : f32
    %146 = vector.broadcast %cst_57 : f32 to vector<32x32xf32>
    %147 = arith.cmpf ogt, %145, %146 : vector<32x32xf32>
    %cst_58 = arith.constant 2.000000e-01 : f32
    %148 = vector.broadcast %cst_58 : f32 to vector<32x32xf32>
    %149 = arith.mulf %148, %145 : vector<32x32xf32>
    %150 = arith.select %147, %145, %149 : vector<32x32xi1>, vector<32x32xf32>
    %c0_59 = arith.constant 0 : index
    %c0_60 = arith.constant 0 : index
    %151 = vector.load %arg7[%c0_59, %c0_60] : memref<8x9xi32, #tpu.memory_space<vmem>>, vector<8x9xi32>
    %c0_61 = arith.constant 0 : index
    %c0_62 = arith.constant 0 : index
    %152 = vector.load %arg8[%c0_61, %c0_62] : memref<288x64xbf16, #tpu.memory_space<vmem>>, vector<288x64xbf16>
    %153 = arith.truncf %150 : vector<32x32xf32> to vector<32x32xbf16>
    %154 = tpu.iota {dimensions = array<i32: 1>} : vector<8x32xi32>
    %cst_63 = arith.constant 0.000000e+00 : f32
    %155 = vector.broadcast %cst_63 : f32 to vector<8x64xf32>
    %156 = vector.extract_strided_slice %151 {offsets = [0, 0], sizes = [8, 1], strides = [1, 1]} : vector<8x9xi32> to vector<8x1xi32>
    %157 = vector.broadcast %156 : vector<8x1xi32> to vector<8x32xi32>
    %158 = arith.cmpi eq, %154, %157 : vector<8x32xi32>
    %cst_64 = arith.constant 1.000000e+00 : f32
    %cst_65 = arith.constant 0.000000e+00 : f32
    %159 = vector.broadcast %cst_64 : f32 to vector<8x32xf32>
    %160 = vector.broadcast %cst_65 : f32 to vector<8x32xf32>
    %161 = arith.select %158, %159, %160 : vector<8x32xi1>, vector<8x32xf32>
    %162 = arith.truncf %161 : vector<8x32xf32> to vector<8x32xbf16>
    %cst_66 = arith.constant dense<0.000000e+00> : vector<8x32xf32>
    %163 = tpu.matmul %162, %153, %cst_66 {dimension_numbers = #tpu.dot_dimension_numbers<[1], [0], [0], [1], [0, 0, 1, 1], [], []>} : vector<8x32xbf16>, vector<32x32xbf16>, vector<8x32xf32> -> vector<8x32xf32>
    %164 = arith.truncf %163 : vector<8x32xf32> to vector<8x32xbf16>
    %165 = vector.extract_strided_slice %152 {offsets = [0, 0], sizes = [32, 64], strides = [1, 1]} : vector<288x64xbf16> to vector<32x64xbf16>
    %cst_67 = arith.constant dense<0.000000e+00> : vector<8x64xf32>
    %166 = tpu.matmul %164, %165, %cst_67 {dimension_numbers = #tpu.dot_dimension_numbers<[1], [0], [0], [1], [0, 0, 1, 1], [], []>} : vector<8x32xbf16>, vector<32x64xbf16>, vector<8x64xf32> -> vector<8x64xf32>
    %167 = arith.addf %155, %166 : vector<8x64xf32>
    %168 = vector.extract_strided_slice %151 {offsets = [0, 1], sizes = [8, 1], strides = [1, 1]} : vector<8x9xi32> to vector<8x1xi32>
    %169 = vector.broadcast %168 : vector<8x1xi32> to vector<8x32xi32>
    %170 = arith.cmpi eq, %154, %169 : vector<8x32xi32>
    %cst_68 = arith.constant 1.000000e+00 : f32
    %cst_69 = arith.constant 0.000000e+00 : f32
    %171 = vector.broadcast %cst_68 : f32 to vector<8x32xf32>
    %172 = vector.broadcast %cst_69 : f32 to vector<8x32xf32>
    %173 = arith.select %170, %171, %172 : vector<8x32xi1>, vector<8x32xf32>
    %174 = arith.truncf %173 : vector<8x32xf32> to vector<8x32xbf16>
    %cst_70 = arith.constant dense<0.000000e+00> : vector<8x32xf32>
    %175 = tpu.matmul %174, %153, %cst_70 {dimension_numbers = #tpu.dot_dimension_numbers<[1], [0], [0], [1], [0, 0, 1, 1], [], []>} : vector<8x32xbf16>, vector<32x32xbf16>, vector<8x32xf32> -> vector<8x32xf32>
    %176 = arith.truncf %175 : vector<8x32xf32> to vector<8x32xbf16>
    %177 = vector.extract_strided_slice %152 {offsets = [32, 0], sizes = [32, 64], strides = [1, 1]} : vector<288x64xbf16> to vector<32x64xbf16>
    %cst_71 = arith.constant dense<0.000000e+00> : vector<8x64xf32>
    %178 = tpu.matmul %176, %177, %cst_71 {dimension_numbers = #tpu.dot_dimension_numbers<[1], [0], [0], [1], [0, 0, 1, 1], [], []>} : vector<8x32xbf16>, vector<32x64xbf16>, vector<8x64xf32> -> vector<8x64xf32>
    %179 = arith.addf %167, %178 : vector<8x64xf32>
    %180 = vector.extract_strided_slice %151 {offsets = [0, 2], sizes = [8, 1], strides = [1, 1]} : vector<8x9xi32> to vector<8x1xi32>
    %181 = vector.broadcast %180 : vector<8x1xi32> to vector<8x32xi32>
    %182 = arith.cmpi eq, %154, %181 : vector<8x32xi32>
    %cst_72 = arith.constant 1.000000e+00 : f32
    %cst_73 = arith.constant 0.000000e+00 : f32
    %183 = vector.broadcast %cst_72 : f32 to vector<8x32xf32>
    %184 = vector.broadcast %cst_73 : f32 to vector<8x32xf32>
    %185 = arith.select %182, %183, %184 : vector<8x32xi1>, vector<8x32xf32>
    %186 = arith.truncf %185 : vector<8x32xf32> to vector<8x32xbf16>
    %cst_74 = arith.constant dense<0.000000e+00> : vector<8x32xf32>
    %187 = tpu.matmul %186, %153, %cst_74 {dimension_numbers = #tpu.dot_dimension_numbers<[1], [0], [0], [1], [0, 0, 1, 1], [], []>} : vector<8x32xbf16>, vector<32x32xbf16>, vector<8x32xf32> -> vector<8x32xf32>
    %188 = arith.truncf %187 : vector<8x32xf32> to vector<8x32xbf16>
    %189 = vector.extract_strided_slice %152 {offsets = [64, 0], sizes = [32, 64], strides = [1, 1]} : vector<288x64xbf16> to vector<32x64xbf16>
    %cst_75 = arith.constant dense<0.000000e+00> : vector<8x64xf32>
    %190 = tpu.matmul %188, %189, %cst_75 {dimension_numbers = #tpu.dot_dimension_numbers<[1], [0], [0], [1], [0, 0, 1, 1], [], []>} : vector<8x32xbf16>, vector<32x64xbf16>, vector<8x64xf32> -> vector<8x64xf32>
    %191 = arith.addf %179, %190 : vector<8x64xf32>
    %192 = vector.extract_strided_slice %151 {offsets = [0, 3], sizes = [8, 1], strides = [1, 1]} : vector<8x9xi32> to vector<8x1xi32>
    %193 = vector.broadcast %192 : vector<8x1xi32> to vector<8x32xi32>
    %194 = arith.cmpi eq, %154, %193 : vector<8x32xi32>
    %cst_76 = arith.constant 1.000000e+00 : f32
    %cst_77 = arith.constant 0.000000e+00 : f32
    %195 = vector.broadcast %cst_76 : f32 to vector<8x32xf32>
    %196 = vector.broadcast %cst_77 : f32 to vector<8x32xf32>
    %197 = arith.select %194, %195, %196 : vector<8x32xi1>, vector<8x32xf32>
    %198 = arith.truncf %197 : vector<8x32xf32> to vector<8x32xbf16>
    %cst_78 = arith.constant dense<0.000000e+00> : vector<8x32xf32>
    %199 = tpu.matmul %198, %153, %cst_78 {dimension_numbers = #tpu.dot_dimension_numbers<[1], [0], [0], [1], [0, 0, 1, 1], [], []>} : vector<8x32xbf16>, vector<32x32xbf16>, vector<8x32xf32> -> vector<8x32xf32>
    %200 = arith.truncf %199 : vector<8x32xf32> to vector<8x32xbf16>
    %201 = vector.extract_strided_slice %152 {offsets = [96, 0], sizes = [32, 64], strides = [1, 1]} : vector<288x64xbf16> to vector<32x64xbf16>
    %cst_79 = arith.constant dense<0.000000e+00> : vector<8x64xf32>
    %202 = tpu.matmul %200, %201, %cst_79 {dimension_numbers = #tpu.dot_dimension_numbers<[1], [0], [0], [1], [0, 0, 1, 1], [], []>} : vector<8x32xbf16>, vector<32x64xbf16>, vector<8x64xf32> -> vector<8x64xf32>
    %203 = arith.addf %191, %202 : vector<8x64xf32>
    %204 = vector.extract_strided_slice %151 {offsets = [0, 4], sizes = [8, 1], strides = [1, 1]} : vector<8x9xi32> to vector<8x1xi32>
    %205 = vector.broadcast %204 : vector<8x1xi32> to vector<8x32xi32>
    %206 = arith.cmpi eq, %154, %205 : vector<8x32xi32>
    %cst_80 = arith.constant 1.000000e+00 : f32
    %cst_81 = arith.constant 0.000000e+00 : f32
    %207 = vector.broadcast %cst_80 : f32 to vector<8x32xf32>
    %208 = vector.broadcast %cst_81 : f32 to vector<8x32xf32>
    %209 = arith.select %206, %207, %208 : vector<8x32xi1>, vector<8x32xf32>
    %210 = arith.truncf %209 : vector<8x32xf32> to vector<8x32xbf16>
    %cst_82 = arith.constant dense<0.000000e+00> : vector<8x32xf32>
    %211 = tpu.matmul %210, %153, %cst_82 {dimension_numbers = #tpu.dot_dimension_numbers<[1], [0], [0], [1], [0, 0, 1, 1], [], []>} : vector<8x32xbf16>, vector<32x32xbf16>, vector<8x32xf32> -> vector<8x32xf32>
    %212 = arith.truncf %211 : vector<8x32xf32> to vector<8x32xbf16>
    %213 = vector.extract_strided_slice %152 {offsets = [128, 0], sizes = [32, 64], strides = [1, 1]} : vector<288x64xbf16> to vector<32x64xbf16>
    %cst_83 = arith.constant dense<0.000000e+00> : vector<8x64xf32>
    %214 = tpu.matmul %212, %213, %cst_83 {dimension_numbers = #tpu.dot_dimension_numbers<[1], [0], [0], [1], [0, 0, 1, 1], [], []>} : vector<8x32xbf16>, vector<32x64xbf16>, vector<8x64xf32> -> vector<8x64xf32>
    %215 = arith.addf %203, %214 : vector<8x64xf32>
    %216 = vector.extract_strided_slice %151 {offsets = [0, 5], sizes = [8, 1], strides = [1, 1]} : vector<8x9xi32> to vector<8x1xi32>
    %217 = vector.broadcast %216 : vector<8x1xi32> to vector<8x32xi32>
    %218 = arith.cmpi eq, %154, %217 : vector<8x32xi32>
    %cst_84 = arith.constant 1.000000e+00 : f32
    %cst_85 = arith.constant 0.000000e+00 : f32
    %219 = vector.broadcast %cst_84 : f32 to vector<8x32xf32>
    %220 = vector.broadcast %cst_85 : f32 to vector<8x32xf32>
    %221 = arith.select %218, %219, %220 : vector<8x32xi1>, vector<8x32xf32>
    %222 = arith.truncf %221 : vector<8x32xf32> to vector<8x32xbf16>
    %cst_86 = arith.constant dense<0.000000e+00> : vector<8x32xf32>
    %223 = tpu.matmul %222, %153, %cst_86 {dimension_numbers = #tpu.dot_dimension_numbers<[1], [0], [0], [1], [0, 0, 1, 1], [], []>} : vector<8x32xbf16>, vector<32x32xbf16>, vector<8x32xf32> -> vector<8x32xf32>
    %224 = arith.truncf %223 : vector<8x32xf32> to vector<8x32xbf16>
    %225 = vector.extract_strided_slice %152 {offsets = [160, 0], sizes = [32, 64], strides = [1, 1]} : vector<288x64xbf16> to vector<32x64xbf16>
    %cst_87 = arith.constant dense<0.000000e+00> : vector<8x64xf32>
    %226 = tpu.matmul %224, %225, %cst_87 {dimension_numbers = #tpu.dot_dimension_numbers<[1], [0], [0], [1], [0, 0, 1, 1], [], []>} : vector<8x32xbf16>, vector<32x64xbf16>, vector<8x64xf32> -> vector<8x64xf32>
    %227 = arith.addf %215, %226 : vector<8x64xf32>
    %228 = vector.extract_strided_slice %151 {offsets = [0, 6], sizes = [8, 1], strides = [1, 1]} : vector<8x9xi32> to vector<8x1xi32>
    %229 = vector.broadcast %228 : vector<8x1xi32> to vector<8x32xi32>
    %230 = arith.cmpi eq, %154, %229 : vector<8x32xi32>
    %cst_88 = arith.constant 1.000000e+00 : f32
    %cst_89 = arith.constant 0.000000e+00 : f32
    %231 = vector.broadcast %cst_88 : f32 to vector<8x32xf32>
    %232 = vector.broadcast %cst_89 : f32 to vector<8x32xf32>
    %233 = arith.select %230, %231, %232 : vector<8x32xi1>, vector<8x32xf32>
    %234 = arith.truncf %233 : vector<8x32xf32> to vector<8x32xbf16>
    %cst_90 = arith.constant dense<0.000000e+00> : vector<8x32xf32>
    %235 = tpu.matmul %234, %153, %cst_90 {dimension_numbers = #tpu.dot_dimension_numbers<[1], [0], [0], [1], [0, 0, 1, 1], [], []>} : vector<8x32xbf16>, vector<32x32xbf16>, vector<8x32xf32> -> vector<8x32xf32>
    %236 = arith.truncf %235 : vector<8x32xf32> to vector<8x32xbf16>
    %237 = vector.extract_strided_slice %152 {offsets = [192, 0], sizes = [32, 64], strides = [1, 1]} : vector<288x64xbf16> to vector<32x64xbf16>
    %cst_91 = arith.constant dense<0.000000e+00> : vector<8x64xf32>
    %238 = tpu.matmul %236, %237, %cst_91 {dimension_numbers = #tpu.dot_dimension_numbers<[1], [0], [0], [1], [0, 0, 1, 1], [], []>} : vector<8x32xbf16>, vector<32x64xbf16>, vector<8x64xf32> -> vector<8x64xf32>
    %239 = arith.addf %227, %238 : vector<8x64xf32>
    %240 = vector.extract_strided_slice %151 {offsets = [0, 7], sizes = [8, 1], strides = [1, 1]} : vector<8x9xi32> to vector<8x1xi32>
    %241 = vector.broadcast %240 : vector<8x1xi32> to vector<8x32xi32>
    %242 = arith.cmpi eq, %154, %241 : vector<8x32xi32>
    %cst_92 = arith.constant 1.000000e+00 : f32
    %cst_93 = arith.constant 0.000000e+00 : f32
    %243 = vector.broadcast %cst_92 : f32 to vector<8x32xf32>
    %244 = vector.broadcast %cst_93 : f32 to vector<8x32xf32>
    %245 = arith.select %242, %243, %244 : vector<8x32xi1>, vector<8x32xf32>
    %246 = arith.truncf %245 : vector<8x32xf32> to vector<8x32xbf16>
    %cst_94 = arith.constant dense<0.000000e+00> : vector<8x32xf32>
    %247 = tpu.matmul %246, %153, %cst_94 {dimension_numbers = #tpu.dot_dimension_numbers<[1], [0], [0], [1], [0, 0, 1, 1], [], []>} : vector<8x32xbf16>, vector<32x32xbf16>, vector<8x32xf32> -> vector<8x32xf32>
    %248 = arith.truncf %247 : vector<8x32xf32> to vector<8x32xbf16>
    %249 = vector.extract_strided_slice %152 {offsets = [224, 0], sizes = [32, 64], strides = [1, 1]} : vector<288x64xbf16> to vector<32x64xbf16>
    %cst_95 = arith.constant dense<0.000000e+00> : vector<8x64xf32>
    %250 = tpu.matmul %248, %249, %cst_95 {dimension_numbers = #tpu.dot_dimension_numbers<[1], [0], [0], [1], [0, 0, 1, 1], [], []>} : vector<8x32xbf16>, vector<32x64xbf16>, vector<8x64xf32> -> vector<8x64xf32>
    %251 = arith.addf %239, %250 : vector<8x64xf32>
    %252 = vector.extract_strided_slice %151 {offsets = [0, 8], sizes = [8, 1], strides = [1, 1]} : vector<8x9xi32> to vector<8x1xi32>
    %253 = vector.broadcast %252 : vector<8x1xi32> to vector<8x32xi32>
    %254 = arith.cmpi eq, %154, %253 : vector<8x32xi32>
    %cst_96 = arith.constant 1.000000e+00 : f32
    %cst_97 = arith.constant 0.000000e+00 : f32
    %255 = vector.broadcast %cst_96 : f32 to vector<8x32xf32>
    %256 = vector.broadcast %cst_97 : f32 to vector<8x32xf32>
    %257 = arith.select %254, %255, %256 : vector<8x32xi1>, vector<8x32xf32>
    %258 = arith.truncf %257 : vector<8x32xf32> to vector<8x32xbf16>
    %cst_98 = arith.constant dense<0.000000e+00> : vector<8x32xf32>
    %259 = tpu.matmul %258, %153, %cst_98 {dimension_numbers = #tpu.dot_dimension_numbers<[1], [0], [0], [1], [0, 0, 1, 1], [], []>} : vector<8x32xbf16>, vector<32x32xbf16>, vector<8x32xf32> -> vector<8x32xf32>
    %260 = arith.truncf %259 : vector<8x32xf32> to vector<8x32xbf16>
    %261 = vector.extract_strided_slice %152 {offsets = [256, 0], sizes = [32, 64], strides = [1, 1]} : vector<288x64xbf16> to vector<32x64xbf16>
    %cst_99 = arith.constant dense<0.000000e+00> : vector<8x64xf32>
    %262 = tpu.matmul %260, %261, %cst_99 {dimension_numbers = #tpu.dot_dimension_numbers<[1], [0], [0], [1], [0, 0, 1, 1], [], []>} : vector<8x32xbf16>, vector<32x64xbf16>, vector<8x64xf32> -> vector<8x64xf32>
    %263 = arith.addf %251, %262 : vector<8x64xf32>
    %c0_100 = arith.constant 0 : index
    %c0_101 = arith.constant 0 : index
    %264 = vector.load %arg9[%c0_100, %c0_101] : memref<1x64xf32, #tpu.memory_space<vmem>>, vector<1x64xf32>
    %c0_102 = arith.constant 0 : index
    %c0_103 = arith.constant 0 : index
    %265 = vector.load %arg10[%c0_102, %c0_103] : memref<1x64xf32, #tpu.memory_space<vmem>>, vector<1x64xf32>
    %cst_104 = arith.constant dense<0.000000e+00> : vector<64xf32>
    %266 = vector.multi_reduction <add>, %263, %cst_104 [0] : vector<8x64xf32> to vector<64xf32>
    %267 = vector.shape_cast %266 : vector<64xf32> to vector<1x64xf32>
    %cst_105 = arith.constant 8.000000e+00 : f32
    %268 = vector.broadcast %cst_105 : f32 to vector<1x64xf32>
    %269 = arith.divf %267, %268 : vector<1x64xf32>
    %270 = vector.broadcast %269 : vector<1x64xf32> to vector<8x64xf32>
    %271 = arith.subf %263, %270 : vector<8x64xf32>
    %272 = arith.mulf %271, %271 : vector<8x64xf32>
    %cst_106 = arith.constant dense<0.000000e+00> : vector<64xf32>
    %273 = vector.multi_reduction <add>, %272, %cst_106 [0] : vector<8x64xf32> to vector<64xf32>
    %274 = vector.shape_cast %273 : vector<64xf32> to vector<1x64xf32>
    %cst_107 = arith.constant 8.000000e+00 : f32
    %275 = vector.broadcast %cst_107 : f32 to vector<1x64xf32>
    %276 = arith.divf %274, %275 : vector<1x64xf32>
    %cst_108 = arith.constant 9.99999974E-6 : f32
    %277 = vector.broadcast %cst_108 : f32 to vector<1x64xf32>
    %278 = arith.addf %276, %277 : vector<1x64xf32>
    %279 = math.rsqrt %278 : vector<1x64xf32>
    %280 = vector.broadcast %279 : vector<1x64xf32> to vector<8x64xf32>
    %281 = arith.mulf %271, %280 : vector<8x64xf32>
    %282 = vector.broadcast %264 : vector<1x64xf32> to vector<8x64xf32>
    %283 = arith.mulf %281, %282 : vector<8x64xf32>
    %284 = vector.broadcast %265 : vector<1x64xf32> to vector<8x64xf32>
    %285 = arith.addf %283, %284 : vector<8x64xf32>
    %cst_109 = arith.constant 0.000000e+00 : f32
    %286 = vector.broadcast %cst_109 : f32 to vector<8x64xf32>
    %287 = arith.cmpf ogt, %285, %286 : vector<8x64xf32>
    %cst_110 = arith.constant 2.000000e-01 : f32
    %288 = vector.broadcast %cst_110 : f32 to vector<8x64xf32>
    %289 = arith.mulf %288, %285 : vector<8x64xf32>
    %290 = arith.select %287, %285, %289 : vector<8x64xi1>, vector<8x64xf32>
    %c0_111 = arith.constant 0 : index
    %c0_112 = arith.constant 0 : index
    %291 = vector.load %arg11[%c0_111, %c0_112] : memref<8x9xi32, #tpu.memory_space<vmem>>, vector<8x9xi32>
    %c0_113 = arith.constant 0 : index
    %c0_114 = arith.constant 0 : index
    %292 = vector.load %arg12[%c0_113, %c0_114] : memref<576x128xbf16, #tpu.memory_space<vmem>>, vector<576x128xbf16>
    %293 = arith.truncf %290 : vector<8x64xf32> to vector<8x64xbf16>
    %294 = tpu.iota {dimensions = array<i32: 1>} : vector<8x8xi32>
    %cst_115 = arith.constant 0.000000e+00 : f32
    %295 = vector.broadcast %cst_115 : f32 to vector<8x128xf32>
    %296 = vector.extract_strided_slice %291 {offsets = [0, 0], sizes = [8, 1], strides = [1, 1]} : vector<8x9xi32> to vector<8x1xi32>
    %297 = vector.broadcast %296 : vector<8x1xi32> to vector<8x8xi32>
    %298 = arith.cmpi eq, %294, %297 : vector<8x8xi32>
    %cst_116 = arith.constant 1.000000e+00 : f32
    %cst_117 = arith.constant 0.000000e+00 : f32
    %299 = vector.broadcast %cst_116 : f32 to vector<8x8xf32>
    %300 = vector.broadcast %cst_117 : f32 to vector<8x8xf32>
    %301 = arith.select %298, %299, %300 : vector<8x8xi1>, vector<8x8xf32>
    %302 = arith.truncf %301 : vector<8x8xf32> to vector<8x8xbf16>
    %cst_118 = arith.constant dense<0.000000e+00> : vector<8x64xf32>
    %303 = tpu.matmul %302, %293, %cst_118 {dimension_numbers = #tpu.dot_dimension_numbers<[1], [0], [0], [1], [0, 0, 1, 1], [], []>} : vector<8x8xbf16>, vector<8x64xbf16>, vector<8x64xf32> -> vector<8x64xf32>
    %304 = arith.truncf %303 : vector<8x64xf32> to vector<8x64xbf16>
    %305 = vector.extract_strided_slice %292 {offsets = [0, 0], sizes = [64, 128], strides = [1, 1]} : vector<576x128xbf16> to vector<64x128xbf16>
    %cst_119 = arith.constant dense<0.000000e+00> : vector<8x128xf32>
    %306 = tpu.matmul %304, %305, %cst_119 {dimension_numbers = #tpu.dot_dimension_numbers<[1], [0], [0], [1], [0, 0, 1, 1], [], []>} : vector<8x64xbf16>, vector<64x128xbf16>, vector<8x128xf32> -> vector<8x128xf32>
    %307 = arith.addf %295, %306 : vector<8x128xf32>
    %308 = vector.extract_strided_slice %291 {offsets = [0, 1], sizes = [8, 1], strides = [1, 1]} : vector<8x9xi32> to vector<8x1xi32>
    %309 = vector.broadcast %308 : vector<8x1xi32> to vector<8x8xi32>
    %310 = arith.cmpi eq, %294, %309 : vector<8x8xi32>
    %cst_120 = arith.constant 1.000000e+00 : f32
    %cst_121 = arith.constant 0.000000e+00 : f32
    %311 = vector.broadcast %cst_120 : f32 to vector<8x8xf32>
    %312 = vector.broadcast %cst_121 : f32 to vector<8x8xf32>
    %313 = arith.select %310, %311, %312 : vector<8x8xi1>, vector<8x8xf32>
    %314 = arith.truncf %313 : vector<8x8xf32> to vector<8x8xbf16>
    %cst_122 = arith.constant dense<0.000000e+00> : vector<8x64xf32>
    %315 = tpu.matmul %314, %293, %cst_122 {dimension_numbers = #tpu.dot_dimension_numbers<[1], [0], [0], [1], [0, 0, 1, 1], [], []>} : vector<8x8xbf16>, vector<8x64xbf16>, vector<8x64xf32> -> vector<8x64xf32>
    %316 = arith.truncf %315 : vector<8x64xf32> to vector<8x64xbf16>
    %317 = vector.extract_strided_slice %292 {offsets = [64, 0], sizes = [64, 128], strides = [1, 1]} : vector<576x128xbf16> to vector<64x128xbf16>
    %cst_123 = arith.constant dense<0.000000e+00> : vector<8x128xf32>
    %318 = tpu.matmul %316, %317, %cst_123 {dimension_numbers = #tpu.dot_dimension_numbers<[1], [0], [0], [1], [0, 0, 1, 1], [], []>} : vector<8x64xbf16>, vector<64x128xbf16>, vector<8x128xf32> -> vector<8x128xf32>
    %319 = arith.addf %307, %318 : vector<8x128xf32>
    %320 = vector.extract_strided_slice %291 {offsets = [0, 2], sizes = [8, 1], strides = [1, 1]} : vector<8x9xi32> to vector<8x1xi32>
    %321 = vector.broadcast %320 : vector<8x1xi32> to vector<8x8xi32>
    %322 = arith.cmpi eq, %294, %321 : vector<8x8xi32>
    %cst_124 = arith.constant 1.000000e+00 : f32
    %cst_125 = arith.constant 0.000000e+00 : f32
    %323 = vector.broadcast %cst_124 : f32 to vector<8x8xf32>
    %324 = vector.broadcast %cst_125 : f32 to vector<8x8xf32>
    %325 = arith.select %322, %323, %324 : vector<8x8xi1>, vector<8x8xf32>
    %326 = arith.truncf %325 : vector<8x8xf32> to vector<8x8xbf16>
    %cst_126 = arith.constant dense<0.000000e+00> : vector<8x64xf32>
    %327 = tpu.matmul %326, %293, %cst_126 {dimension_numbers = #tpu.dot_dimension_numbers<[1], [0], [0], [1], [0, 0, 1, 1], [], []>} : vector<8x8xbf16>, vector<8x64xbf16>, vector<8x64xf32> -> vector<8x64xf32>
    %328 = arith.truncf %327 : vector<8x64xf32> to vector<8x64xbf16>
    %329 = vector.extract_strided_slice %292 {offsets = [128, 0], sizes = [64, 128], strides = [1, 1]} : vector<576x128xbf16> to vector<64x128xbf16>
    %cst_127 = arith.constant dense<0.000000e+00> : vector<8x128xf32>
    %330 = tpu.matmul %328, %329, %cst_127 {dimension_numbers = #tpu.dot_dimension_numbers<[1], [0], [0], [1], [0, 0, 1, 1], [], []>} : vector<8x64xbf16>, vector<64x128xbf16>, vector<8x128xf32> -> vector<8x128xf32>
    %331 = arith.addf %319, %330 : vector<8x128xf32>
    %332 = vector.extract_strided_slice %291 {offsets = [0, 3], sizes = [8, 1], strides = [1, 1]} : vector<8x9xi32> to vector<8x1xi32>
    %333 = vector.broadcast %332 : vector<8x1xi32> to vector<8x8xi32>
    %334 = arith.cmpi eq, %294, %333 : vector<8x8xi32>
    %cst_128 = arith.constant 1.000000e+00 : f32
    %cst_129 = arith.constant 0.000000e+00 : f32
    %335 = vector.broadcast %cst_128 : f32 to vector<8x8xf32>
    %336 = vector.broadcast %cst_129 : f32 to vector<8x8xf32>
    %337 = arith.select %334, %335, %336 : vector<8x8xi1>, vector<8x8xf32>
    %338 = arith.truncf %337 : vector<8x8xf32> to vector<8x8xbf16>
    %cst_130 = arith.constant dense<0.000000e+00> : vector<8x64xf32>
    %339 = tpu.matmul %338, %293, %cst_130 {dimension_numbers = #tpu.dot_dimension_numbers<[1], [0], [0], [1], [0, 0, 1, 1], [], []>} : vector<8x8xbf16>, vector<8x64xbf16>, vector<8x64xf32> -> vector<8x64xf32>
    %340 = arith.truncf %339 : vector<8x64xf32> to vector<8x64xbf16>
    %341 = vector.extract_strided_slice %292 {offsets = [192, 0], sizes = [64, 128], strides = [1, 1]} : vector<576x128xbf16> to vector<64x128xbf16>
    %cst_131 = arith.constant dense<0.000000e+00> : vector<8x128xf32>
    %342 = tpu.matmul %340, %341, %cst_131 {dimension_numbers = #tpu.dot_dimension_numbers<[1], [0], [0], [1], [0, 0, 1, 1], [], []>} : vector<8x64xbf16>, vector<64x128xbf16>, vector<8x128xf32> -> vector<8x128xf32>
    %343 = arith.addf %331, %342 : vector<8x128xf32>
    %344 = vector.extract_strided_slice %291 {offsets = [0, 4], sizes = [8, 1], strides = [1, 1]} : vector<8x9xi32> to vector<8x1xi32>
    %345 = vector.broadcast %344 : vector<8x1xi32> to vector<8x8xi32>
    %346 = arith.cmpi eq, %294, %345 : vector<8x8xi32>
    %cst_132 = arith.constant 1.000000e+00 : f32
    %cst_133 = arith.constant 0.000000e+00 : f32
    %347 = vector.broadcast %cst_132 : f32 to vector<8x8xf32>
    %348 = vector.broadcast %cst_133 : f32 to vector<8x8xf32>
    %349 = arith.select %346, %347, %348 : vector<8x8xi1>, vector<8x8xf32>
    %350 = arith.truncf %349 : vector<8x8xf32> to vector<8x8xbf16>
    %cst_134 = arith.constant dense<0.000000e+00> : vector<8x64xf32>
    %351 = tpu.matmul %350, %293, %cst_134 {dimension_numbers = #tpu.dot_dimension_numbers<[1], [0], [0], [1], [0, 0, 1, 1], [], []>} : vector<8x8xbf16>, vector<8x64xbf16>, vector<8x64xf32> -> vector<8x64xf32>
    %352 = arith.truncf %351 : vector<8x64xf32> to vector<8x64xbf16>
    %353 = vector.extract_strided_slice %292 {offsets = [256, 0], sizes = [64, 128], strides = [1, 1]} : vector<576x128xbf16> to vector<64x128xbf16>
    %cst_135 = arith.constant dense<0.000000e+00> : vector<8x128xf32>
    %354 = tpu.matmul %352, %353, %cst_135 {dimension_numbers = #tpu.dot_dimension_numbers<[1], [0], [0], [1], [0, 0, 1, 1], [], []>} : vector<8x64xbf16>, vector<64x128xbf16>, vector<8x128xf32> -> vector<8x128xf32>
    %355 = arith.addf %343, %354 : vector<8x128xf32>
    %356 = vector.extract_strided_slice %291 {offsets = [0, 5], sizes = [8, 1], strides = [1, 1]} : vector<8x9xi32> to vector<8x1xi32>
    %357 = vector.broadcast %356 : vector<8x1xi32> to vector<8x8xi32>
    %358 = arith.cmpi eq, %294, %357 : vector<8x8xi32>
    %cst_136 = arith.constant 1.000000e+00 : f32
    %cst_137 = arith.constant 0.000000e+00 : f32
    %359 = vector.broadcast %cst_136 : f32 to vector<8x8xf32>
    %360 = vector.broadcast %cst_137 : f32 to vector<8x8xf32>
    %361 = arith.select %358, %359, %360 : vector<8x8xi1>, vector<8x8xf32>
    %362 = arith.truncf %361 : vector<8x8xf32> to vector<8x8xbf16>
    %cst_138 = arith.constant dense<0.000000e+00> : vector<8x64xf32>
    %363 = tpu.matmul %362, %293, %cst_138 {dimension_numbers = #tpu.dot_dimension_numbers<[1], [0], [0], [1], [0, 0, 1, 1], [], []>} : vector<8x8xbf16>, vector<8x64xbf16>, vector<8x64xf32> -> vector<8x64xf32>
    %364 = arith.truncf %363 : vector<8x64xf32> to vector<8x64xbf16>
    %365 = vector.extract_strided_slice %292 {offsets = [320, 0], sizes = [64, 128], strides = [1, 1]} : vector<576x128xbf16> to vector<64x128xbf16>
    %cst_139 = arith.constant dense<0.000000e+00> : vector<8x128xf32>
    %366 = tpu.matmul %364, %365, %cst_139 {dimension_numbers = #tpu.dot_dimension_numbers<[1], [0], [0], [1], [0, 0, 1, 1], [], []>} : vector<8x64xbf16>, vector<64x128xbf16>, vector<8x128xf32> -> vector<8x128xf32>
    %367 = arith.addf %355, %366 : vector<8x128xf32>
    %368 = vector.extract_strided_slice %291 {offsets = [0, 6], sizes = [8, 1], strides = [1, 1]} : vector<8x9xi32> to vector<8x1xi32>
    %369 = vector.broadcast %368 : vector<8x1xi32> to vector<8x8xi32>
    %370 = arith.cmpi eq, %294, %369 : vector<8x8xi32>
    %cst_140 = arith.constant 1.000000e+00 : f32
    %cst_141 = arith.constant 0.000000e+00 : f32
    %371 = vector.broadcast %cst_140 : f32 to vector<8x8xf32>
    %372 = vector.broadcast %cst_141 : f32 to vector<8x8xf32>
    %373 = arith.select %370, %371, %372 : vector<8x8xi1>, vector<8x8xf32>
    %374 = arith.truncf %373 : vector<8x8xf32> to vector<8x8xbf16>
    %cst_142 = arith.constant dense<0.000000e+00> : vector<8x64xf32>
    %375 = tpu.matmul %374, %293, %cst_142 {dimension_numbers = #tpu.dot_dimension_numbers<[1], [0], [0], [1], [0, 0, 1, 1], [], []>} : vector<8x8xbf16>, vector<8x64xbf16>, vector<8x64xf32> -> vector<8x64xf32>
    %376 = arith.truncf %375 : vector<8x64xf32> to vector<8x64xbf16>
    %377 = vector.extract_strided_slice %292 {offsets = [384, 0], sizes = [64, 128], strides = [1, 1]} : vector<576x128xbf16> to vector<64x128xbf16>
    %cst_143 = arith.constant dense<0.000000e+00> : vector<8x128xf32>
    %378 = tpu.matmul %376, %377, %cst_143 {dimension_numbers = #tpu.dot_dimension_numbers<[1], [0], [0], [1], [0, 0, 1, 1], [], []>} : vector<8x64xbf16>, vector<64x128xbf16>, vector<8x128xf32> -> vector<8x128xf32>
    %379 = arith.addf %367, %378 : vector<8x128xf32>
    %380 = vector.extract_strided_slice %291 {offsets = [0, 7], sizes = [8, 1], strides = [1, 1]} : vector<8x9xi32> to vector<8x1xi32>
    %381 = vector.broadcast %380 : vector<8x1xi32> to vector<8x8xi32>
    %382 = arith.cmpi eq, %294, %381 : vector<8x8xi32>
    %cst_144 = arith.constant 1.000000e+00 : f32
    %cst_145 = arith.constant 0.000000e+00 : f32
    %383 = vector.broadcast %cst_144 : f32 to vector<8x8xf32>
    %384 = vector.broadcast %cst_145 : f32 to vector<8x8xf32>
    %385 = arith.select %382, %383, %384 : vector<8x8xi1>, vector<8x8xf32>
    %386 = arith.truncf %385 : vector<8x8xf32> to vector<8x8xbf16>
    %cst_146 = arith.constant dense<0.000000e+00> : vector<8x64xf32>
    %387 = tpu.matmul %386, %293, %cst_146 {dimension_numbers = #tpu.dot_dimension_numbers<[1], [0], [0], [1], [0, 0, 1, 1], [], []>} : vector<8x8xbf16>, vector<8x64xbf16>, vector<8x64xf32> -> vector<8x64xf32>
    %388 = arith.truncf %387 : vector<8x64xf32> to vector<8x64xbf16>
    %389 = vector.extract_strided_slice %292 {offsets = [448, 0], sizes = [64, 128], strides = [1, 1]} : vector<576x128xbf16> to vector<64x128xbf16>
    %cst_147 = arith.constant dense<0.000000e+00> : vector<8x128xf32>
    %390 = tpu.matmul %388, %389, %cst_147 {dimension_numbers = #tpu.dot_dimension_numbers<[1], [0], [0], [1], [0, 0, 1, 1], [], []>} : vector<8x64xbf16>, vector<64x128xbf16>, vector<8x128xf32> -> vector<8x128xf32>
    %391 = arith.addf %379, %390 : vector<8x128xf32>
    %392 = vector.extract_strided_slice %291 {offsets = [0, 8], sizes = [8, 1], strides = [1, 1]} : vector<8x9xi32> to vector<8x1xi32>
    %393 = vector.broadcast %392 : vector<8x1xi32> to vector<8x8xi32>
    %394 = arith.cmpi eq, %294, %393 : vector<8x8xi32>
    %cst_148 = arith.constant 1.000000e+00 : f32
    %cst_149 = arith.constant 0.000000e+00 : f32
    %395 = vector.broadcast %cst_148 : f32 to vector<8x8xf32>
    %396 = vector.broadcast %cst_149 : f32 to vector<8x8xf32>
    %397 = arith.select %394, %395, %396 : vector<8x8xi1>, vector<8x8xf32>
    %398 = arith.truncf %397 : vector<8x8xf32> to vector<8x8xbf16>
    %cst_150 = arith.constant dense<0.000000e+00> : vector<8x64xf32>
    %399 = tpu.matmul %398, %293, %cst_150 {dimension_numbers = #tpu.dot_dimension_numbers<[1], [0], [0], [1], [0, 0, 1, 1], [], []>} : vector<8x8xbf16>, vector<8x64xbf16>, vector<8x64xf32> -> vector<8x64xf32>
    %400 = arith.truncf %399 : vector<8x64xf32> to vector<8x64xbf16>
    %401 = vector.extract_strided_slice %292 {offsets = [512, 0], sizes = [64, 128], strides = [1, 1]} : vector<576x128xbf16> to vector<64x128xbf16>
    %cst_151 = arith.constant dense<0.000000e+00> : vector<8x128xf32>
    %402 = tpu.matmul %400, %401, %cst_151 {dimension_numbers = #tpu.dot_dimension_numbers<[1], [0], [0], [1], [0, 0, 1, 1], [], []>} : vector<8x64xbf16>, vector<64x128xbf16>, vector<8x128xf32> -> vector<8x128xf32>
    %403 = arith.addf %391, %402 : vector<8x128xf32>
    %c0_152 = arith.constant 0 : index
    %c0_153 = arith.constant 0 : index
    %404 = vector.load %arg13[%c0_152, %c0_153] : memref<1x128xf32, #tpu.memory_space<vmem>>, vector<1x128xf32>
    %c0_154 = arith.constant 0 : index
    %c0_155 = arith.constant 0 : index
    %405 = vector.load %arg14[%c0_154, %c0_155] : memref<1x128xf32, #tpu.memory_space<vmem>>, vector<1x128xf32>
    %cst_156 = arith.constant dense<0.000000e+00> : vector<128xf32>
    %406 = vector.multi_reduction <add>, %403, %cst_156 [0] : vector<8x128xf32> to vector<128xf32>
    %407 = vector.shape_cast %406 : vector<128xf32> to vector<1x128xf32>
    %cst_157 = arith.constant 8.000000e+00 : f32
    %408 = vector.broadcast %cst_157 : f32 to vector<1x128xf32>
    %409 = arith.divf %407, %408 : vector<1x128xf32>
    %410 = vector.broadcast %409 : vector<1x128xf32> to vector<8x128xf32>
    %411 = arith.subf %403, %410 : vector<8x128xf32>
    %412 = arith.mulf %411, %411 : vector<8x128xf32>
    %cst_158 = arith.constant dense<0.000000e+00> : vector<128xf32>
    %413 = vector.multi_reduction <add>, %412, %cst_158 [0] : vector<8x128xf32> to vector<128xf32>
    %414 = vector.shape_cast %413 : vector<128xf32> to vector<1x128xf32>
    %cst_159 = arith.constant 8.000000e+00 : f32
    %415 = vector.broadcast %cst_159 : f32 to vector<1x128xf32>
    %416 = arith.divf %414, %415 : vector<1x128xf32>
    %cst_160 = arith.constant 9.99999974E-6 : f32
    %417 = vector.broadcast %cst_160 : f32 to vector<1x128xf32>
    %418 = arith.addf %416, %417 : vector<1x128xf32>
    %419 = math.rsqrt %418 : vector<1x128xf32>
    %420 = vector.broadcast %419 : vector<1x128xf32> to vector<8x128xf32>
    %421 = arith.mulf %411, %420 : vector<8x128xf32>
    %422 = vector.broadcast %404 : vector<1x128xf32> to vector<8x128xf32>
    %423 = arith.mulf %421, %422 : vector<8x128xf32>
    %424 = vector.broadcast %405 : vector<1x128xf32> to vector<8x128xf32>
    %425 = arith.addf %423, %424 : vector<8x128xf32>
    %cst_161 = arith.constant 0.000000e+00 : f32
    %426 = vector.broadcast %cst_161 : f32 to vector<8x128xf32>
    %427 = arith.cmpf ogt, %425, %426 : vector<8x128xf32>
    %cst_162 = arith.constant 2.000000e-01 : f32
    %428 = vector.broadcast %cst_162 : f32 to vector<8x128xf32>
    %429 = arith.mulf %428, %425 : vector<8x128xf32>
    %430 = arith.select %427, %425, %429 : vector<8x128xi1>, vector<8x128xf32>
    %c0_163 = arith.constant 0 : index
    %c0_164 = arith.constant 0 : index
    %431 = vector.load %arg15[%c0_163, %c0_164] : memref<8x9xi32, #tpu.memory_space<vmem>>, vector<8x9xi32>
    %c0_165 = arith.constant 0 : index
    %c0_166 = arith.constant 0 : index
    %432 = vector.load %arg16[%c0_165, %c0_166] : memref<1152x1xbf16, #tpu.memory_space<vmem>>, vector<1152x1xbf16>
    %433 = arith.truncf %430 : vector<8x128xf32> to vector<8x128xbf16>
    %434 = tpu.iota {dimensions = array<i32: 1>} : vector<8x8xi32>
    %cst_167 = arith.constant 0.000000e+00 : f32
    %435 = vector.broadcast %cst_167 : f32 to vector<8x1xf32>
    %436 = vector.extract_strided_slice %431 {offsets = [0, 0], sizes = [8, 1], strides = [1, 1]} : vector<8x9xi32> to vector<8x1xi32>
    %437 = vector.broadcast %436 : vector<8x1xi32> to vector<8x8xi32>
    %438 = arith.cmpi eq, %434, %437 : vector<8x8xi32>
    %cst_168 = arith.constant 1.000000e+00 : f32
    %cst_169 = arith.constant 0.000000e+00 : f32
    %439 = vector.broadcast %cst_168 : f32 to vector<8x8xf32>
    %440 = vector.broadcast %cst_169 : f32 to vector<8x8xf32>
    %441 = arith.select %438, %439, %440 : vector<8x8xi1>, vector<8x8xf32>
    %442 = arith.truncf %441 : vector<8x8xf32> to vector<8x8xbf16>
    %cst_170 = arith.constant dense<0.000000e+00> : vector<8x128xf32>
    %443 = tpu.matmul %442, %433, %cst_170 {dimension_numbers = #tpu.dot_dimension_numbers<[1], [0], [0], [1], [0, 0, 1, 1], [], []>} : vector<8x8xbf16>, vector<8x128xbf16>, vector<8x128xf32> -> vector<8x128xf32>
    %444 = arith.truncf %443 : vector<8x128xf32> to vector<8x128xbf16>
    %445 = vector.extract_strided_slice %432 {offsets = [0, 0], sizes = [128, 1], strides = [1, 1]} : vector<1152x1xbf16> to vector<128x1xbf16>
    %cst_171 = arith.constant dense<0.000000e+00> : vector<8x1xf32>
    %446 = tpu.matmul %444, %445, %cst_171 {dimension_numbers = #tpu.dot_dimension_numbers<[1], [0], [0], [1], [0, 0, 1, 1], [], []>} : vector<8x128xbf16>, vector<128x1xbf16>, vector<8x1xf32> -> vector<8x1xf32>
    %447 = arith.addf %435, %446 : vector<8x1xf32>
    %448 = vector.extract_strided_slice %431 {offsets = [0, 1], sizes = [8, 1], strides = [1, 1]} : vector<8x9xi32> to vector<8x1xi32>
    %449 = vector.broadcast %448 : vector<8x1xi32> to vector<8x8xi32>
    %450 = arith.cmpi eq, %434, %449 : vector<8x8xi32>
    %cst_172 = arith.constant 1.000000e+00 : f32
    %cst_173 = arith.constant 0.000000e+00 : f32
    %451 = vector.broadcast %cst_172 : f32 to vector<8x8xf32>
    %452 = vector.broadcast %cst_173 : f32 to vector<8x8xf32>
    %453 = arith.select %450, %451, %452 : vector<8x8xi1>, vector<8x8xf32>
    %454 = arith.truncf %453 : vector<8x8xf32> to vector<8x8xbf16>
    %cst_174 = arith.constant dense<0.000000e+00> : vector<8x128xf32>
    %455 = tpu.matmul %454, %433, %cst_174 {dimension_numbers = #tpu.dot_dimension_numbers<[1], [0], [0], [1], [0, 0, 1, 1], [], []>} : vector<8x8xbf16>, vector<8x128xbf16>, vector<8x128xf32> -> vector<8x128xf32>
    %456 = arith.truncf %455 : vector<8x128xf32> to vector<8x128xbf16>
    %457 = vector.extract_strided_slice %432 {offsets = [128, 0], sizes = [128, 1], strides = [1, 1]} : vector<1152x1xbf16> to vector<128x1xbf16>
    %cst_175 = arith.constant dense<0.000000e+00> : vector<8x1xf32>
    %458 = tpu.matmul %456, %457, %cst_175 {dimension_numbers = #tpu.dot_dimension_numbers<[1], [0], [0], [1], [0, 0, 1, 1], [], []>} : vector<8x128xbf16>, vector<128x1xbf16>, vector<8x1xf32> -> vector<8x1xf32>
    %459 = arith.addf %447, %458 : vector<8x1xf32>
    %460 = vector.extract_strided_slice %431 {offsets = [0, 2], sizes = [8, 1], strides = [1, 1]} : vector<8x9xi32> to vector<8x1xi32>
    %461 = vector.broadcast %460 : vector<8x1xi32> to vector<8x8xi32>
    %462 = arith.cmpi eq, %434, %461 : vector<8x8xi32>
    %cst_176 = arith.constant 1.000000e+00 : f32
    %cst_177 = arith.constant 0.000000e+00 : f32
    %463 = vector.broadcast %cst_176 : f32 to vector<8x8xf32>
    %464 = vector.broadcast %cst_177 : f32 to vector<8x8xf32>
    %465 = arith.select %462, %463, %464 : vector<8x8xi1>, vector<8x8xf32>
    %466 = arith.truncf %465 : vector<8x8xf32> to vector<8x8xbf16>
    %cst_178 = arith.constant dense<0.000000e+00> : vector<8x128xf32>
    %467 = tpu.matmul %466, %433, %cst_178 {dimension_numbers = #tpu.dot_dimension_numbers<[1], [0], [0], [1], [0, 0, 1, 1], [], []>} : vector<8x8xbf16>, vector<8x128xbf16>, vector<8x128xf32> -> vector<8x128xf32>
    %468 = arith.truncf %467 : vector<8x128xf32> to vector<8x128xbf16>
    %469 = vector.extract_strided_slice %432 {offsets = [256, 0], sizes = [128, 1], strides = [1, 1]} : vector<1152x1xbf16> to vector<128x1xbf16>
    %cst_179 = arith.constant dense<0.000000e+00> : vector<8x1xf32>
    %470 = tpu.matmul %468, %469, %cst_179 {dimension_numbers = #tpu.dot_dimension_numbers<[1], [0], [0], [1], [0, 0, 1, 1], [], []>} : vector<8x128xbf16>, vector<128x1xbf16>, vector<8x1xf32> -> vector<8x1xf32>
    %471 = arith.addf %459, %470 : vector<8x1xf32>
    %472 = vector.extract_strided_slice %431 {offsets = [0, 3], sizes = [8, 1], strides = [1, 1]} : vector<8x9xi32> to vector<8x1xi32>
    %473 = vector.broadcast %472 : vector<8x1xi32> to vector<8x8xi32>
    %474 = arith.cmpi eq, %434, %473 : vector<8x8xi32>
    %cst_180 = arith.constant 1.000000e+00 : f32
    %cst_181 = arith.constant 0.000000e+00 : f32
    %475 = vector.broadcast %cst_180 : f32 to vector<8x8xf32>
    %476 = vector.broadcast %cst_181 : f32 to vector<8x8xf32>
    %477 = arith.select %474, %475, %476 : vector<8x8xi1>, vector<8x8xf32>
    %478 = arith.truncf %477 : vector<8x8xf32> to vector<8x8xbf16>
    %cst_182 = arith.constant dense<0.000000e+00> : vector<8x128xf32>
    %479 = tpu.matmul %478, %433, %cst_182 {dimension_numbers = #tpu.dot_dimension_numbers<[1], [0], [0], [1], [0, 0, 1, 1], [], []>} : vector<8x8xbf16>, vector<8x128xbf16>, vector<8x128xf32> -> vector<8x128xf32>
    %480 = arith.truncf %479 : vector<8x128xf32> to vector<8x128xbf16>
    %481 = vector.extract_strided_slice %432 {offsets = [384, 0], sizes = [128, 1], strides = [1, 1]} : vector<1152x1xbf16> to vector<128x1xbf16>
    %cst_183 = arith.constant dense<0.000000e+00> : vector<8x1xf32>
    %482 = tpu.matmul %480, %481, %cst_183 {dimension_numbers = #tpu.dot_dimension_numbers<[1], [0], [0], [1], [0, 0, 1, 1], [], []>} : vector<8x128xbf16>, vector<128x1xbf16>, vector<8x1xf32> -> vector<8x1xf32>
    %483 = arith.addf %471, %482 : vector<8x1xf32>
    %484 = vector.extract_strided_slice %431 {offsets = [0, 4], sizes = [8, 1], strides = [1, 1]} : vector<8x9xi32> to vector<8x1xi32>
    %485 = vector.broadcast %484 : vector<8x1xi32> to vector<8x8xi32>
    %486 = arith.cmpi eq, %434, %485 : vector<8x8xi32>
    %cst_184 = arith.constant 1.000000e+00 : f32
    %cst_185 = arith.constant 0.000000e+00 : f32
    %487 = vector.broadcast %cst_184 : f32 to vector<8x8xf32>
    %488 = vector.broadcast %cst_185 : f32 to vector<8x8xf32>
    %489 = arith.select %486, %487, %488 : vector<8x8xi1>, vector<8x8xf32>
    %490 = arith.truncf %489 : vector<8x8xf32> to vector<8x8xbf16>
    %cst_186 = arith.constant dense<0.000000e+00> : vector<8x128xf32>
    %491 = tpu.matmul %490, %433, %cst_186 {dimension_numbers = #tpu.dot_dimension_numbers<[1], [0], [0], [1], [0, 0, 1, 1], [], []>} : vector<8x8xbf16>, vector<8x128xbf16>, vector<8x128xf32> -> vector<8x128xf32>
    %492 = arith.truncf %491 : vector<8x128xf32> to vector<8x128xbf16>
    %493 = vector.extract_strided_slice %432 {offsets = [512, 0], sizes = [128, 1], strides = [1, 1]} : vector<1152x1xbf16> to vector<128x1xbf16>
    %cst_187 = arith.constant dense<0.000000e+00> : vector<8x1xf32>
    %494 = tpu.matmul %492, %493, %cst_187 {dimension_numbers = #tpu.dot_dimension_numbers<[1], [0], [0], [1], [0, 0, 1, 1], [], []>} : vector<8x128xbf16>, vector<128x1xbf16>, vector<8x1xf32> -> vector<8x1xf32>
    %495 = arith.addf %483, %494 : vector<8x1xf32>
    %496 = vector.extract_strided_slice %431 {offsets = [0, 5], sizes = [8, 1], strides = [1, 1]} : vector<8x9xi32> to vector<8x1xi32>
    %497 = vector.broadcast %496 : vector<8x1xi32> to vector<8x8xi32>
    %498 = arith.cmpi eq, %434, %497 : vector<8x8xi32>
    %cst_188 = arith.constant 1.000000e+00 : f32
    %cst_189 = arith.constant 0.000000e+00 : f32
    %499 = vector.broadcast %cst_188 : f32 to vector<8x8xf32>
    %500 = vector.broadcast %cst_189 : f32 to vector<8x8xf32>
    %501 = arith.select %498, %499, %500 : vector<8x8xi1>, vector<8x8xf32>
    %502 = arith.truncf %501 : vector<8x8xf32> to vector<8x8xbf16>
    %cst_190 = arith.constant dense<0.000000e+00> : vector<8x128xf32>
    %503 = tpu.matmul %502, %433, %cst_190 {dimension_numbers = #tpu.dot_dimension_numbers<[1], [0], [0], [1], [0, 0, 1, 1], [], []>} : vector<8x8xbf16>, vector<8x128xbf16>, vector<8x128xf32> -> vector<8x128xf32>
    %504 = arith.truncf %503 : vector<8x128xf32> to vector<8x128xbf16>
    %505 = vector.extract_strided_slice %432 {offsets = [640, 0], sizes = [128, 1], strides = [1, 1]} : vector<1152x1xbf16> to vector<128x1xbf16>
    %cst_191 = arith.constant dense<0.000000e+00> : vector<8x1xf32>
    %506 = tpu.matmul %504, %505, %cst_191 {dimension_numbers = #tpu.dot_dimension_numbers<[1], [0], [0], [1], [0, 0, 1, 1], [], []>} : vector<8x128xbf16>, vector<128x1xbf16>, vector<8x1xf32> -> vector<8x1xf32>
    %507 = arith.addf %495, %506 : vector<8x1xf32>
    %508 = vector.extract_strided_slice %431 {offsets = [0, 6], sizes = [8, 1], strides = [1, 1]} : vector<8x9xi32> to vector<8x1xi32>
    %509 = vector.broadcast %508 : vector<8x1xi32> to vector<8x8xi32>
    %510 = arith.cmpi eq, %434, %509 : vector<8x8xi32>
    %cst_192 = arith.constant 1.000000e+00 : f32
    %cst_193 = arith.constant 0.000000e+00 : f32
    %511 = vector.broadcast %cst_192 : f32 to vector<8x8xf32>
    %512 = vector.broadcast %cst_193 : f32 to vector<8x8xf32>
    %513 = arith.select %510, %511, %512 : vector<8x8xi1>, vector<8x8xf32>
    %514 = arith.truncf %513 : vector<8x8xf32> to vector<8x8xbf16>
    %cst_194 = arith.constant dense<0.000000e+00> : vector<8x128xf32>
    %515 = tpu.matmul %514, %433, %cst_194 {dimension_numbers = #tpu.dot_dimension_numbers<[1], [0], [0], [1], [0, 0, 1, 1], [], []>} : vector<8x8xbf16>, vector<8x128xbf16>, vector<8x128xf32> -> vector<8x128xf32>
    %516 = arith.truncf %515 : vector<8x128xf32> to vector<8x128xbf16>
    %517 = vector.extract_strided_slice %432 {offsets = [768, 0], sizes = [128, 1], strides = [1, 1]} : vector<1152x1xbf16> to vector<128x1xbf16>
    %cst_195 = arith.constant dense<0.000000e+00> : vector<8x1xf32>
    %518 = tpu.matmul %516, %517, %cst_195 {dimension_numbers = #tpu.dot_dimension_numbers<[1], [0], [0], [1], [0, 0, 1, 1], [], []>} : vector<8x128xbf16>, vector<128x1xbf16>, vector<8x1xf32> -> vector<8x1xf32>
    %519 = arith.addf %507, %518 : vector<8x1xf32>
    %520 = vector.extract_strided_slice %431 {offsets = [0, 7], sizes = [8, 1], strides = [1, 1]} : vector<8x9xi32> to vector<8x1xi32>
    %521 = vector.broadcast %520 : vector<8x1xi32> to vector<8x8xi32>
    %522 = arith.cmpi eq, %434, %521 : vector<8x8xi32>
    %cst_196 = arith.constant 1.000000e+00 : f32
    %cst_197 = arith.constant 0.000000e+00 : f32
    %523 = vector.broadcast %cst_196 : f32 to vector<8x8xf32>
    %524 = vector.broadcast %cst_197 : f32 to vector<8x8xf32>
    %525 = arith.select %522, %523, %524 : vector<8x8xi1>, vector<8x8xf32>
    %526 = arith.truncf %525 : vector<8x8xf32> to vector<8x8xbf16>
    %cst_198 = arith.constant dense<0.000000e+00> : vector<8x128xf32>
    %527 = tpu.matmul %526, %433, %cst_198 {dimension_numbers = #tpu.dot_dimension_numbers<[1], [0], [0], [1], [0, 0, 1, 1], [], []>} : vector<8x8xbf16>, vector<8x128xbf16>, vector<8x128xf32> -> vector<8x128xf32>
    %528 = arith.truncf %527 : vector<8x128xf32> to vector<8x128xbf16>
    %529 = vector.extract_strided_slice %432 {offsets = [896, 0], sizes = [128, 1], strides = [1, 1]} : vector<1152x1xbf16> to vector<128x1xbf16>
    %cst_199 = arith.constant dense<0.000000e+00> : vector<8x1xf32>
    %530 = tpu.matmul %528, %529, %cst_199 {dimension_numbers = #tpu.dot_dimension_numbers<[1], [0], [0], [1], [0, 0, 1, 1], [], []>} : vector<8x128xbf16>, vector<128x1xbf16>, vector<8x1xf32> -> vector<8x1xf32>
    %531 = arith.addf %519, %530 : vector<8x1xf32>
    %532 = vector.extract_strided_slice %431 {offsets = [0, 8], sizes = [8, 1], strides = [1, 1]} : vector<8x9xi32> to vector<8x1xi32>
    %533 = vector.broadcast %532 : vector<8x1xi32> to vector<8x8xi32>
    %534 = arith.cmpi eq, %434, %533 : vector<8x8xi32>
    %cst_200 = arith.constant 1.000000e+00 : f32
    %cst_201 = arith.constant 0.000000e+00 : f32
    %535 = vector.broadcast %cst_200 : f32 to vector<8x8xf32>
    %536 = vector.broadcast %cst_201 : f32 to vector<8x8xf32>
    %537 = arith.select %534, %535, %536 : vector<8x8xi1>, vector<8x8xf32>
    %538 = arith.truncf %537 : vector<8x8xf32> to vector<8x8xbf16>
    %cst_202 = arith.constant dense<0.000000e+00> : vector<8x128xf32>
    %539 = tpu.matmul %538, %433, %cst_202 {dimension_numbers = #tpu.dot_dimension_numbers<[1], [0], [0], [1], [0, 0, 1, 1], [], []>} : vector<8x8xbf16>, vector<8x128xbf16>, vector<8x128xf32> -> vector<8x128xf32>
    %540 = arith.truncf %539 : vector<8x128xf32> to vector<8x128xbf16>
    %541 = vector.extract_strided_slice %432 {offsets = [1024, 0], sizes = [128, 1], strides = [1, 1]} : vector<1152x1xbf16> to vector<128x1xbf16>
    %cst_203 = arith.constant dense<0.000000e+00> : vector<8x1xf32>
    %542 = tpu.matmul %540, %541, %cst_203 {dimension_numbers = #tpu.dot_dimension_numbers<[1], [0], [0], [1], [0, 0, 1, 1], [], []>} : vector<8x128xbf16>, vector<128x1xbf16>, vector<8x1xf32> -> vector<8x1xf32>
    %543 = arith.addf %531, %542 : vector<8x1xf32>
    %c0_204 = arith.constant 0 : index
    %c0_205 = arith.constant 0 : index
    %544 = vector.load %arg17[%c0_204, %c0_205] : memref<1x1xf32, #tpu.memory_space<vmem>>, vector<1x1xf32>
    %545 = vector.broadcast %544 : vector<1x1xf32> to vector<8x1xf32>
    %546 = arith.addf %543, %545 : vector<8x1xf32>
    %c0_206 = arith.constant 0 : index
    %c0_207 = arith.constant 0 : index
    %547 = vector.load %arg18[%c0_206, %c0_207] : memref<8x1xf32, #tpu.memory_space<vmem>>, vector<8x1xf32>
    tpu.vector_store %arg18[%c0_206, %c0_207], %546 {strides = array<i32>} : memref<8x1xf32, #tpu.memory_space<vmem>>, vector<8x1xf32>,
    return
  }
}

</mosaic_0001>

<llo_original>
// kernel: patch_discriminator_forward.1
$region0: #{patch_discriminator_forward.1}
  #allocation0 [shape = 'u32[]', space=smem, size = 0x4, offset = 0x4, fixed_abs, tag = 'smem constant byte address 0x4 - core index']
  #allocation1 [shape = 'u32[144,128]{1,0:T(1,128)}', space=vmem, size = 0x12000, scoped, tag = 'internal scratch']
  #allocation2 [shape = 'f32[1,1]{1,0:T(1,128)S(1)}', space=vmem, size = 0x200, scoped, tag = 'scoped memory for patch_discriminator_forward.1']
  %s0 = inlined_call_operand.vmem [shape: bf16[128,36], index: 0, kind: input, shape index: {}]
  %s1 = inlined_call_operand.vmem [shape: bf16[36,16], index: 1, kind: input, shape index: {}]
  %s2 = inlined_call_operand.vmem [shape: f32[1,16], index: 2, kind: input, shape index: {}]
  %s3 = inlined_call_operand.vmem [shape: s32[32,9], index: 3, kind: input, shape index: {}]
  %s4 = inlined_call_operand.vmem [shape: bf16[144,32], index: 4, kind: input, shape index: {}]
  %s5 = inlined_call_operand.vmem [shape: f32[1,32], index: 5, kind: input, shape index: {}]
  %s6 = inlined_call_operand.vmem [shape: f32[1,32], index: 6, kind: input, shape index: {}]
  %s7 = inlined_call_operand.vmem [shape: s32[8,9], index: 7, kind: input, shape index: {}]
  %s8 = inlined_call_operand.vmem [shape: bf16[288,64], index: 8, kind: input, shape index: {}]
  %s9 = inlined_call_operand.vmem [shape: f32[1,64], index: 9, kind: input, shape index: {}]
  %s10 = inlined_call_operand.vmem [shape: f32[1,64], index: 10, kind: input, shape index: {}]
  %s11 = inlined_call_operand.vmem [shape: s32[8,9], index: 11, kind: input, shape index: {}, may-alias: {11,15}]
  %s12 = inlined_call_operand.vmem [shape: bf16[576,128], index: 12, kind: input, shape index: {}]
  %s13 = inlined_call_operand.vmem [shape: f32[1,128], index: 13, kind: input, shape index: {}]
  %s14 = inlined_call_operand.vmem [shape: f32[1,128], index: 14, kind: input, shape index: {}]
  %s15 = inlined_call_operand.vmem [shape: s32[8,9], index: 15, kind: input, shape index: {}, may-alias: {11,15}]
  %s16 = inlined_call_operand.vmem [shape: bf16[1152,1], index: 16, kind: input, shape index: {}]
  %s17 = inlined_call_operand.<no memory space> [shape: f32[1,1], index: 17, kind: input, shape index: {}]
  %s18 = inlined_call_operand.vmem [shape: f32[8,1], index: 18, kind: output, shape index: {}]
  %s19 = sld [smem:[#allocation0]]
  $region82: #{patch_discriminator_forward.1} parent=0
    _
  %s21 = ssub.s32 1, %s19
  %s22 = scalar_select 0, %s21, %s19
  %v23 = vstv %s17
  %24 = vst [vmem:[#allocation2] sm:$0x1] %v23
  // Predicated region
  $region2: #{patch_discriminator_forward.1} parent=0 // pred_check
    _
  $region3: #{patch_discriminator_forward.1} parent=0 // pred_check_branch
    %26 = sbr.rel (0) target = $region5
  $region4: #{patch_discriminator_forward.1} parent=0 // pred_region
    _
  $region5: #{patch_discriminator_forward.1} parent=0 // pred_fallthru
    _
  // Predicated region
  $region6: #{patch_discriminator_forward.1} parent=0 // pred_check
    _
  $region7: #{patch_discriminator_forward.1} parent=0 // pred_check_branch
    %28 = sbr.rel (0) target = $region9
  $region8: #{patch_discriminator_forward.1} parent=0 // pred_region
    _
  $region9: #{patch_discriminator_forward.1} parent=0 // pred_fallthru
    _
  // Predicated region
  $region10: #{patch_discriminator_forward.1} parent=0 // pred_check
    _
  $region11: #{patch_discriminator_forward.1} parent=0 // pred_check_branch
    %30 = sbr.rel (0) target = $region13
  $region12: #{patch_discriminator_forward.1} parent=0 // pred_region
    _
  $region13: #{patch_discriminator_forward.1} parent=0 // pred_fallthru
    _
  // Predicated region
  $region14: #{patch_discriminator_forward.1} parent=0 // pred_check
    _
  $region15: #{patch_discriminator_forward.1} parent=0 // pred_check_branch
    %32 = sbr.rel (0) target = $region17
  $region16: #{patch_discriminator_forward.1} parent=0 // pred_region
    _
  $region17: #{patch_discriminator_forward.1} parent=0 // pred_fallthru
    _
  // Predicated region
  $region18: #{patch_discriminator_forward.1} parent=0 // pred_check
    _
  $region19: #{patch_discriminator_forward.1} parent=0 // pred_check_branch
    %34 = sbr.rel (0) target = $region21
  $region20: #{patch_discriminator_forward.1} parent=0 // pred_region
    _
  $region21: #{patch_discriminator_forward.1} parent=0 // pred_fallthru
    _
  // Predicated region
  $region22: #{patch_discriminator_forward.1} parent=0 // pred_check
    _
  $region23: #{patch_discriminator_forward.1} parent=0 // pred_check_branch
    %36 = sbr.rel (0) target = $region25
  $region24: #{patch_discriminator_forward.1} parent=0 // pred_region
    _
  $region25: #{patch_discriminator_forward.1} parent=0 // pred_fallthru
    _
  // Predicated region
  $region26: #{patch_discriminator_forward.1} parent=0 // pred_check
    _
  $region27: #{patch_discriminator_forward.1} parent=0 // pred_check_branch
    %38 = sbr.rel (0) target = $region29
  $region28: #{patch_discriminator_forward.1} parent=0 // pred_region
    _
  $region29: #{patch_discriminator_forward.1} parent=0 // pred_fallthru
    _
  // Predicated region
  $region30: #{patch_discriminator_forward.1} parent=0 // pred_check
    _
  $region31: #{patch_discriminator_forward.1} parent=0 // pred_check_branch
    %40 = sbr.rel (0) target = $region33
  $region32: #{patch_discriminator_forward.1} parent=0 // pred_region
    _
  $region33: #{patch_discriminator_forward.1} parent=0 // pred_fallthru
    _
  // Predicated region
  $region34: #{patch_discriminator_forward.1} parent=0 // pred_check
    _
  $region35: #{patch_discriminator_forward.1} parent=0 // pred_check_branch
    %42 = sbr.rel (0) target = $region37
  $region36: #{patch_discriminator_forward.1} parent=0 // pred_region
    _
  $region37: #{patch_discriminator_forward.1} parent=0 // pred_fallthru
    _
  // Predicated region
  $region38: #{patch_discriminator_forward.1} parent=0 // pred_check
    _
  $region39: #{patch_discriminator_forward.1} parent=0 // pred_check_branch
    %44 = sbr.rel (0) target = $region41
  $region40: #{patch_discriminator_forward.1} parent=0 // pred_region
    _
  $region41: #{patch_discriminator_forward.1} parent=0 // pred_fallthru
    _
  // Predicated region
  $region42: #{patch_discriminator_forward.1} parent=0 // pred_check
    _
  $region43: #{patch_discriminator_forward.1} parent=0 // pred_check_branch
    %46 = sbr.rel (0) target = $region45
  $region44: #{patch_discriminator_forward.1} parent=0 // pred_region
    _
  $region45: #{patch_discriminator_forward.1} parent=0 // pred_fallthru
    _
  // Predicated region
  $region46: #{patch_discriminator_forward.1} parent=0 // pred_check
    _
  $region47: #{patch_discriminator_forward.1} parent=0 // pred_check_branch
    %48 = sbr.rel (0) target = $region49
  $region48: #{patch_discriminator_forward.1} parent=0 // pred_region
    _
  $region49: #{patch_discriminator_forward.1} parent=0 // pred_fallthru
    _
  // Predicated region
  $region50: #{patch_discriminator_forward.1} parent=0 // pred_check
    _
  $region51: #{patch_discriminator_forward.1} parent=0 // pred_check_branch
    %50 = sbr.rel (0) target = $region53
  $region52: #{patch_discriminator_forward.1} parent=0 // pred_region
    _
  $region53: #{patch_discriminator_forward.1} parent=0 // pred_fallthru
    _
  // Predicated region
  $region54: #{patch_discriminator_forward.1} parent=0 // pred_check
    _
  $region55: #{patch_discriminator_forward.1} parent=0 // pred_check_branch
    %52 = sbr.rel (0) target = $region57
  $region56: #{patch_discriminator_forward.1} parent=0 // pred_region
    _
  $region57: #{patch_discriminator_forward.1} parent=0 // pred_fallthru
    _
  // Predicated region
  $region58: #{patch_discriminator_forward.1} parent=0 // pred_check
    _
  $region59: #{patch_discriminator_forward.1} parent=0 // pred_check_branch
    %54 = sbr.rel (0) target = $region61
  $region60: #{patch_discriminator_forward.1} parent=0 // pred_region
    _
  $region61: #{patch_discriminator_forward.1} parent=0 // pred_fallthru
    _
  // Predicated region
  $region62: #{patch_discriminator_forward.1} parent=0 // pred_check
    _
  $region63: #{patch_discriminator_forward.1} parent=0 // pred_check_branch
    %56 = sbr.rel (0) target = $region65
  $region64: #{patch_discriminator_forward.1} parent=0 // pred_region
    _
  $region65: #{patch_discriminator_forward.1} parent=0 // pred_fallthru
    _
  // Predicated region
  $region66: #{patch_discriminator_forward.1} parent=0 // pred_check
    _
  $region67: #{patch_discriminator_forward.1} parent=0 // pred_check_branch
    %58 = sbr.rel (0) target = $region69
  $region68: #{patch_discriminator_forward.1} parent=0 // pred_region
    _
  $region69: #{patch_discriminator_forward.1} parent=0 // pred_fallthru
    _
  // Predicated region
  $region70: #{patch_discriminator_forward.1} parent=0 // pred_check
    _
  $region71: #{patch_discriminator_forward.1} parent=0 // pred_check_branch
    %60 = sbr.rel (0) target = $region73
  $region72: #{patch_discriminator_forward.1} parent=0 // pred_region
    _
  $region73: #{patch_discriminator_forward.1} parent=0 // pred_fallthru
    _
  %v62 = vld [vmem:[%s0] sm:$0xf]
  %v63 = vld [vmem:[%s0 + $0x4] sm:$0xf]
  %v64 = vld [vmem:[%s0 + $0x8] sm:$0xf]
  %v65 = vld [vmem:[%s0 + $0xc] sm:$0xf]
  %v66 = vld [vmem:[%s0 + $0x10] sm:$0xf]
  %v67 = vld [vmem:[%s0 + $0x14] sm:$0xf]
  %v68 = vld [vmem:[%s0 + $0x18] sm:$0xf]
  %v69 = vld [vmem:[%s0 + $0x1c] sm:$0xf]
  %v70 = vld [vmem:[%s0 + $0x20] sm:$0xf]
  %v71 = vld [vmem:[%s0 + $0x24] sm:$0xf]
  %v72 = vld [vmem:[%s0 + $0x28] sm:$0xf]
  %v73 = vld [vmem:[%s0 + $0x2c] sm:$0xf]
  %v74 = vld [vmem:[%s0 + $0x30] sm:$0xf]
  %v75 = vld [vmem:[%s0 + $0x34] sm:$0xf]
  %v76 = vld [vmem:[%s0 + $0x38] sm:$0xf]
  %v77 = vld [vmem:[%s0 + $0x3c] sm:$0xf]
  %v78 = vld [vmem:[%s1] sm:$0xf]
  %v79 = vld [vmem:[%s1 + $0x4] sm:$0xf]
  %v80 = vld [vmem:[%s1 + $0x8] sm:$0xf]
  %v81 = vld [vmem:[%s1 + $0xc] sm:$0xf]
  %v82 = vld [vmem:[%s1 + $0x10] sm:$0x3]
  %v83 = vld [vmem:[%s2] sm:$0x1]
  %v85 = vlaneseq
  %v86 = vshrl.u32 %v85, 7
  %v87 = vsub.s32 0, %v86
  %v88 = vrot.slane %v83, %v87
  %v106 = vunpack.c.l.b16 %v62
  %v107 = vunpack.c.l.b16 %v63
  %v108 = vunpack.c.l.b16 %v64
  %v109 = vunpack.c.l.b16 %v65
  %v110 = vunpack.c.l.b16 %v66
  %v111 = vunpack.c.l.b16 %v67
  %v112 = vunpack.c.l.b16 %v68
  %v113 = vunpack.c.l.b16 %v69
  %v114 = vunpack.c.l.b16 %v70
  %v115 = vunpack.c.l.b16 %v71
  %v116 = vunpack.c.l.b16 %v72
  %v117 = vunpack.c.l.b16 %v73
  %v118 = vunpack.c.l.b16 %v74
  %v119 = vunpack.c.l.b16 %v75
  %v120 = vunpack.c.l.b16 %v76
  %v121 = vunpack.c.l.b16 %v77
  %v122 = vpack.c.b16 %v107, %v106
  %v123 = vpack.c.b16 %v109, %v108
  %v124 = vpack.c.b16 %v111, %v110
  %v125 = vpack.c.b16 %v113, %v112
  %v126 = vpack.c.b16 %v115, %v114
  %v127 = vpack.c.b16 %v117, %v116
  %v128 = vpack.c.b16 %v119, %v118
  %v129 = vpack.c.b16 %v121, %v120
  %v135 = vunpack.c.l.b16 %v78
  %v136 = vunpack.c.l.b16 %v79
  %v137 = vunpack.c.l.b16 %v80
  %v138 = vunpack.c.l.b16 %v81
  %v139 = vunpack.c.l.b16 %v82
  %v140 = vpack.c.b16 %v136, %v135
  %v141 = vpack.c.b16 %v138, %v137
  %v142 = vpack.c.b16 %v139, %v139
  %vm145 = vcmask 293888
  %v147 = vsel %vm145, %v122, 0
  %v150 = vsel %vm145, %v123, 0
  %v153 = vsel %vm145, %v124, 0
  %v156 = vsel %vm145, %v125, 0
  %v159 = vsel %vm145, %v126, 0
  %v162 = vsel %vm145, %v127, 0
  %v165 = vsel %vm145, %v128, 0
  %v168 = vsel %vm145, %v129, 0
  %vm170 = vcmask 1041408
  %v172 = vsel %vm170, %v142, 0
  %174 = vmatprep.subr.bf16.mxu0 0
  %175 = vmatpush1.bf16.msra.mxu0 %v140
  %176 = vmatprep.subr.bf16.mxu0 0
  %177 = vmatpush1.bf16.msra.mxu0 %v141
  %178 = vmatprep.subr.bf16.mxu0 0
  %179 = vmatpush1.bf16.msra.mxu0 %v172
  %180 = vmatprep.subr.bf16.mxu0 0
  %181 = vmatpush1.bf16.msra.mxu0 0
  %182 = vmatprep.subr.bf16.mxu0 0
  %183 = vmatpush1.bf16.msra.mxu0 0
  %184 = vmatprep.subr.bf16.mxu0 0
  %185 = vmatpush1.bf16.msra.mxu0 0
  %186 = vmatprep.subr.bf16.mxu0 0
  %187 = vmatpush1.bf16.msra.mxu0 0
  %188 = vmatprep.subr.bf16.mxu0 0
  %189 = vmatpush1.bf16.msra.mxu0 0
  %190 = vmatprep.subr.bf16.mxu0 0
  %191 = vmatpush1.bf16.msra.mxu0 0
  %192 = vmatprep.subr.bf16.mxu0 0
  %193 = vmatpush1.bf16.msra.mxu0 0
  %194 = vmatprep.subr.bf16.mxu0 0
  %195 = vmatpush1.bf16.msra.mxu0 0
  %196 = vmatprep.subr.bf16.mxu0 0
  %197 = vmatpush1.bf16.msra.mxu0 0
  %198 = vmatprep.subr.bf16.mxu0 0
  %199 = vmatpush1.bf16.msra.mxu0 0
  %200 = vmatprep.subr.bf16.mxu0 0
  %201 = vmatpush1.bf16.msra.mxu0 0
  %202 = vmatprep.subr.bf16.mxu0 0
  %203 = vmatpush1.bf16.msra.mxu0 0
  %204 = vmatprep.subr.bf16.mxu0 0
  %205 = vmatpush1.bf16.msra.mxu0 0
  %206 = vmatprep.mubr.bf16.mxu0 0
  %207 = vmatmul.mubr.bf16.gmra.mrb[0].mxu0 %v147
  %v208 = vpop.f32.mrb[0].mxu0
  %v209 = vadd.f32 %v88, %v208
  %v210 = vpop.f32.mrb[0].mxu0
  %v211 = vpop.f32.mrb[0].mxu0
  %v212 = vadd.f32 %v88, %v211
  %v213 = vpop.f32.mrb[0].mxu0
  %214 = vmatprep.mubr.bf16.mxu0 0
  %215 = vmatmul.mubr.bf16.gmra.mrb[0].mxu0 %v150
  %v216 = vpop.f32.mrb[0].mxu0
  %v217 = vadd.f32 %v88, %v216
  %v218 = vpop.f32.mrb[0].mxu0
  %v219 = vpop.f32.mrb[0].mxu0
  %v220 = vadd.f32 %v88, %v219
  %v221 = vpop.f32.mrb[0].mxu0
  %222 = vmatprep.mubr.bf16.mxu0 0
  %223 = vmatmul.mubr.bf16.gmra.mrb[0].mxu0 %v153
  %v224 = vpop.f32.mrb[0].mxu0
  %v225 = vadd.f32 %v88, %v224
  %v226 = vpop.f32.mrb[0].mxu0
  %v227 = vpop.f32.mrb[0].mxu0
  %v228 = vadd.f32 %v88, %v227
  %v229 = vpop.f32.mrb[0].mxu0
  %230 = vmatprep.mubr.bf16.mxu0 0
  %231 = vmatmul.mubr.bf16.gmra.mrb[0].mxu0 %v156
  %v232 = vpop.f32.mrb[0].mxu0
  %v233 = vadd.f32 %v88, %v232
  %v234 = vpop.f32.mrb[0].mxu0
  %v235 = vpop.f32.mrb[0].mxu0
  %v236 = vadd.f32 %v88, %v235
  %v237 = vpop.f32.mrb[0].mxu0
  %238 = vmatprep.mubr.bf16.mxu0 0
  %239 = vmatmul.mubr.bf16.gmra.mrb[0].mxu0 %v159
  %v240 = vpop.f32.mrb[0].mxu0
  %v241 = vadd.f32 %v88, %v240
  %v242 = vpop.f32.mrb[0].mxu0
  %v243 = vpop.f32.mrb[0].mxu0
  %v244 = vadd.f32 %v88, %v243
  %v245 = vpop.f32.mrb[0].mxu0
  %246 = vmatprep.mubr.bf16.mxu0 0
  %247 = vmatmul.mubr.bf16.gmra.mrb[0].mxu0 %v162
  %v248 = vpop.f32.mrb[0].mxu0
  %v249 = vadd.f32 %v88, %v248
  %v250 = vpop.f32.mrb[0].mxu0
  %v251 = vpop.f32.mrb[0].mxu0
  %v252 = vadd.f32 %v88, %v251
  %v253 = vpop.f32.mrb[0].mxu0
  %254 = vmatprep.mubr.bf16.mxu0 0
  %255 = vmatmul.mubr.bf16.gmra.mrb[0].mxu0 %v165
  %v256 = vpop.f32.mrb[0].mxu0
  %v257 = vadd.f32 %v88, %v256
  %v258 = vpop.f32.mrb[0].mxu0
  %v259 = vpop.f32.mrb[0].mxu0
  %v260 = vadd.f32 %v88, %v259
  %v261 = vpop.f32.mrb[0].mxu0
  %262 = vmatprep.mubr.bf16.mxu0 0
  %263 = vmatmul.mubr.bf16.gmra.mrb[0].mxu0 %v168
  %v264 = vpop.f32.mrb[0].mxu0
  %v265 = vadd.f32 %v88, %v264
  %v266 = vpop.f32.mrb[0].mxu0
  %v267 = vpop.f32.mrb[0].mxu0
  %v268 = vadd.f32 %v88, %v267
  %v269 = vpop.f32.mrb[0].mxu0
  %270 = vdwg.mxu0
  %vm271 = vcmp.gt.f32.partialorder %v209, 0.0
  %vm272 = vcmp.gt.f32.partialorder %v212, 0.0
  %vm273 = vcmp.gt.f32.partialorder %v217, 0.0
  %vm274 = vcmp.gt.f32.partialorder %v220, 0.0
  %vm275 = vcmp.gt.f32.partialorder %v225, 0.0
  %vm276 = vcmp.gt.f32.partialorder %v228, 0.0
  %vm277 = vcmp.gt.f32.partialorder %v233, 0.0
  %vm278 = vcmp.gt.f32.partialorder %v236, 0.0
  %vm279 = vcmp.gt.f32.partialorder %v241, 0.0
  %vm280 = vcmp.gt.f32.partialorder %v244, 0.0
  %vm281 = vcmp.gt.f32.partialorder %v249, 0.0
  %vm282 = vcmp.gt.f32.partialorder %v252, 0.0
  %vm283 = vcmp.gt.f32.partialorder %v257, 0.0
  %vm284 = vcmp.gt.f32.partialorder %v260, 0.0
  %vm285 = vcmp.gt.f32.partialorder %v265, 0.0
  %vm286 = vcmp.gt.f32.partialorder %v268, 0.0
  %v287 = vmul.f32 %v209, 0.2
  %v288 = vmul.f32 %v212, 0.2
  %v289 = vmul.f32 %v217, 0.2
  %v290 = vmul.f32 %v220, 0.2
  %v291 = vmul.f32 %v225, 0.2
  %v292 = vmul.f32 %v228, 0.2
  %v293 = vmul.f32 %v233, 0.2
  %v294 = vmul.f32 %v236, 0.2
  %v295 = vmul.f32 %v241, 0.2
  %v296 = vmul.f32 %v244, 0.2
  %v297 = vmul.f32 %v249, 0.2
  %v298 = vmul.f32 %v252, 0.2
  %v299 = vmul.f32 %v257, 0.2
  %v300 = vmul.f32 %v260, 0.2
  %v301 = vmul.f32 %v265, 0.2
  %v302 = vmul.f32 %v268, 0.2
  %v303 = vsel %vm271, %v209, %v287
  %v304 = vsel %vm272, %v212, %v288
  %v305 = vsel %vm273, %v217, %v289
  %v306 = vsel %vm274, %v220, %v290
  %v307 = vsel %vm275, %v225, %v291
  %v308 = vsel %vm276, %v228, %v292
  %v309 = vsel %vm277, %v233, %v293
  %v310 = vsel %vm278, %v236, %v294
  %v311 = vsel %vm279, %v241, %v295
  %v312 = vsel %vm280, %v244, %v296
  %v313 = vsel %vm281, %v249, %v297
  %v314 = vsel %vm282, %v252, %v298
  %v315 = vsel %vm283, %v257, %v299
  %v316 = vsel %vm284, %v260, %v300
  %v317 = vsel %vm285, %v265, %v301
  %v318 = vsel %vm286, %v268, %v302
  %v319 = vld [vmem:[%s3] sm:$0xff]
  %v320 = vld [vmem:[%s3 + $0x8] sm:$0xff]
  %v321 = vld [vmem:[%s3 + $0x10] sm:$0xff]
  %v322 = vld [vmem:[%s3 + $0x18] sm:$0xff]
  %v323 = vld [vmem:[%s4] sm:$0xf]
  %v324 = vld [vmem:[%s4 + $0x4] sm:$0xf]
  %v325 = vld [vmem:[%s4 + $0x8] sm:$0xf]
  %v326 = vld [vmem:[%s4 + $0xc] sm:$0xf]
  %v327 = vld [vmem:[%s4 + $0x10] sm:$0xf]
  %v328 = vld [vmem:[%s4 + $0x14] sm:$0xf]
  %v329 = vld [vmem:[%s4 + $0x18] sm:$0xf]
  %v330 = vld [vmem:[%s4 + $0x1c] sm:$0xf]
  %v331 = vld [vmem:[%s4 + $0x20] sm:$0xf]
  %v332 = vld [vmem:[%s4 + $0x24] sm:$0xf]
  %v333 = vld [vmem:[%s4 + $0x28] sm:$0xf]
  %v334 = vld [vmem:[%s4 + $0x2c] sm:$0xf]
  %v335 = vld [vmem:[%s4 + $0x30] sm:$0xf]
  %v336 = vld [vmem:[%s4 + $0x34] sm:$0xf]
  %v337 = vld [vmem:[%s4 + $0x38] sm:$0xf]
  %v338 = vld [vmem:[%s4 + $0x3c] sm:$0xf]
  %v339 = vld [vmem:[%s4 + $0x40] sm:$0xf]
  %v340 = vld [vmem:[%s4 + $0x44] sm:$0xf]
  %v341 = vpack.c.bf16 %v304, %v303
  %v342 = vpack.c.bf16 %v306, %v305
  %v343 = vpack.c.bf16 %v308, %v307
  %v344 = vpack.c.bf16 %v310, %v309
  %v345 = vpack.c.bf16 %v312, %v311
  %v346 = vpack.c.bf16 %v314, %v313
  %v347 = vpack.c.bf16 %v316, %v315
  %v348 = vpack.c.bf16 %v318, %v317
  %v349 = vlaneseq
  %v350 = vand.u32 %v349, 127
  %351 = vset.pattern.permute.xlu0 0
  %352 = vperm.xlu0 %351, %v319
  %v353 = vpop.permute.xlu0 %352
  %354 = vset.pattern.permute.xlu0 0
  %355 = vperm.xlu0 %354, %v320
  %v356 = vpop.permute.xlu0 %355
  %357 = vset.pattern.permute.xlu0 0
  %358 = vperm.xlu0 %357, %v321
  %v359 = vpop.permute.xlu0 %358
  %360 = vset.pattern.permute.xlu0 0
  %361 = vperm.xlu0 %360, %v322
  %v362 = vpop.permute.xlu0 %361
  %vm363 = vcmp.eq.s32.totalorder %v350, %v353
  %vm364 = vcmp.eq.s32.totalorder %v350, %v356
  %vm365 = vcmp.eq.s32.totalorder %v350, %v359
  %vm366 = vcmp.eq.s32.totalorder %v350, %v362
  %v367 = vsel %vm363, 1.0, 0.0
  %v368 = vsel %vm364, 1.0, 0.0
  %v369 = vsel %vm365, 1.0, 0.0
  %v370 = vsel %vm366, 1.0, 0.0
  %v371 = vpack.c.bf16 %v368, %v367
  %v372 = vpack.c.bf16 %v370, %v369
  %373 = vmatprep.subr.bf16.mxu0 0
  %374 = vmatpush1.bf16.msra.mxu0 %v341
  %375 = vmatprep.subr.bf16.mxu0 0
  %376 = vmatpush1.bf16.msra.mxu0 %v342
  %377 = vmatprep.subr.bf16.mxu0 0
  %378 = vmatpush1.bf16.msra.mxu0 %v343
  %379 = vmatprep.subr.bf16.mxu0 0
  %380 = vmatpush1.bf16.msra.mxu0 %v344
  %381 = vmatprep.subr.bf16.mxu0 0
  %382 = vmatpush1.bf16.msra.mxu0 %v345
  %383 = vmatprep.subr.bf16.mxu0 0
  %384 = vmatpush1.bf16.msra.mxu0 %v346
  %385 = vmatprep.subr.bf16.mxu0 0
  %386 = vmatpush1.bf16.msra.mxu0 %v347
  %387 = vmatprep.subr.bf16.mxu0 0
  %388 = vmatpush1.bf16.msra.mxu0 %v348
  %389 = vmatprep.subr.bf16.mxu0 0
  %390 = vmatpush1.bf16.msra.mxu0 0
  %391 = vmatprep.subr.bf16.mxu0 0
  %392 = vmatpush1.bf16.msra.mxu0 0
  %393 = vmatprep.subr.bf16.mxu0 0
  %394 = vmatpush1.bf16.msra.mxu0 0
  %395 = vmatprep.subr.bf16.mxu0 0
  %396 = vmatpush1.bf16.msra.mxu0 0
  %397 = vmatprep.subr.bf16.mxu0 0
  %398 = vmatpush1.bf16.msra.mxu0 0
  %399 = vmatprep.subr.bf16.mxu0 0
  %400 = vmatpush1.bf16.msra.mxu0 0
  %401 = vmatprep.subr.bf16.mxu0 0
  %402 = vmatpush1.bf16.msra.mxu0 0
  %403 = vmatprep.subr.bf16.mxu0 0
  %404 = vmatpush1.bf16.msra.mxu0 0
  %405 = vmatprep.mubr.bf16.mxu0 0
  %406 = vmatmul.mubr.bf16.gmra.mrb[0].mxu0 %v371
  %v407 = vpop.f32.mrb[0].mxu0
  %v408 = vadd.f32 0.0, %v407
  %v409 = vpop.f32.mrb[0].mxu0
  %v410 = vpop.f32.mrb[0].mxu0
  %v411 = vadd.f32 0.0, %v410
  %v412 = vpop.f32.mrb[0].mxu0
  %413 = vmatprep.mubr.bf16.mxu0 0
  %414 = vmatmul.mubr.bf16.gmra.mrb[0].mxu0 %v372
  %v415 = vpop.f32.mrb[0].mxu0
  %v416 = vadd.f32 0.0, %v415
  %v417 = vpop.f32.mrb[0].mxu0
  %v418 = vpop.f32.mrb[0].mxu0
  %v419 = vadd.f32 0.0, %v418
  %v420 = vpop.f32.mrb[0].mxu0
  %421 = vdwg.mxu0
  %v422 = vpack.c.bf16 %v411, %v408
  %v423 = vpack.c.bf16 %v419, %v416
  %424 = vset.pattern.permute.xlu0 1
  %425 = vperm.xlu0 %424, %v319
  %v426 = vpop.permute.xlu0 %425
  %427 = vset.pattern.permute.xlu0 1
  %428 = vperm.xlu0 %427, %v320
  %v429 = vpop.permute.xlu0 %428
  %430 = vset.pattern.permute.xlu0 1
  %431 = vperm.xlu0 %430, %v321
  %v432 = vpop.permute.xlu0 %431
  %433 = vset.pattern.permute.xlu0 1
  %434 = vperm.xlu0 %433, %v322
  %v435 = vpop.permute.xlu0 %434
  %vm436 = vcmp.eq.s32.totalorder %v350, %v426
  %vm437 = vcmp.eq.s32.totalorder %v350, %v429
  %vm438 = vcmp.eq.s32.totalorder %v350, %v432
  %vm439 = vcmp.eq.s32.totalorder %v350, %v435
  %v440 = vsel %vm436, 1.0, 0.0
  %v441 = vsel %vm437, 1.0, 0.0
  %v442 = vsel %vm438, 1.0, 0.0
  %v443 = vsel %vm439, 1.0, 0.0
  %v444 = vpack.c.bf16 %v441, %v440
  %v445 = vpack.c.bf16 %v443, %v442
  %446 = vmatprep.subr.bf16.mxu0 0
  %447 = vmatpush1.bf16.msra.mxu0 %v341
  %448 = vmatprep.subr.bf16.mxu0 0
  %449 = vmatpush1.bf16.msra.mxu0 %v342
  %450 = vmatprep.subr.bf16.mxu0 0
  %451 = vmatpush1.bf16.msra.mxu0 %v343
  %452 = vmatprep.subr.bf16.mxu0 0
  %453 = vmatpush1.bf16.msra.mxu0 %v344
  %454 = vmatprep.subr.bf16.mxu0 0
  %455 = vmatpush1.bf16.msra.mxu0 %v345
  %456 = vmatprep.subr.bf16.mxu0 0
  %457 = vmatpush1.bf16.msra.mxu0 %v346
  %458 = vmatprep.subr.bf16.mxu0 0
  %459 = vmatpush1.bf16.msra.mxu0 %v347
  %460 = vmatprep.subr.bf16.mxu0 0
  %461 = vmatpush1.bf16.msra.mxu0 %v348
  %462 = vmatprep.subr.bf16.mxu0 0
  %463 = vmatpush1.bf16.msra.mxu0 0
  %464 = vmatprep.subr.bf16.mxu0 0
  %465 = vmatpush1.bf16.msra.mxu0 0
  %466 = vmatprep.subr.bf16.mxu0 0
  %467 = vmatpush1.bf16.msra.mxu0 0
  %468 = vmatprep.subr.bf16.mxu0 0
  %469 = vmatpush1.bf16.msra.mxu0 0
  %470 = vmatprep.subr.bf16.mxu0 0
  %471 = vmatpush1.bf16.msra.mxu0 0
  %472 = vmatprep.subr.bf16.mxu0 0
  %473 = vmatpush1.bf16.msra.mxu0 0
  %474 = vmatprep.subr.bf16.mxu0 0
  %475 = vmatpush1.bf16.msra.mxu0 0
  %476 = vmatprep.subr.bf16.mxu0 0
  %477 = vmatpush1.bf16.msra.mxu0 0
  %478 = vmatprep.mubr.bf16.mxu0 0
  %479 = vmatmul.mubr.bf16.gmra.mrb[0].mxu0 %v444
  %v480 = vpop.f32.mrb[0].mxu0
  %v481 = vadd.f32 0.0, %v480
  %v482 = vpop.f32.mrb[0].mxu0
  %v483 = vpop.f32.mrb[0].mxu0
  %v484 = vadd.f32 0.0, %v483
  %v485 = vpop.f32.mrb[0].mxu0
  %486 = vmatprep.mubr.bf16.mxu0 0
  %487 = vmatmul.mubr.bf16.gmra.mrb[0].mxu0 %v445
  %v488 = vpop.f32.mrb[0].mxu0
  %v489 = vadd.f32 0.0, %v488
  %v490 = vpop.f32.mrb[0].mxu0
  %v491 = vpop.f32.mrb[0].mxu0
  %v492 = vadd.f32 0.0, %v491
  %v493 = vpop.f32.mrb[0].mxu0
  %494 = vdwg.mxu0
  %v495 = vpack.c.bf16 %v484, %v481
  %v496 = vpack.c.bf16 %v492, %v489
  %v499 = vunpack.c.l.b16 %v325
  %v500 = vunpack.c.l.b16 %v326
  %v501 = vpack.c.b16 %v500, %v499
  %vm503 = vcmask 130048
  %v505 = vsel %vm503, %v495, 0
  %v508 = vsel %vm503, %v496, 0
  %510 = vmatprep.subr.bf16.mxu0 0
  %511 = vmatpush1.bf16.msra.mxu0 %v501
  %512 = vmatprep.subr.bf16.mxu0 0
  %513 = vmatpush1.bf16.msra.mxu0 0
  %514 = vmatprep.subr.bf16.mxu0 0
  %515 = vmatpush1.bf16.msra.mxu0 0
  %516 = vmatprep.subr.bf16.mxu0 0
  %517 = vmatpush1.bf16.msra.mxu0 0
  %518 = vmatprep.subr.bf16.mxu0 0
  %519 = vmatpush1.bf16.msra.mxu0 0
  %520 = vmatprep.subr.bf16.mxu0 0
  %521 = vmatpush1.bf16.msra.mxu0 0
  %522 = vmatprep.subr.bf16.mxu0 0
  %523 = vmatpush1.bf16.msra.mxu0 0
  %524 = vmatprep.subr.bf16.mxu0 0
  %525 = vmatpush1.bf16.msra.mxu0 0
  %526 = vmatprep.subr.bf16.mxu0 0
  %527 = vmatpush1.bf16.msra.mxu0 0
  %528 = vmatprep.subr.bf16.mxu0 0
  %529 = vmatpush1.bf16.msra.mxu0 0
  %530 = vmatprep.subr.bf16.mxu0 0
  %531 = vmatpush1.bf16.msra.mxu0 0
  %532 = vmatprep.subr.bf16.mxu0 0
  %533 = vmatpush1.bf16.msra.mxu0 0
  %534 = vmatprep.subr.bf16.mxu0 0
  %535 = vmatpush1.bf16.msra.mxu0 0
  %536 = vmatprep.subr.bf16.mxu0 0
  %537 = vmatpush1.bf16.msra.mxu0 0
  %538 = vmatprep.subr.bf16.mxu0 0
  %539 = vmatpush1.bf16.msra.mxu0 0
  %540 = vmatprep.subr.bf16.mxu0 0
  %541 = vmatpush1.bf16.msra.mxu0 0
  %542 = vmatprep.mubr.bf16.mxu0 0
  %543 = vmatmul.mubr.bf16.gmra.mrb[0].mxu0 %v505
  %v544 = vpop.f32.mrb[0].mxu0
  %v545 = vadd.f32 0.0, %v544
  %v546 = vpop.f32.mrb[0].mxu0
  %v547 = vpop.f32.mrb[0].mxu0
  %v548 = vadd.f32 0.0, %v547
  %v549 = vpop.f32.mrb[0].mxu0
  %550 = vmatprep.mubr.bf16.mxu0 0
  %551 = vmatmul.mubr.bf16.gmra.mrb[0].mxu0 %v508
  %v552 = vpop.f32.mrb[0].mxu0
  %v553 = vadd.f32 0.0, %v552
  %v554 = vpop.f32.mrb[0].mxu0
  %v555 = vpop.f32.mrb[0].mxu0
  %v556 = vadd.f32 0.0, %v555
  %v557 = vpop.f32.mrb[0].mxu0
  %558 = vdwg.mxu0
  %v561 = vunpack.c.l.b16 %v323
  %v562 = vunpack.c.l.b16 %v324
  %v563 = vpack.c.b16 %v562, %v561
  %v566 = vsel %vm503, %v422, 0
  %v569 = vsel %vm503, %v423, 0
  %571 = vmatprep.subr.bf16.mxu0 0
  %572 = vmatpush1.bf16.msra.mxu0 %v563
  %573 = vmatprep.subr.bf16.mxu0 0
  %574 = vmatpush1.bf16.msra.mxu0 0
  %575 = vmatprep.subr.bf16.mxu0 0
  %576 = vmatpush1.bf16.msra.mxu0 0
  %577 = vmatprep.subr.bf16.mxu0 0
  %578 = vmatpush1.bf16.msra.mxu0 0
  %579 = vmatprep.subr.bf16.mxu0 0
  %580 = vmatpush1.bf16.msra.mxu0 0
  %581 = vmatprep.subr.bf16.mxu0 0
  %582 = vmatpush1.bf16.msra.mxu0 0
  %583 = vmatprep.subr.bf16.mxu0 0
  %584 = vmatpush1.bf16.msra.mxu0 0
  %585 = vmatprep.subr.bf16.mxu0 0
  %586 = vmatpush1.bf16.msra.mxu0 0
  %587 = vmatprep.subr.bf16.mxu0 0
  %588 = vmatpush1.bf16.msra.mxu0 0
  %589 = vmatprep.subr.bf16.mxu0 0
  %590 = vmatpush1.bf16.msra.mxu0 0
  %591 = vmatprep.subr.bf16.mxu0 0
  %592 = vmatpush1.bf16.msra.mxu0 0
  %593 = vmatprep.subr.bf16.mxu0 0
  %594 = vmatpush1.bf16.msra.mxu0 0
  %595 = vmatprep.subr.bf16.mxu0 0
  %596 = vmatpush1.bf16.msra.mxu0 0
  %597 = vmatprep.subr.bf16.mxu0 0
  %598 = vmatpush1.bf16.msra.mxu0 0
  %599 = vmatprep.subr.bf16.mxu0 0
  %600 = vmatpush1.bf16.msra.mxu0 0
  %601 = vmatprep.subr.bf16.mxu0 0
  %602 = vmatpush1.bf16.msra.mxu0 0
  %603 = vmatprep.mubr.bf16.mxu0 0
  %604 = vmatmul.mubr.bf16.gmra.mrb[0].mxu0 %v566
  %v605 = vpop.f32.mrb[0].mxu0
  %v606 = vadd.f32 %v545, %v605
  %v607 = vpop.f32.mrb[0].mxu0
  %v608 = vpop.f32.mrb[0].mxu0
  %v609 = vadd.f32 %v548, %v608
  %v610 = vpop.f32.mrb[0].mxu0
  %611 = vmatprep.mubr.bf16.mxu0 0
  %612 = vmatmul.mubr.bf16.gmra.mrb[0].mxu0 %v569
  %v613 = vpop.f32.mrb[0].mxu0
  %v614 = vadd.f32 %v553, %v613
  %v615 = vpop.f32.mrb[0].mxu0
  %v616 = vpop.f32.mrb[0].mxu0
  %v617 = vadd.f32 %v556, %v616
  %v618 = vpop.f32.mrb[0].mxu0
  %619 = vdwg.mxu0
  %620 = vset.pattern.permute.xlu0 2
  %621 = vperm.xlu0 %620, %v319
  %v622 = vpop.permute.xlu0 %621
  %623 = vset.pattern.permute.xlu0 2
  %624 = vperm.xlu0 %623, %v320
  %v625 = vpop.permute.xlu0 %624
  %626 = vset.pattern.permute.xlu0 2
  %627 = vperm.xlu0 %626, %v321
  %v628 = vpop.permute.xlu0 %627
  %629 = vset.pattern.permute.xlu0 2
  %630 = vperm.xlu0 %629, %v322
  %v631 = vpop.permute.xlu0 %630
  %vm632 = vcmp.eq.s32.totalorder %v350, %v622
  %vm633 = vcmp.eq.s32.totalorder %v350, %v625
  %vm634 = vcmp.eq.s32.totalorder %v350, %v628
  %vm635 = vcmp.eq.s32.totalorder %v350, %v631
  %v636 = vsel %vm632, 1.0, 0.0
  %v637 = vsel %vm633, 1.0, 0.0
  %v638 = vsel %vm634, 1.0, 0.0
  %v639 = vsel %vm635, 1.0, 0.0
  %v640 = vpack.c.bf16 %v637, %v636
  %v641 = vpack.c.bf16 %v639, %v638
  %642 = vmatprep.subr.bf16.mxu0 0
  %643 = vmatpush1.bf16.msra.mxu0 %v341
  %644 = vmatprep.subr.bf16.mxu0 0
  %645 = vmatpush1.bf16.msra.mxu0 %v342
  %646 = vmatprep.subr.bf16.mxu0 0
  %647 = vmatpush1.bf16.msra.mxu0 %v343
  %648 = vmatprep.subr.bf16.mxu0 0
  %649 = vmatpush1.bf16.msra.mxu0 %v344
  %650 = vmatprep.subr.bf16.mxu0 0
  %651 = vmatpush1.bf16.msra.mxu0 %v345
  %652 = vmatprep.subr.bf16.mxu0 0
  %653 = vmatpush1.bf16.msra.mxu0 %v346
  %654 = vmatprep.subr.bf16.mxu0 0
  %655 = vmatpush1.bf16.msra.mxu0 %v347
  %656 = vmatprep.subr.bf16.mxu0 0
  %657 = vmatpush1.bf16.msra.mxu0 %v348
  %658 = vmatprep.subr.bf16.mxu0 0
  %659 = vmatpush1.bf16.msra.mxu0 0
  %660 = vmatprep.subr.bf16.mxu0 0
  %661 = vmatpush1.bf16.msra.mxu0 0
  %662 = vmatprep.subr.bf16.mxu0 0
  %663 = vmatpush1.bf16.msra.mxu0 0
  %664 = vmatprep.subr.bf16.mxu0 0
  %665 = vmatpush1.bf16.msra.mxu0 0
  %666 = vmatprep.subr.bf16.mxu0 0
  %667 = vmatpush1.bf16.msra.mxu0 0
  %668 = vmatprep.subr.bf16.mxu0 0
  %669 = vmatpush1.bf16.msra.mxu0 0
  %670 = vmatprep.subr.bf16.mxu0 0
  %671 = vmatpush1.bf16.msra.mxu0 0
  %672 = vmatprep.subr.bf16.mxu0 0
  %673 = vmatpush1.bf16.msra.mxu0 0
  %674 = vmatprep.mubr.bf16.mxu0 0
  %675 = vmatmul.mubr.bf16.gmra.mrb[0].mxu0 %v640
  %v676 = vpop.f32.mrb[0].mxu0
  %v677 = vadd.f32 0.0, %v676
  %v678 = vpop.f32.mrb[0].mxu0
  %v679 = vpop.f32.mrb[0].mxu0
  %v680 = vadd.f32 0.0, %v679
  %v681 = vpop.f32.mrb[0].mxu0
  %682 = vmatprep.mubr.bf16.mxu0 0
  %683 = vmatmul.mubr.bf16.gmra.mrb[0].mxu0 %v641
  %v684 = vpop.f32.mrb[0].mxu0
  %v685 = vadd.f32 0.0, %v684
  %v686 = vpop.f32.mrb[0].mxu0
  %v687 = vpop.f32.mrb[0].mxu0
  %v688 = vadd.f32 0.0, %v687
  %v689 = vpop.f32.mrb[0].mxu0
  %690 = vdwg.mxu0
  %v691 = vpack.c.bf16 %v680, %v677
  %v692 = vpack.c.bf16 %v688, %v685
  %v695 = vunpack.c.l.b16 %v327
  %v696 = vunpack.c.l.b16 %v328
  %v697 = vpack.c.b16 %v696, %v695
  %v700 = vsel %vm503, %v691, 0
  %v703 = vsel %vm503, %v692, 0
  %705 = vmatprep.subr.bf16.mxu0 0
  %706 = vmatpush1.bf16.msra.mxu0 %v697
  %707 = vmatprep.subr.bf16.mxu0 0
  %708 = vmatpush1.bf16.msra.mxu0 0
  %709 = vmatprep.subr.bf16.mxu0 0
  %710 = vmatpush1.bf16.msra.mxu0 0
  %711 = vmatprep.subr.bf16.mxu0 0
  %712 = vmatpush1.bf16.msra.mxu0 0
  %713 = vmatprep.subr.bf16.mxu0 0
  %714 = vmatpush1.bf16.msra.mxu0 0
  %715 = vmatprep.subr.bf16.mxu0 0
  %716 = vmatpush1.bf16.msra.mxu0 0
  %717 = vmatprep.subr.bf16.mxu0 0
  %718 = vmatpush1.bf16.msra.mxu0 0
  %719 = vmatprep.subr.bf16.mxu0 0
  %720 = vmatpush1.bf16.msra.mxu0 0
  %721 = vmatprep.subr.bf16.mxu0 0
  %722 = vmatpush1.bf16.msra.mxu0 0
  %723 = vmatprep.subr.bf16.mxu0 0
  %724 = vmatpush1.bf16.msra.mxu0 0
  %725 = vmatprep.subr.bf16.mxu0 0
  %726 = vmatpush1.bf16.msra.mxu0 0
  %727 = vmatprep.subr.bf16.mxu0 0
  %728 = vmatpush1.bf16.msra.mxu0 0
  %729 = vmatprep.subr.bf16.mxu0 0
  %730 = vmatpush1.bf16.msra.mxu0 0
  %731 = vmatprep.subr.bf16.mxu0 0
  %732 = vmatpush1.bf16.msra.mxu0 0
  %733 = vmatprep.subr.bf16.mxu0 0
  %734 = vmatpush1.bf16.msra.mxu0 0
  %735 = vmatprep.subr.bf16.mxu0 0
  %736 = vmatpush1.bf16.msra.mxu0 0
  %737 = vmatprep.mubr.bf16.mxu0 0
  %738 = vmatmul.mubr.bf16.gmra.mrb[0].mxu0 %v700
  %v739 = vpop.f32.mrb[0].mxu0
  %v740 = vadd.f32 0.0, %v739
  %v741 = vpop.f32.mrb[0].mxu0
  %v742 = vpop.f32.mrb[0].mxu0
  %v743 = vadd.f32 0.0, %v742
  %v744 = vpop.f32.mrb[0].mxu0
  %745 = vmatprep.mubr.bf16.mxu0 0
  %746 = vmatmul.mubr.bf16.gmra.mrb[0].mxu0 %v703
  %v747 = vpop.f32.mrb[0].mxu0
  %v748 = vadd.f32 0.0, %v747
  %v749 = vpop.f32.mrb[0].mxu0
  %v750 = vpop.f32.mrb[0].mxu0
  %v751 = vadd.f32 0.0, %v750
  %v752 = vpop.f32.mrb[0].mxu0
  %753 = vdwg.mxu0
  %v754 = vadd.f32 %v606, %v740
  %v755 = vadd.f32 %v609, %v743
  %v756 = vadd.f32 %v614, %v748
  %v757 = vadd.f32 %v617, %v751
  %758 = vset.pattern.permute.xlu0 3
  %759 = vperm.xlu0 %758, %v319
  %v760 = vpop.permute.xlu0 %759
  %761 = vset.pattern.permute.xlu0 3
  %762 = vperm.xlu0 %761, %v320
  %v763 = vpop.permute.xlu0 %762
  %764 = vset.pattern.permute.xlu0 3
  %765 = vperm.xlu0 %764, %v321
  %v766 = vpop.permute.xlu0 %765
  %767 = vset.pattern.permute.xlu0 3
  %768 = vperm.xlu0 %767, %v322
  %v769 = vpop.permute.xlu0 %768
  %vm770 = vcmp.eq.s32.totalorder %v350, %v760
  %vm771 = vcmp.eq.s32.totalorder %v350, %v763
  %vm772 = vcmp.eq.s32.totalorder %v350, %v766
  %vm773 = vcmp.eq.s32.totalorder %v350, %v769
  %v774 = vsel %vm770, 1.0, 0.0
  %v775 = vsel %vm771, 1.0, 0.0
  %v776 = vsel %vm772, 1.0, 0.0
  %v777 = vsel %vm773, 1.0, 0.0
  %v778 = vpack.c.bf16 %v775, %v774
  %v779 = vpack.c.bf16 %v777, %v776
  %780 = vmatprep.subr.bf16.mxu0 0
  %781 = vmatpush1.bf16.msra.mxu0 %v341
  %782 = vmatprep.subr.bf16.mxu0 0
  %783 = vmatpush1.bf16.msra.mxu0 %v342
  %784 = vmatprep.subr.bf16.mxu0 0
  %785 = vmatpush1.bf16.msra.mxu0 %v343
  %786 = vmatprep.subr.bf16.mxu0 0
  %787 = vmatpush1.bf16.msra.mxu0 %v344
  %788 = vmatprep.subr.bf16.mxu0 0
  %789 = vmatpush1.bf16.msra.mxu0 %v345
  %790 = vmatprep.subr.bf16.mxu0 0
  %791 = vmatpush1.bf16.msra.mxu0 %v346
  %792 = vmatprep.subr.bf16.mxu0 0
  %793 = vmatpush1.bf16.msra.mxu0 %v347
  %794 = vmatprep.subr.bf16.mxu0 0
  %795 = vmatpush1.bf16.msra.mxu0 %v348
  %796 = vmatprep.subr.bf16.mxu0 0
  %797 = vmatpush1.bf16.msra.mxu0 0
  %798 = vmatprep.subr.bf16.mxu0 0
  %799 = vmatpush1.bf16.msra.mxu0 0
  %800 = vmatprep.subr.bf16.mxu0 0
  %801 = vmatpush1.bf16.msra.mxu0 0
  %802 = vmatprep.subr.bf16.mxu0 0
  %803 = vmatpush1.bf16.msra.mxu0 0
  %804 = vmatprep.subr.bf16.mxu0 0
  %805 = vmatpush1.bf16.msra.mxu0 0
  %806 = vmatprep.subr.bf16.mxu0 0
  %807 = vmatpush1.bf16.msra.mxu0 0
  %808 = vmatprep.subr.bf16.mxu0 0
  %809 = vmatpush1.bf16.msra.mxu0 0
  %810 = vmatprep.subr.bf16.mxu0 0
  %811 = vmatpush1.bf16.msra.mxu0 0
  %812 = vmatprep.mubr.bf16.mxu0 0
  %813 = vmatmul.mubr.bf16.gmra.mrb[0].mxu0 %v778
  %v814 = vpop.f32.mrb[0].mxu0
  %v815 = vadd.f32 0.0, %v814
  %v816 = vpop.f32.mrb[0].mxu0
  %v817 = vpop.f32.mrb[0].mxu0
  %v818 = vadd.f32 0.0, %v817
  %v819 = vpop.f32.mrb[0].mxu0
  %820 = vmatprep.mubr.bf16.mxu0 0
  %821 = vmatmul.mubr.bf16.gmra.mrb[0].mxu0 %v779
  %v822 = vpop.f32.mrb[0].mxu0
  %v823 = vadd.f32 0.0, %v822
  %v824 = vpop.f32.mrb[0].mxu0
  %v825 = vpop.f32.mrb[0].mxu0
  %v826 = vadd.f32 0.0, %v825
  %v827 = vpop.f32.mrb[0].mxu0
  %828 = vdwg.mxu0
  %v829 = vpack.c.bf16 %v818, %v815
  %v830 = vpack.c.bf16 %v826, %v823
  %v833 = vunpack.c.l.b16 %v329
  %v834 = vunpack.c.l.b16 %v330
  %v835 = vpack.c.b16 %v834, %v833
  %v838 = vsel %vm503, %v829, 0
  %v841 = vsel %vm503, %v830, 0
  %843 = vmatprep.subr.bf16.mxu0 0
  %844 = vmatpush1.bf16.msra.mxu0 %v835
  %845 = vmatprep.subr.bf16.mxu0 0
  %846 = vmatpush1.bf16.msra.mxu0 0
  %847 = vmatprep.subr.bf16.mxu0 0
  %848 = vmatpush1.bf16.msra.mxu0 0
  %849 = vmatprep.subr.bf16.mxu0 0
  %850 = vmatpush1.bf16.msra.mxu0 0
  %851 = vmatprep.subr.bf16.mxu0 0
  %852 = vmatpush1.bf16.msra.mxu0 0
  %853 = vmatprep.subr.bf16.mxu0 0
  %854 = vmatpush1.bf16.msra.mxu0 0
  %855 = vmatprep.subr.bf16.mxu0 0
  %856 = vmatpush1.bf16.msra.mxu0 0
  %857 = vmatprep.subr.bf16.mxu0 0
  %858 = vmatpush1.bf16.msra.mxu0 0
  %859 = vmatprep.subr.bf16.mxu0 0
  %860 = vmatpush1.bf16.msra.mxu0 0
  %861 = vmatprep.subr.bf16.mxu0 0
  %862 = vmatpush1.bf16.msra.mxu0 0
  %863 = vmatprep.subr.bf16.mxu0 0
  %864 = vmatpush1.bf16.msra.mxu0 0
  %865 = vmatprep.subr.bf16.mxu0 0
  %866 = vmatpush1.bf16.msra.mxu0 0
  %867 = vmatprep.subr.bf16.mxu0 0
  %868 = vmatpush1.bf16.msra.mxu0 0
  %869 = vmatprep.subr.bf16.mxu0 0
  %870 = vmatpush1.bf16.msra.mxu0 0
  %871 = vmatprep.subr.bf16.mxu0 0
  %872 = vmatpush1.bf16.msra.mxu0 0
  %873 = vmatprep.subr.bf16.mxu0 0
  %874 = vmatpush1.bf16.msra.mxu0 0
  %875 = vmatprep.mubr.bf16.mxu0 0
  %876 = vmatmul.mubr.bf16.gmra.mrb[0].mxu0 %v838
  %v877 = vpop.f32.mrb[0].mxu0
  %v878 = vadd.f32 0.0, %v877
  %v879 = vpop.f32.mrb[0].mxu0
  %v880 = vpop.f32.mrb[0].mxu0
  %v881 = vadd.f32 0.0, %v880
  %v882 = vpop.f32.mrb[0].mxu0
  %883 = vmatprep.mubr.bf16.mxu0 0
  %884 = vmatmul.mubr.bf16.gmra.mrb[0].mxu0 %v841
  %v885 = vpop.f32.mrb[0].mxu0
  %v886 = vadd.f32 0.0, %v885
  %v887 = vpop.f32.mrb[0].mxu0
  %v888 = vpop.f32.mrb[0].mxu0
  %v889 = vadd.f32 0.0, %v888
  %v890 = vpop.f32.mrb[0].mxu0
  %891 = vdwg.mxu0
  %v892 = vadd.f32 %v754, %v878
  %v893 = vadd.f32 %v755, %v881
  %v894 = vadd.f32 %v756, %v886
  %v895 = vadd.f32 %v757, %v889
  %896 = vset.pattern.permute.xlu0 4
  %897 = vperm.xlu0 %896, %v319
  %v898 = vpop.permute.xlu0 %897
  %899 = vset.pattern.permute.xlu0 4
  %900 = vperm.xlu0 %899, %v320
  %v901 = vpop.permute.xlu0 %900
  %902 = vset.pattern.permute.xlu0 4
  %903 = vperm.xlu0 %902, %v321
  %v904 = vpop.permute.xlu0 %903
  %905 = vset.pattern.permute.xlu0 4
  %906 = vperm.xlu0 %905, %v322
  %v907 = vpop.permute.xlu0 %906
  %vm908 = vcmp.eq.s32.totalorder %v350, %v898
  %vm909 = vcmp.eq.s32.totalorder %v350, %v901
  %vm910 = vcmp.eq.s32.totalorder %v350, %v904
  %vm911 = vcmp.eq.s32.totalorder %v350, %v907
  %v912 = vsel %vm908, 1.0, 0.0
  %v913 = vsel %vm909, 1.0, 0.0
  %v914 = vsel %vm910, 1.0, 0.0
  %v915 = vsel %vm911, 1.0, 0.0
  %v916 = vpack.c.bf16 %v913, %v912
  %v917 = vpack.c.bf16 %v915, %v914
  %918 = vmatprep.subr.bf16.mxu0 0
  %919 = vmatpush1.bf16.msra.mxu0 %v341
  %920 = vmatprep.subr.bf16.mxu0 0
  %921 = vmatpush1.bf16.msra.mxu0 %v342
  %922 = vmatprep.subr.bf16.mxu0 0
  %923 = vmatpush1.bf16.msra.mxu0 %v343
  %924 = vmatprep.subr.bf16.mxu0 0
  %925 = vmatpush1.bf16.msra.mxu0 %v344
  %926 = vmatprep.subr.bf16.mxu0 0
  %927 = vmatpush1.bf16.msra.mxu0 %v345
  %928 = vmatprep.subr.bf16.mxu0 0
  %929 = vmatpush1.bf16.msra.mxu0 %v346
  %930 = vmatprep.subr.bf16.mxu0 0
  %931 = vmatpush1.bf16.msra.mxu0 %v347
  %932 = vmatprep.subr.bf16.mxu0 0
  %933 = vmatpush1.bf16.msra.mxu0 %v348
  %934 = vmatprep.subr.bf16.mxu0 0
  %935 = vmatpush1.bf16.msra.mxu0 0
  %936 = vmatprep.subr.bf16.mxu0 0
  %937 = vmatpush1.bf16.msra.mxu0 0
  %938 = vmatprep.subr.bf16.mxu0 0
  %939 = vmatpush1.bf16.msra.mxu0 0
  %940 = vmatprep.subr.bf16.mxu0 0
  %941 = vmatpush1.bf16.msra.mxu0 0
  %942 = vmatprep.subr.bf16.mxu0 0
  %943 = vmatpush1.bf16.msra.mxu0 0
  %944 = vmatprep.subr.bf16.mxu0 0
  %945 = vmatpush1.bf16.msra.mxu0 0
  %946 = vmatprep.subr.bf16.mxu0 0
  %947 = vmatpush1.bf16.msra.mxu0 0
  %948 = vmatprep.subr.bf16.mxu0 0
  %949 = vmatpush1.bf16.msra.mxu0 0
  %950 = vmatprep.mubr.bf16.mxu0 0
  %951 = vmatmul.mubr.bf16.gmra.mrb[0].mxu0 %v916
  %v952 = vpop.f32.mrb[0].mxu0
  %v953 = vadd.f32 0.0, %v952
  %v954 = vpop.f32.mrb[0].mxu0
  %v955 = vpop.f32.mrb[0].mxu0
  %v956 = vadd.f32 0.0, %v955
  %v957 = vpop.f32.mrb[0].mxu0
  %958 = vmatprep.mubr.bf16.mxu0 0
  %959 = vmatmul.mubr.bf16.gmra.mrb[0].mxu0 %v917
  %v960 = vpop.f32.mrb[0].mxu0
  %v961 = vadd.f32 0.0, %v960
  %v962 = vpop.f32.mrb[0].mxu0
  %v963 = vpop.f32.mrb[0].mxu0
  %v964 = vadd.f32 0.0, %v963
  %v965 = vpop.f32.mrb[0].mxu0
  %966 = vdwg.mxu0
  %v967 = vpack.c.bf16 %v956, %v953
  %v968 = vpack.c.bf16 %v964, %v961
  %v971 = vunpack.c.l.b16 %v331
  %v972 = vunpack.c.l.b16 %v332
  %v973 = vpack.c.b16 %v972, %v971
  %v976 = vsel %vm503, %v967, 0
  %v979 = vsel %vm503, %v968, 0
  %981 = vmatprep.subr.bf16.mxu0 0
  %982 = vmatpush1.bf16.msra.mxu0 %v973
  %983 = vmatprep.subr.bf16.mxu0 0
  %984 = vmatpush1.bf16.msra.mxu0 0
  %985 = vmatprep.subr.bf16.mxu0 0
  %986 = vmatpush1.bf16.msra.mxu0 0
  %987 = vmatprep.subr.bf16.mxu0 0
  %988 = vmatpush1.bf16.msra.mxu0 0
  %989 = vmatprep.subr.bf16.mxu0 0
  %990 = vmatpush1.bf16.msra.mxu0 0
  %991 = vmatprep.subr.bf16.mxu0 0
  %992 = vmatpush1.bf16.msra.mxu0 0
  %993 = vmatprep.subr.bf16.mxu0 0
  %994 = vmatpush1.bf16.msra.mxu0 0
  %995 = vmatprep.subr.bf16.mxu0 0
  %996 = vmatpush1.bf16.msra.mxu0 0
  %997 = vmatprep.subr.bf16.mxu0 0
  %998 = vmatpush1.bf16.msra.mxu0 0
  %999 = vmatprep.subr.bf16.mxu0 0
  %1000 = vmatpush1.bf16.msra.mxu0 0
  %1001 = vmatprep.subr.bf16.mxu0 0
  %1002 = vmatpush1.bf16.msra.mxu0 0
  %1003 = vmatprep.subr.bf16.mxu0 0
  %1004 = vmatpush1.bf16.msra.mxu0 0
  %1005 = vmatprep.subr.bf16.mxu0 0
  %1006 = vmatpush1.bf16.msra.mxu0 0
  %1007 = vmatprep.subr.bf16.mxu0 0
  %1008 = vmatpush1.bf16.msra.mxu0 0
  %1009 = vmatprep.subr.bf16.mxu0 0
  %1010 = vmatpush1.bf16.msra.mxu0 0
  %1011 = vmatprep.subr.bf16.mxu0 0
  %1012 = vmatpush1.bf16.msra.mxu0 0
  %1013 = vmatprep.mubr.bf16.mxu0 0
  %1014 = vmatmul.mubr.bf16.gmra.mrb[0].mxu0 %v976
  %v1015 = vpop.f32.mrb[0].mxu0
  %v1016 = vadd.f32 0.0, %v1015
  %v1017 = vpop.f32.mrb[0].mxu0
  %v1018 = vpop.f32.mrb[0].mxu0
  %v1019 = vadd.f32 0.0, %v1018
  %v1020 = vpop.f32.mrb[0].mxu0
  %1021 = vmatprep.mubr.bf16.mxu0 0
  %1022 = vmatmul.mubr.bf16.gmra.mrb[0].mxu0 %v979
  %v1023 = vpop.f32.mrb[0].mxu0
  %v1024 = vadd.f32 0.0, %v1023
  %v1025 = vpop.f32.mrb[0].mxu0
  %v1026 = vpop.f32.mrb[0].mxu0
  %v1027 = vadd.f32 0.0, %v1026
  %v1028 = vpop.f32.mrb[0].mxu0
  %1029 = vdwg.mxu0
  %v1030 = vadd.f32 %v892, %v1016
  %v1031 = vadd.f32 %v893, %v1019
  %v1032 = vadd.f32 %v894, %v1024
  %v1033 = vadd.f32 %v895, %v1027
  %1034 = vset.pattern.permute.xlu0 5
  %1035 = vperm.xlu0 %1034, %v319
  %v1036 = vpop.permute.xlu0 %1035
  %1037 = vset.pattern.permute.xlu0 5
  %1038 = vperm.xlu0 %1037, %v320
  %v1039 = vpop.permute.xlu0 %1038
  %1040 = vset.pattern.permute.xlu0 5
  %1041 = vperm.xlu0 %1040, %v321
  %v1042 = vpop.permute.xlu0 %1041
  %1043 = vset.pattern.permute.xlu0 5
  %1044 = vperm.xlu0 %1043, %v322
  %v1045 = vpop.permute.xlu0 %1044
  %vm1046 = vcmp.eq.s32.totalorder %v350, %v1036
  %vm1047 = vcmp.eq.s32.totalorder %v350, %v1039
  %vm1048 = vcmp.eq.s32.totalorder %v350, %v1042
  %vm1049 = vcmp.eq.s32.totalorder %v350, %v1045
  %v1050 = vsel %vm1046, 1.0, 0.0
  %v1051 = vsel %vm1047, 1.0, 0.0
  %v1052 = vsel %vm1048, 1.0, 0.0
  %v1053 = vsel %vm1049, 1.0, 0.0
  %v1054 = vpack.c.bf16 %v1051, %v1050
  %v1055 = vpack.c.bf16 %v1053, %v1052
  %1056 = vmatprep.subr.bf16.mxu0 0
  %1057 = vmatpush1.bf16.msra.mxu0 %v341
  %1058 = vmatprep.subr.bf16.mxu0 0
  %1059 = vmatpush1.bf16.msra.mxu0 %v342
  %1060 = vmatprep.subr.bf16.mxu0 0
  %1061 = vmatpush1.bf16.msra.mxu0 %v343
  %1062 = vmatprep.subr.bf16.mxu0 0
  %1063 = vmatpush1.bf16.msra.mxu0 %v344
  %1064 = vmatprep.subr.bf16.mxu0 0
  %1065 = vmatpush1.bf16.msra.mxu0 %v345
  %1066 = vmatprep.subr.bf16.mxu0 0
  %1067 = vmatpush1.bf16.msra.mxu0 %v346
  %1068 = vmatprep.subr.bf16.mxu0 0
  %1069 = vmatpush1.bf16.msra.mxu0 %v347
  %1070 = vmatprep.subr.bf16.mxu0 0
  %1071 = vmatpush1.bf16.msra.mxu0 %v348
  %1072 = vmatprep.subr.bf16.mxu0 0
  %1073 = vmatpush1.bf16.msra.mxu0 0
  %1074 = vmatprep.subr.bf16.mxu0 0
  %1075 = vmatpush1.bf16.msra.mxu0 0
  %1076 = vmatprep.subr.bf16.mxu0 0
  %1077 = vmatpush1.bf16.msra.mxu0 0
  %1078 = vmatprep.subr.bf16.mxu0 0
  %1079 = vmatpush1.bf16.msra.mxu0 0
  %1080 = vmatprep.subr.bf16.mxu0 0
  %1081 = vmatpush1.bf16.msra.mxu0 0
  %1082 = vmatprep.subr.bf16.mxu0 0
  %1083 = vmatpush1.bf16.msra.mxu0 0
  %1084 = vmatprep.subr.bf16.mxu0 0
  %1085 = vmatpush1.bf16.msra.mxu0 0
  %1086 = vmatprep.subr.bf16.mxu0 0
  %1087 = vmatpush1.bf16.msra.mxu0 0
  %1088 = vmatprep.mubr.bf16.mxu0 0
  %1089 = vmatmul.mubr.bf16.gmra.mrb[0].mxu0 %v1054
  %v1090 = vpop.f32.mrb[0].mxu0
  %v1091 = vadd.f32 0.0, %v1090
  %v1092 = vpop.f32.mrb[0].mxu0
  %v1093 = vpop.f32.mrb[0].mxu0
  %v1094 = vadd.f32 0.0, %v1093
  %v1095 = vpop.f32.mrb[0].mxu0
  %1096 = vmatprep.mubr.bf16.mxu0 0
  %1097 = vmatmul.mubr.bf16.gmra.mrb[0].mxu0 %v1055
  %v1098 = vpop.f32.mrb[0].mxu0
  %v1099 = vadd.f32 0.0, %v1098
  %v1100 = vpop.f32.mrb[0].mxu0
  %v1101 = vpop.f32.mrb[0].mxu0
  %v1102 = vadd.f32 0.0, %v1101
  %v1103 = vpop.f32.mrb[0].mxu0
  %1104 = vdwg.mxu0
  %v1105 = vpack.c.bf16 %v1094, %v1091
  %v1106 = vpack.c.bf16 %v1102, %v1099
  %v1109 = vunpack.c.l.b16 %v333
  %v1110 = vunpack.c.l.b16 %v334
  %v1111 = vpack.c.b16 %v1110, %v1109
  %v1114 = vsel %vm503, %v1105, 0
  %v1117 = vsel %vm503, %v1106, 0
  %1119 = vmatprep.subr.bf16.mxu0 0
  %1120 = vmatpush1.bf16.msra.mxu0 %v1111
  %1121 = vmatprep.subr.bf16.mxu0 0
  %1122 = vmatpush1.bf16.msra.mxu0 0
  %1123 = vmatprep.subr.bf16.mxu0 0
  %1124 = vmatpush1.bf16.msra.mxu0 0
  %1125 = vmatprep.subr.bf16.mxu0 0
  %1126 = vmatpush1.bf16.msra.mxu0 0
  %1127 = vmatprep.subr.bf16.mxu0 0
  %1128 = vmatpush1.bf16.msra.mxu0 0
  %1129 = vmatprep.subr.bf16.mxu0 0
  %1130 = vmatpush1.bf16.msra.mxu0 0
  %1131 = vmatprep.subr.bf16.mxu0 0
  %1132 = vmatpush1.bf16.msra.mxu0 0
  %1133 = vmatprep.subr.bf16.mxu0 0
  %1134 = vmatpush1.bf16.msra.mxu0 0
  %1135 = vmatprep.subr.bf16.mxu0 0
  %1136 = vmatpush1.bf16.msra.mxu0 0
  %1137 = vmatprep.subr.bf16.mxu0 0
  %1138 = vmatpush1.bf16.msra.mxu0 0
  %1139 = vmatprep.subr.bf16.mxu0 0
  %1140 = vmatpush1.bf16.msra.mxu0 0
  %1141 = vmatprep.subr.bf16.mxu0 0
  %1142 = vmatpush1.bf16.msra.mxu0 0
  %1143 = vmatprep.subr.bf16.mxu0 0
  %1144 = vmatpush1.bf16.msra.mxu0 0
  %1145 = vmatprep.subr.bf16.mxu0 0
  %1146 = vmatpush1.bf16.msra.mxu0 0
  %1147 = vmatprep.subr.bf16.mxu0 0
  %1148 = vmatpush1.bf16.msra.mxu0 0
  %1149 = vmatprep.subr.bf16.mxu0 0
  %1150 = vmatpush1.bf16.msra.mxu0 0
  %1151 = vmatprep.mubr.bf16.mxu0 0
  %1152 = vmatmul.mubr.bf16.gmra.mrb[0].mxu0 %v1114
  %v1153 = vpop.f32.mrb[0].mxu0
  %v1154 = vadd.f32 0.0, %v1153
  %v1155 = vpop.f32.mrb[0].mxu0
  %v1156 = vpop.f32.mrb[0].mxu0
  %v1157 = vadd.f32 0.0, %v1156
  %v1158 = vpop.f32.mrb[0].mxu0
  %1159 = vmatprep.mubr.bf16.mxu0 0
  %1160 = vmatmul.mubr.bf16.gmra.mrb[0].mxu0 %v1117
  %v1161 = vpop.f32.mrb[0].mxu0
  %v1162 = vadd.f32 0.0, %v1161
  %v1163 = vpop.f32.mrb[0].mxu0
  %v1164 = vpop.f32.mrb[0].mxu0
  %v1165 = vadd.f32 0.0, %v1164
  %v1166 = vpop.f32.mrb[0].mxu0
  %1167 = vdwg.mxu0
  %v1168 = vadd.f32 %v1030, %v1154
  %v1169 = vadd.f32 %v1031, %v1157
  %v1170 = vadd.f32 %v1032, %v1162
  %v1171 = vadd.f32 %v1033, %v1165
  %1172 = vset.pattern.permute.xlu0 6
  %1173 = vperm.xlu0 %1172, %v319
  %v1174 = vpop.permute.xlu0 %1173
  %1175 = vset.pattern.permute.xlu0 6
  %1176 = vperm.xlu0 %1175, %v320
  %v1177 = vpop.permute.xlu0 %1176
  %1178 = vset.pattern.permute.xlu0 6
  %1179 = vperm.xlu0 %1178, %v321
  %v1180 = vpop.permute.xlu0 %1179
  %1181 = vset.pattern.permute.xlu0 6
  %1182 = vperm.xlu0 %1181, %v322
  %v1183 = vpop.permute.xlu0 %1182
  %vm1184 = vcmp.eq.s32.totalorder %v350, %v1174
  %vm1185 = vcmp.eq.s32.totalorder %v350, %v1177
  %vm1186 = vcmp.eq.s32.totalorder %v350, %v1180
  %vm1187 = vcmp.eq.s32.totalorder %v350, %v1183
  %v1188 = vsel %vm1184, 1.0, 0.0
  %v1189 = vsel %vm1185, 1.0, 0.0
  %v1190 = vsel %vm1186, 1.0, 0.0
  %v1191 = vsel %vm1187, 1.0, 0.0
  %v1192 = vpack.c.bf16 %v1189, %v1188
  %v1193 = vpack.c.bf16 %v1191, %v1190
  %1194 = vmatprep.subr.bf16.mxu0 0
  %1195 = vmatpush1.bf16.msra.mxu0 %v341
  %1196 = vmatprep.subr.bf16.mxu0 0
  %1197 = vmatpush1.bf16.msra.mxu0 %v342
  %1198 = vmatprep.subr.bf16.mxu0 0
  %1199 = vmatpush1.bf16.msra.mxu0 %v343
  %1200 = vmatprep.subr.bf16.mxu0 0
  %1201 = vmatpush1.bf16.msra.mxu0 %v344
  %1202 = vmatprep.subr.bf16.mxu0 0
  %1203 = vmatpush1.bf16.msra.mxu0 %v345
  %1204 = vmatprep.subr.bf16.mxu0 0
  %1205 = vmatpush1.bf16.msra.mxu0 %v346
  %1206 = vmatprep.subr.bf16.mxu0 0
  %1207 = vmatpush1.bf16.msra.mxu0 %v347
  %1208 = vmatprep.subr.bf16.mxu0 0
  %1209 = vmatpush1.bf16.msra.mxu0 %v348
  %1210 = vmatprep.subr.bf16.mxu0 0
  %1211 = vmatpush1.bf16.msra.mxu0 0
  %1212 = vmatprep.subr.bf16.mxu0 0
  %1213 = vmatpush1.bf16.msra.mxu0 0
  %1214 = vmatprep.subr.bf16.mxu0 0
  %1215 = vmatpush1.bf16.msra.mxu0 0
  %1216 = vmatprep.subr.bf16.mxu0 0
  %1217 = vmatpush1.bf16.msra.mxu0 0
  %1218 = vmatprep.subr.bf16.mxu0 0
  %1219 = vmatpush1.bf16.msra.mxu0 0
  %1220 = vmatprep.subr.bf16.mxu0 0
  %1221 = vmatpush1.bf16.msra.mxu0 0
  %1222 = vmatprep.subr.bf16.mxu0 0
  %1223 = vmatpush1.bf16.msra.mxu0 0
  %1224 = vmatprep.subr.bf16.mxu0 0
  %1225 = vmatpush1.bf16.msra.mxu0 0
  %1226 = vmatprep.mubr.bf16.mxu0 0
  %1227 = vmatmul.mubr.bf16.gmra.mrb[0].mxu0 %v1192
  %v1228 = vpop.f32.mrb[0].mxu0
  %v1229 = vadd.f32 0.0, %v1228
  %v1230 = vpop.f32.mrb[0].mxu0
  %v1231 = vpop.f32.mrb[0].mxu0
  %v1232 = vadd.f32 0.0, %v1231
  %v1233 = vpop.f32.mrb[0].mxu0
  %1234 = vmatprep.mubr.bf16.mxu0 0
  %1235 = vmatmul.mubr.bf16.gmra.mrb[0].mxu0 %v1193
  %v1236 = vpop.f32.mrb[0].mxu0
  %v1237 = vadd.f32 0.0, %v1236
  %v1238 = vpop.f32.mrb[0].mxu0
  %v1239 = vpop.f32.mrb[0].mxu0
  %v1240 = vadd.f32 0.0, %v1239
  %v1241 = vpop.f32.mrb[0].mxu0
  %1242 = vdwg.mxu0
  %v1243 = vpack.c.bf16 %v1232, %v1229
  %v1244 = vpack.c.bf16 %v1240, %v1237
  %v1247 = vunpack.c.l.b16 %v335
  %v1248 = vunpack.c.l.b16 %v336
  %v1249 = vpack.c.b16 %v1248, %v1247
  %v1252 = vsel %vm503, %v1243, 0
  %v1255 = vsel %vm503, %v1244, 0
  %1257 = vmatprep.subr.bf16.mxu0 0
  %1258 = vmatpush1.bf16.msra.mxu0 %v1249
  %1259 = vmatprep.subr.bf16.mxu0 0
  %1260 = vmatpush1.bf16.msra.mxu0 0
  %1261 = vmatprep.subr.bf16.mxu0 0
  %1262 = vmatpush1.bf16.msra.mxu0 0
  %1263 = vmatprep.subr.bf16.mxu0 0
  %1264 = vmatpush1.bf16.msra.mxu0 0
  %1265 = vmatprep.subr.bf16.mxu0 0
  %1266 = vmatpush1.bf16.msra.mxu0 0
  %1267 = vmatprep.subr.bf16.mxu0 0
  %1268 = vmatpush1.bf16.msra.mxu0 0
  %1269 = vmatprep.subr.bf16.mxu0 0
  %1270 = vmatpush1.bf16.msra.mxu0 0
  %1271 = vmatprep.subr.bf16.mxu0 0
  %1272 = vmatpush1.bf16.msra.mxu0 0
  %1273 = vmatprep.subr.bf16.mxu0 0
  %1274 = vmatpush1.bf16.msra.mxu0 0
  %1275 = vmatprep.subr.bf16.mxu0 0
  %1276 = vmatpush1.bf16.msra.mxu0 0
  %1277 = vmatprep.subr.bf16.mxu0 0
  %1278 = vmatpush1.bf16.msra.mxu0 0
  %1279 = vmatprep.subr.bf16.mxu0 0
  %1280 = vmatpush1.bf16.msra.mxu0 0
  %1281 = vmatprep.subr.bf16.mxu0 0
  %1282 = vmatpush1.bf16.msra.mxu0 0
  %1283 = vmatprep.subr.bf16.mxu0 0
  %1284 = vmatpush1.bf16.msra.mxu0 0
  %1285 = vmatprep.subr.bf16.mxu0 0
  %1286 = vmatpush1.bf16.msra.mxu0 0
  %1287 = vmatprep.subr.bf16.mxu0 0
  %1288 = vmatpush1.bf16.msra.mxu0 0
  %1289 = vmatprep.mubr.bf16.mxu0 0
  %1290 = vmatmul.mubr.bf16.gmra.mrb[0].mxu0 %v1252
  %v1291 = vpop.f32.mrb[0].mxu0
  %v1292 = vadd.f32 0.0, %v1291
  %v1293 = vpop.f32.mrb[0].mxu0
  %v1294 = vpop.f32.mrb[0].mxu0
  %v1295 = vadd.f32 0.0, %v1294
  %v1296 = vpop.f32.mrb[0].mxu0
  %1297 = vmatprep.mubr.bf16.mxu0 0
  %1298 = vmatmul.mubr.bf16.gmra.mrb[0].mxu0 %v1255
  %v1299 = vpop.f32.mrb[0].mxu0
  %v1300 = vadd.f32 0.0, %v1299
  %v1301 = vpop.f32.mrb[0].mxu0
  %v1302 = vpop.f32.mrb[0].mxu0
  %v1303 = vadd.f32 0.0, %v1302
  %v1304 = vpop.f32.mrb[0].mxu0
  %1305 = vdwg.mxu0
  %v1306 = vadd.f32 %v1168, %v1292
  %v1307 = vadd.f32 %v1169, %v1295
  %v1308 = vadd.f32 %v1170, %v1300
  %v1309 = vadd.f32 %v1171, %v1303
  %1310 = vset.pattern.permute.xlu0 7
  %1311 = vperm.xlu0 %1310, %v319
  %v1312 = vpop.permute.xlu0 %1311
  %1313 = vset.pattern.permute.xlu0 7
  %1314 = vperm.xlu0 %1313, %v320
  %v1315 = vpop.permute.xlu0 %1314
  %1316 = vset.pattern.permute.xlu0 7
  %1317 = vperm.xlu0 %1316, %v321
  %v1318 = vpop.permute.xlu0 %1317
  %1319 = vset.pattern.permute.xlu0 7
  %1320 = vperm.xlu0 %1319, %v322
  %v1321 = vpop.permute.xlu0 %1320
  %vm1322 = vcmp.eq.s32.totalorder %v350, %v1312
  %vm1323 = vcmp.eq.s32.totalorder %v350, %v1315
  %vm1324 = vcmp.eq.s32.totalorder %v350, %v1318
  %vm1325 = vcmp.eq.s32.totalorder %v350, %v1321
  %v1326 = vsel %vm1322, 1.0, 0.0
  %v1327 = vsel %vm1323, 1.0, 0.0
  %v1328 = vsel %vm1324, 1.0, 0.0
  %v1329 = vsel %vm1325, 1.0, 0.0
  %v1330 = vpack.c.bf16 %v1327, %v1326
  %v1331 = vpack.c.bf16 %v1329, %v1328
  %1332 = vmatprep.subr.bf16.mxu0 0
  %1333 = vmatpush1.bf16.msra.mxu0 %v341
  %1334 = vmatprep.subr.bf16.mxu0 0
  %1335 = vmatpush1.bf16.msra.mxu0 %v342
  %1336 = vmatprep.subr.bf16.mxu0 0
  %1337 = vmatpush1.bf16.msra.mxu0 %v343
  %1338 = vmatprep.subr.bf16.mxu0 0
  %1339 = vmatpush1.bf16.msra.mxu0 %v344
  %1340 = vmatprep.subr.bf16.mxu0 0
  %1341 = vmatpush1.bf16.msra.mxu0 %v345
  %1342 = vmatprep.subr.bf16.mxu0 0
  %1343 = vmatpush1.bf16.msra.mxu0 %v346
  %1344 = vmatprep.subr.bf16.mxu0 0
  %1345 = vmatpush1.bf16.msra.mxu0 %v347
  %1346 = vmatprep.subr.bf16.mxu0 0
  %1347 = vmatpush1.bf16.msra.mxu0 %v348
  %1348 = vmatprep.subr.bf16.mxu0 0
  %1349 = vmatpush1.bf16.msra.mxu0 0
  %1350 = vmatprep.subr.bf16.mxu0 0
  %1351 = vmatpush1.bf16.msra.mxu0 0
  %1352 = vmatprep.subr.bf16.mxu0 0
  %1353 = vmatpush1.bf16.msra.mxu0 0
  %1354 = vmatprep.subr.bf16.mxu0 0
  %1355 = vmatpush1.bf16.msra.mxu0 0
  %1356 = vmatprep.subr.bf16.mxu0 0
  %1357 = vmatpush1.bf16.msra.mxu0 0
  %1358 = vmatprep.subr.bf16.mxu0 0
  %1359 = vmatpush1.bf16.msra.mxu0 0
  %1360 = vmatprep.subr.bf16.mxu0 0
  %1361 = vmatpush1.bf16.msra.mxu0 0
  %1362 = vmatprep.subr.bf16.mxu0 0
  %1363 = vmatpush1.bf16.msra.mxu0 0
  %1364 = vmatprep.mubr.bf16.mxu0 0
  %1365 = vmatmul.mubr.bf16.gmra.mrb[0].mxu0 %v1330
  %v1366 = vpop.f32.mrb[0].mxu0
  %v1367 = vadd.f32 0.0, %v1366
  %v1368 = vpop.f32.mrb[0].mxu0
  %v1369 = vpop.f32.mrb[0].mxu0
  %v1370 = vadd.f32 0.0, %v1369
  %v1371 = vpop.f32.mrb[0].mxu0
  %1372 = vmatprep.mubr.bf16.mxu0 0
  %1373 = vmatmul.mubr.bf16.gmra.mrb[0].mxu0 %v1331
  %v1374 = vpop.f32.mrb[0].mxu0
  %v1375 = vadd.f32 0.0, %v1374
  %v1376 = vpop.f32.mrb[0].mxu0
  %v1377 = vpop.f32.mrb[0].mxu0
  %v1378 = vadd.f32 0.0, %v1377
  %v1379 = vpop.f32.mrb[0].mxu0
  %1380 = vdwg.mxu0
  %v1381 = vpack.c.bf16 %v1370, %v1367
  %v1382 = vpack.c.bf16 %v1378, %v1375
  %v1385 = vunpack.c.l.b16 %v337
  %v1386 = vunpack.c.l.b16 %v338
  %v1387 = vpack.c.b16 %v1386, %v1385
  %v1390 = vsel %vm503, %v1381, 0
  %v1393 = vsel %vm503, %v1382, 0
  %1395 = vmatprep.subr.bf16.mxu0 0
  %1396 = vmatpush1.bf16.msra.mxu0 %v1387
  %1397 = vmatprep.subr.bf16.mxu0 0
  %1398 = vmatpush1.bf16.msra.mxu0 0
  %1399 = vmatprep.subr.bf16.mxu0 0
  %1400 = vmatpush1.bf16.msra.mxu0 0
  %1401 = vmatprep.subr.bf16.mxu0 0
  %1402 = vmatpush1.bf16.msra.mxu0 0
  %1403 = vmatprep.subr.bf16.mxu0 0
  %1404 = vmatpush1.bf16.msra.mxu0 0
  %1405 = vmatprep.subr.bf16.mxu0 0
  %1406 = vmatpush1.bf16.msra.mxu0 0
  %1407 = vmatprep.subr.bf16.mxu0 0
  %1408 = vmatpush1.bf16.msra.mxu0 0
  %1409 = vmatprep.subr.bf16.mxu0 0
  %1410 = vmatpush1.bf16.msra.mxu0 0
  %1411 = vmatprep.subr.bf16.mxu0 0
  %1412 = vmatpush1.bf16.msra.mxu0 0
  %1413 = vmatprep.subr.bf16.mxu0 0
  %1414 = vmatpush1.bf16.msra.mxu0 0
  %1415 = vmatprep.subr.bf16.mxu0 0
  %1416 = vmatpush1.bf16.msra.mxu0 0
  %1417 = vmatprep.subr.bf16.mxu0 0
  %1418 = vmatpush1.bf16.msra.mxu0 0
  %1419 = vmatprep.subr.bf16.mxu0 0
  %1420 = vmatpush1.bf16.msra.mxu0 0
  %1421 = vmatprep.subr.bf16.mxu0 0
  %1422 = vmatpush1.bf16.msra.mxu0 0
  %1423 = vmatprep.subr.bf16.mxu0 0
  %1424 = vmatpush1.bf16.msra.mxu0 0
  %1425 = vmatprep.subr.bf16.mxu0 0
  %1426 = vmatpush1.bf16.msra.mxu0 0
  %1427 = vmatprep.mubr.bf16.mxu0 0
  %1428 = vmatmul.mubr.bf16.gmra.mrb[0].mxu0 %v1390
  %v1429 = vpop.f32.mrb[0].mxu0
  %v1430 = vadd.f32 0.0, %v1429
  %v1431 = vpop.f32.mrb[0].mxu0
  %v1432 = vpop.f32.mrb[0].mxu0
  %v1433 = vadd.f32 0.0, %v1432
  %v1434 = vpop.f32.mrb[0].mxu0
  %1435 = vmatprep.mubr.bf16.mxu0 0
  %1436 = vmatmul.mubr.bf16.gmra.mrb[0].mxu0 %v1393
  %v1437 = vpop.f32.mrb[0].mxu0
  %v1438 = vadd.f32 0.0, %v1437
  %v1439 = vpop.f32.mrb[0].mxu0
  %v1440 = vpop.f32.mrb[0].mxu0
  %v1441 = vadd.f32 0.0, %v1440
  %v1442 = vpop.f32.mrb[0].mxu0
  %1443 = vdwg.mxu0
  %v1444 = vadd.f32 %v1306, %v1430
  %v1445 = vadd.f32 %v1307, %v1433
  %v1446 = vadd.f32 %v1308, %v1438
  %v1447 = vadd.f32 %v1309, %v1441
  %1448 = vset.pattern.permute.xlu0 8
  %1449 = vperm.xlu0 %1448, %v319
  %v1450 = vpop.permute.xlu0 %1449
  %1451 = vset.pattern.permute.xlu0 8
  %1452 = vperm.xlu0 %1451, %v320
  %v1453 = vpop.permute.xlu0 %1452
  %1454 = vset.pattern.permute.xlu0 8
  %1455 = vperm.xlu0 %1454, %v321
  %v1456 = vpop.permute.xlu0 %1455
  %1457 = vset.pattern.permute.xlu0 8
  %1458 = vperm.xlu0 %1457, %v322
  %v1459 = vpop.permute.xlu0 %1458
  %vm1460 = vcmp.eq.s32.totalorder %v350, %v1450
  %vm1461 = vcmp.eq.s32.totalorder %v350, %v1453
  %vm1462 = vcmp.eq.s32.totalorder %v350, %v1456
  %vm1463 = vcmp.eq.s32.totalorder %v350, %v1459
  %v1464 = vsel %vm1460, 1.0, 0.0
  %v1465 = vsel %vm1461, 1.0, 0.0
  %v1466 = vsel %vm1462, 1.0, 0.0
  %v1467 = vsel %vm1463, 1.0, 0.0
  %v1468 = vpack.c.bf16 %v1465, %v1464
  %v1469 = vpack.c.bf16 %v1467, %v1466
  %1470 = vmatprep.subr.bf16.mxu0 0
  %1471 = vmatpush1.bf16.msra.mxu0 %v341
  %1472 = vmatprep.subr.bf16.mxu0 0
  %1473 = vmatpush1.bf16.msra.mxu0 %v342
  %1474 = vmatprep.subr.bf16.mxu0 0
  %1475 = vmatpush1.bf16.msra.mxu0 %v343
  %1476 = vmatprep.subr.bf16.mxu0 0
  %1477 = vmatpush1.bf16.msra.mxu0 %v344
  %1478 = vmatprep.subr.bf16.mxu0 0
  %1479 = vmatpush1.bf16.msra.mxu0 %v345
  %1480 = vmatprep.subr.bf16.mxu0 0
  %1481 = vmatpush1.bf16.msra.mxu0 %v346
  %1482 = vmatprep.subr.bf16.mxu0 0
  %1483 = vmatpush1.bf16.msra.mxu0 %v347
  %1484 = vmatprep.subr.bf16.mxu0 0
  %1485 = vmatpush1.bf16.msra.mxu0 %v348
  %1486 = vmatprep.subr.bf16.mxu0 0
  %1487 = vmatpush1.bf16.msra.mxu0 0
  %1488 = vmatprep.subr.bf16.mxu0 0
  %1489 = vmatpush1.bf16.msra.mxu0 0
  %1490 = vmatprep.subr.bf16.mxu0 0
  %1491 = vmatpush1.bf16.msra.mxu0 0
  %1492 = vmatprep.subr.bf16.mxu0 0
  %1493 = vmatpush1.bf16.msra.mxu0 0
  %1494 = vmatprep.subr.bf16.mxu0 0
  %1495 = vmatpush1.bf16.msra.mxu0 0
  %1496 = vmatprep.subr.bf16.mxu0 0
  %1497 = vmatpush1.bf16.msra.mxu0 0
  %1498 = vmatprep.subr.bf16.mxu0 0
  %1499 = vmatpush1.bf16.msra.mxu0 0
  %1500 = vmatprep.subr.bf16.mxu0 0
  %1501 = vmatpush1.bf16.msra.mxu0 0
  %1502 = vmatprep.mubr.bf16.mxu0 0
  %1503 = vmatmul.mubr.bf16.gmra.mrb[0].mxu0 %v1468
  %v1504 = vpop.f32.mrb[0].mxu0
  %v1505 = vadd.f32 0.0, %v1504
  %v1506 = vpop.f32.mrb[0].mxu0
  %v1507 = vpop.f32.mrb[0].mxu0
  %v1508 = vadd.f32 0.0, %v1507
  %v1509 = vpop.f32.mrb[0].mxu0
  %1510 = vmatprep.mubr.bf16.mxu0 0
  %1511 = vmatmul.mubr.bf16.gmra.mrb[0].mxu0 %v1469
  %v1512 = vpop.f32.mrb[0].mxu0
  %v1513 = vadd.f32 0.0, %v1512
  %v1514 = vpop.f32.mrb[0].mxu0
  %v1515 = vpop.f32.mrb[0].mxu0
  %v1516 = vadd.f32 0.0, %v1515
  %v1517 = vpop.f32.mrb[0].mxu0
  %1518 = vdwg.mxu0
  %v1519 = vpack.c.bf16 %v1508, %v1505
  %v1520 = vpack.c.bf16 %v1516, %v1513
  %v1523 = vunpack.c.l.b16 %v339
  %v1524 = vunpack.c.l.b16 %v340
  %v1525 = vpack.c.b16 %v1524, %v1523
  %v1528 = vsel %vm503, %v1519, 0
  %v1531 = vsel %vm503, %v1520, 0
  %1533 = vmatprep.subr.bf16.mxu0 0
  %1534 = vmatpush1.bf16.msra.mxu0 %v1525
  %1535 = vmatprep.subr.bf16.mxu0 0
  %1536 = vmatpush1.bf16.msra.mxu0 0
  %1537 = vmatprep.subr.bf16.mxu0 0
  %1538 = vmatpush1.bf16.msra.mxu0 0
  %1539 = vmatprep.subr.bf16.mxu0 0
  %1540 = vmatpush1.bf16.msra.mxu0 0
  %1541 = vmatprep.subr.bf16.mxu0 0
  %1542 = vmatpush1.bf16.msra.mxu0 0
  %1543 = vmatprep.subr.bf16.mxu0 0
  %1544 = vmatpush1.bf16.msra.mxu0 0
  %1545 = vmatprep.subr.bf16.mxu0 0
  %1546 = vmatpush1.bf16.msra.mxu0 0
  %1547 = vmatprep.subr.bf16.mxu0 0
  %1548 = vmatpush1.bf16.msra.mxu0 0
  %1549 = vmatprep.subr.bf16.mxu0 0
  %1550 = vmatpush1.bf16.msra.mxu0 0
  %1551 = vmatprep.subr.bf16.mxu0 0
  %1552 = vmatpush1.bf16.msra.mxu0 0
  %1553 = vmatprep.subr.bf16.mxu0 0
  %1554 = vmatpush1.bf16.msra.mxu0 0
  %1555 = vmatprep.subr.bf16.mxu0 0
  %1556 = vmatpush1.bf16.msra.mxu0 0
  %1557 = vmatprep.subr.bf16.mxu0 0
  %1558 = vmatpush1.bf16.msra.mxu0 0
  %1559 = vmatprep.subr.bf16.mxu0 0
  %1560 = vmatpush1.bf16.msra.mxu0 0
  %1561 = vmatprep.subr.bf16.mxu0 0
  %1562 = vmatpush1.bf16.msra.mxu0 0
  %1563 = vmatprep.subr.bf16.mxu0 0
  %1564 = vmatpush1.bf16.msra.mxu0 0
  %1565 = vmatprep.mubr.bf16.mxu0 0
  %1566 = vmatmul.mubr.bf16.gmra.mrb[0].mxu0 %v1528
  %v1567 = vpop.f32.mrb[0].mxu0
  %v1568 = vadd.f32 0.0, %v1567
  %v1569 = vpop.f32.mrb[0].mxu0
  %v1570 = vpop.f32.mrb[0].mxu0
  %v1571 = vadd.f32 0.0, %v1570
  %v1572 = vpop.f32.mrb[0].mxu0
  %1573 = vmatprep.mubr.bf16.mxu0 0
  %1574 = vmatmul.mubr.bf16.gmra.mrb[0].mxu0 %v1531
  %v1575 = vpop.f32.mrb[0].mxu0
  %v1576 = vadd.f32 0.0, %v1575
  %v1577 = vpop.f32.mrb[0].mxu0
  %v1578 = vpop.f32.mrb[0].mxu0
  %v1579 = vadd.f32 0.0, %v1578
  %v1580 = vpop.f32.mrb[0].mxu0
  %1581 = vdwg.mxu0
  %v1582 = vadd.f32 %v1444, %v1568
  %v1583 = vadd.f32 %v1445, %v1571
  %v1584 = vadd.f32 %v1446, %v1576
  %v1585 = vadd.f32 %v1447, %v1579
  %v1586 = vld [vmem:[%s5] sm:$0x1]
  %v1587 = vld [vmem:[%s6] sm:$0x1]
  %vm1588 = vcmask 261120
  %v1589 = vsel %vm1588, %v1582, 0.0
  %v1590 = vsel %vm1588, %v1583, 0.0
  %v1591 = vadd.f32 %v1589, %v1590
  %v1592 = vsel %vm1588, %v1584, 0.0
  %v1593 = vadd.f32 %v1591, %v1592
  %v1594 = vsel %vm1588, %v1585, 0.0
  %v1595 = vadd.f32 %v1593, %v1594
  %v1596 = vrot.slane %v1595, 4
  %v1597 = vadd.f32 %v1595, %v1596
  %v1598 = vrot.slane %v1597, 2
  %v1599 = vadd.f32 %v1597, %v1598
  %v1600 = vrot.slane %v1599, 1
  %v1601 = vadd.f32 %v1599, %v1600
  %v1602 = vrcp.pop 32.0
  %v1603 = vmul.f32 %v1601, %v1602
  %v1604 = vsub.f32 %v1582, %v1603
  %v1605 = vsub.f32 %v1583, %v1603
  %v1606 = vsub.f32 %v1584, %v1603
  %v1607 = vsub.f32 %v1585, %v1603
  %v1608 = vmul.f32 %v1604, %v1604
  %v1609 = vmul.f32 %v1605, %v1605
  %v1610 = vmul.f32 %v1606, %v1606
  %v1611 = vmul.f32 %v1607, %v1607
  %v1612 = vsel %vm1588, %v1608, 0.0
  %v1613 = vsel %vm1588, %v1609, 0.0
  %v1614 = vadd.f32 %v1612, %v1613
  %v1615 = vsel %vm1588, %v1610, 0.0
  %v1616 = vadd.f32 %v1614, %v1615
  %v1617 = vsel %vm1588, %v1611, 0.0
  %v1618 = vadd.f32 %v1616, %v1617
  %v1619 = vrot.slane %v1618, 4
  %v1620 = vadd.f32 %v1618, %v1619
  %v1621 = vrot.slane %v1620, 2
  %v1622 = vadd.f32 %v1620, %v1621
  %v1623 = vrot.slane %v1622, 1
  %v1624 = vadd.f32 %v1622, %v1623
  %v1625 = vmul.f32 %v1624, %v1602
  %v1626 = vadd.f32 %v1625, 1e-05
  %v1627 = vrsqrt.pop %v1626
  %v1628 = vmul.f32 %v1604, %v1627
  %v1629 = vmul.f32 %v1605, %v1627
  %v1630 = vmul.f32 %v1606, %v1627
  %v1631 = vmul.f32 %v1607, %v1627
  %v1633 = vlaneseq
  %v1634 = vshrl.u32 %v1633, 7
  %v1635 = vsub.s32 0, %v1634
  %v1636 = vrot.slane %v1586, %v1635
  %v1638 = vmul.f32 %v1628, %v1636
  %v1639 = vmul.f32 %v1629, %v1636
  %v1640 = vmul.f32 %v1630, %v1636
  %v1641 = vmul.f32 %v1631, %v1636
  %v1643 = vlaneseq
  %v1644 = vshrl.u32 %v1643, 7
  %v1645 = vsub.s32 0, %v1644
  %v1646 = vrot.slane %v1587, %v1645
  %v1648 = vadd.f32 %v1638, %v1646
  %v1649 = vadd.f32 %v1639, %v1646
  %v1650 = vadd.f32 %v1640, %v1646
  %v1651 = vadd.f32 %v1641, %v1646
  %vm1652 = vcmp.gt.f32.partialorder %v1648, 0.0
  %vm1653 = vcmp.gt.f32.partialorder %v1649, 0.0
  %vm1654 = vcmp.gt.f32.partialorder %v1650, 0.0
  %vm1655 = vcmp.gt.f32.partialorder %v1651, 0.0
  %v1656 = vmul.f32 %v1648, 0.2
  %v1657 = vmul.f32 %v1649, 0.2
  %v1658 = vmul.f32 %v1650, 0.2
  %v1659 = vmul.f32 %v1651, 0.2
  %v1660 = vsel %vm1652, %v1648, %v1656
  %v1661 = vsel %vm1653, %v1649, %v1657
  %v1662 = vsel %vm1654, %v1650, %v1658
  %v1663 = vsel %vm1655, %v1651, %v1659
  %v1664 = vld [vmem:[%s7] sm:$0xff]
  %v1665 = vld [vmem:[%s8] sm:$0xf]
  %v1666 = vld [vmem:[%s8 + $0x4] sm:$0xf]
  %v1667 = vld [vmem:[%s8 + $0x8] sm:$0xf]
  %v1668 = vld [vmem:[%s8 + $0xc] sm:$0xf]
  %v1669 = vld [vmem:[%s8 + $0x10] sm:$0xf]
  %v1670 = vld [vmem:[%s8 + $0x14] sm:$0xf]
  %v1671 = vld [vmem:[%s8 + $0x18] sm:$0xf]
  %v1672 = vld [vmem:[%s8 + $0x1c] sm:$0xf]
  %v1673 = vld [vmem:[%s8 + $0x20] sm:$0xf]
  %v1674 = vld [vmem:[%s8 + $0x24] sm:$0xf]
  %v1675 = vld [vmem:[%s8 + $0x28] sm:$0xf]
  %v1676 = vld [vmem:[%s8 + $0x2c] sm:$0xf]
  %v1677 = vld [vmem:[%s8 + $0x30] sm:$0xf]
  %v1678 = vld [vmem:[%s8 + $0x34] sm:$0xf]
  %v1679 = vld [vmem:[%s8 + $0x38] sm:$0xf]
  %v1680 = vld [vmem:[%s8 + $0x3c] sm:$0xf]
  %v1681 = vld [vmem:[%s8 + $0x40] sm:$0xf]
  %v1682 = vld [vmem:[%s8 + $0x44] sm:$0xf]
  %v1683 = vld [vmem:[%s8 + $0x48] sm:$0xf]
  %v1684 = vld [vmem:[%s8 + $0x4c] sm:$0xf]
  %v1685 = vld [vmem:[%s8 + $0x50] sm:$0xf]
  %v1686 = vld [vmem:[%s8 + $0x54] sm:$0xf]
  %v1687 = vld [vmem:[%s8 + $0x58] sm:$0xf]
  %v1688 = vld [vmem:[%s8 + $0x5c] sm:$0xf]
  %v1689 = vld [vmem:[%s8 + $0x60] sm:$0xf]
  %v1690 = vld [vmem:[%s8 + $0x64] sm:$0xf]
  %v1691 = vld [vmem:[%s8 + $0x68] sm:$0xf]
  %v1692 = vld [vmem:[%s8 + $0x6c] sm:$0xf]
  %v1693 = vld [vmem:[%s8 + $0x70] sm:$0xf]
  %v1694 = vld [vmem:[%s8 + $0x74] sm:$0xf]
  %v1695 = vld [vmem:[%s8 + $0x78] sm:$0xf]
  %v1696 = vld [vmem:[%s8 + $0x7c] sm:$0xf]
  %v1697 = vld [vmem:[%s8 + $0x80] sm:$0xf]
  %v1698 = vld [vmem:[%s8 + $0x84] sm:$0xf]
  %v1699 = vld [vmem:[%s8 + $0x88] sm:$0xf]
  %v1700 = vld [vmem:[%s8 + $0x8c] sm:$0xf]
  %v1701 = vpack.c.bf16 %v1661, %v1660
  %v1702 = vpack.c.bf16 %v1663, %v1662
  %1703 = vset.pattern.permute.xlu0 0
  %1704 = vperm.xlu0 %1703, %v1664
  %v1705 = vpop.permute.xlu0 %1704
  %vm1706 = vcmp.eq.s32.totalorder %v350, %v1705
  %v1707 = vsel %vm1706, 1.0, 0.0
  %v1708 = vpack.c.bf16 %v1707, %v1707
  %v1710 = vsel %vm1588, %v1708, 0
  %1712 = vmatprep.subr.bf16.mxu0 0
  %1713 = vmatpush1.bf16.msra.mxu0 %v1701
  %1714 = vmatprep.subr.bf16.mxu0 0
  %1715 = vmatpush1.bf16.msra.mxu0 %v1702
  %1716 = vmatprep.subr.bf16.mxu0 0
  %1717 = vmatpush1.bf16.msra.mxu0 0
  %1718 = vmatprep.subr.bf16.mxu0 0
  %1719 = vmatpush1.bf16.msra.mxu0 0
  %1720 = vmatprep.subr.bf16.mxu0 0
  %1721 = vmatpush1.bf16.msra.mxu0 0
  %1722 = vmatprep.subr.bf16.mxu0 0
  %1723 = vmatpush1.bf16.msra.mxu0 0
  %1724 = vmatprep.subr.bf16.mxu0 0
  %1725 = vmatpush1.bf16.msra.mxu0 0
  %1726 = vmatprep.subr.bf16.mxu0 0
  %1727 = vmatpush1.bf16.msra.mxu0 0
  %1728 = vmatprep.subr.bf16.mxu0 0
  %1729 = vmatpush1.bf16.msra.mxu0 0
  %1730 = vmatprep.subr.bf16.mxu0 0
  %1731 = vmatpush1.bf16.msra.mxu0 0
  %1732 = vmatprep.subr.bf16.mxu0 0
  %1733 = vmatpush1.bf16.msra.mxu0 0
  %1734 = vmatprep.subr.bf16.mxu0 0
  %1735 = vmatpush1.bf16.msra.mxu0 0
  %1736 = vmatprep.subr.bf16.mxu0 0
  %1737 = vmatpush1.bf16.msra.mxu0 0
  %1738 = vmatprep.subr.bf16.mxu0 0
  %1739 = vmatpush1.bf16.msra.mxu0 0
  %1740 = vmatprep.subr.bf16.mxu0 0
  %1741 = vmatpush1.bf16.msra.mxu0 0
  %1742 = vmatprep.subr.bf16.mxu0 0
  %1743 = vmatpush1.bf16.msra.mxu0 0
  %1744 = vmatprep.mubr.bf16.mxu0 0
  %1745 = vmatmul.mubr.bf16.gmra.mrb[0].mxu0 %v1710
  %v1746 = vpop.f32.mrb[0].mxu0
  %v1747 = vadd.f32 0.0, %v1746
  %v1748 = vpop.f32.mrb[0].mxu0
  %v1749 = vpop.f32.mrb[0].mxu0
  %v1750 = vpop.f32.mrb[0].mxu0
  %1751 = vdwg.mxu0
  %v1752 = vpack.c.bf16 %v1747, %v1747
  %1753 = vset.pattern.permute.xlu0 1
  %1754 = vperm.xlu0 %1753, %v1664
  %v1755 = vpop.permute.xlu0 %1754
  %vm1756 = vcmp.eq.s32.totalorder %v350, %v1755
  %v1757 = vsel %vm1756, 1.0, 0.0
  %v1758 = vpack.c.bf16 %v1757, %v1757
  %v1760 = vsel %vm1588, %v1758, 0
  %1762 = vmatprep.subr.bf16.mxu0 0
  %1763 = vmatpush1.bf16.msra.mxu0 %v1701
  %1764 = vmatprep.subr.bf16.mxu0 0
  %1765 = vmatpush1.bf16.msra.mxu0 %v1702
  %1766 = vmatprep.subr.bf16.mxu0 0
  %1767 = vmatpush1.bf16.msra.mxu0 0
  %1768 = vmatprep.subr.bf16.mxu0 0
  %1769 = vmatpush1.bf16.msra.mxu0 0
  %1770 = vmatprep.subr.bf16.mxu0 0
  %1771 = vmatpush1.bf16.msra.mxu0 0
  %1772 = vmatprep.subr.bf16.mxu0 0
  %1773 = vmatpush1.bf16.msra.mxu0 0
  %1774 = vmatprep.subr.bf16.mxu0 0
  %1775 = vmatpush1.bf16.msra.mxu0 0
  %1776 = vmatprep.subr.bf16.mxu0 0
  %1777 = vmatpush1.bf16.msra.mxu0 0
  %1778 = vmatprep.subr.bf16.mxu0 0
  %1779 = vmatpush1.bf16.msra.mxu0 0
  %1780 = vmatprep.subr.bf16.mxu0 0
  %1781 = vmatpush1.bf16.msra.mxu0 0
  %1782 = vmatprep.subr.bf16.mxu0 0
  %1783 = vmatpush1.bf16.msra.mxu0 0
  %1784 = vmatprep.subr.bf16.mxu0 0
  %1785 = vmatpush1.bf16.msra.mxu0 0
  %1786 = vmatprep.subr.bf16.mxu0 0
  %1787 = vmatpush1.bf16.msra.mxu0 0
  %1788 = vmatprep.subr.bf16.mxu0 0
  %1789 = vmatpush1.bf16.msra.mxu0 0
  %1790 = vmatprep.subr.bf16.mxu0 0
  %1791 = vmatpush1.bf16.msra.mxu0 0
  %1792 = vmatprep.subr.bf16.mxu0 0
  %1793 = vmatpush1.bf16.msra.mxu0 0
  %1794 = vmatprep.mubr.bf16.mxu0 0
  %1795 = vmatmul.mubr.bf16.gmra.mrb[0].mxu0 %v1760
  %v1796 = vpop.f32.mrb[0].mxu0
  %v1797 = vadd.f32 0.0, %v1796
  %v1798 = vpop.f32.mrb[0].mxu0
  %v1799 = vpop.f32.mrb[0].mxu0
  %v1800 = vpop.f32.mrb[0].mxu0
  %1801 = vdwg.mxu0
  %v1802 = vpack.c.bf16 %v1797, %v1797
  %v1807 = vunpack.c.l.b16 %v1669
  %v1808 = vunpack.c.l.b16 %v1670
  %v1809 = vunpack.c.l.b16 %v1671
  %v1810 = vunpack.c.l.b16 %v1672
  %v1811 = vpack.c.b16 %v1808, %v1807
  %v1812 = vpack.c.b16 %v1810, %v1809
  %v1816 = vsel %vm1588, %v1802, 0
  %1818 = vmatprep.subr.bf16.mxu0 0
  %1819 = vmatpush1.bf16.msra.mxu0 %v1811
  %1820 = vmatprep.subr.bf16.mxu0 0
  %1821 = vmatpush1.bf16.msra.mxu0 %v1812
  %1822 = vmatprep.subr.bf16.mxu0 0
  %1823 = vmatpush1.bf16.msra.mxu0 0
  %1824 = vmatprep.subr.bf16.mxu0 0
  %1825 = vmatpush1.bf16.msra.mxu0 0
  %1826 = vmatprep.subr.bf16.mxu0 0
  %1827 = vmatpush1.bf16.msra.mxu0 0
  %1828 = vmatprep.subr.bf16.mxu0 0
  %1829 = vmatpush1.bf16.msra.mxu0 0
  %1830 = vmatprep.subr.bf16.mxu0 0
  %1831 = vmatpush1.bf16.msra.mxu0 0
  %1832 = vmatprep.subr.bf16.mxu0 0
  %1833 = vmatpush1.bf16.msra.mxu0 0
  %1834 = vmatprep.subr.bf16.mxu0 0
  %1835 = vmatpush1.bf16.msra.mxu0 0
  %1836 = vmatprep.subr.bf16.mxu0 0
  %1837 = vmatpush1.bf16.msra.mxu0 0
  %1838 = vmatprep.subr.bf16.mxu0 0
  %1839 = vmatpush1.bf16.msra.mxu0 0
  %1840 = vmatprep.subr.bf16.mxu0 0
  %1841 = vmatpush1.bf16.msra.mxu0 0
  %1842 = vmatprep.subr.bf16.mxu0 0
  %1843 = vmatpush1.bf16.msra.mxu0 0
  %1844 = vmatprep.subr.bf16.mxu0 0
  %1845 = vmatpush1.bf16.msra.mxu0 0
  %1846 = vmatprep.subr.bf16.mxu0 0
  %1847 = vmatpush1.bf16.msra.mxu0 0
  %1848 = vmatprep.subr.bf16.mxu0 0
  %1849 = vmatpush1.bf16.msra.mxu0 0
  %1850 = vmatprep.mubr.bf16.mxu0 0
  %1851 = vmatmul.mubr.bf16.gmra.mrb[0].mxu0 %v1816
  %v1852 = vpop.f32.mrb[0].mxu0
  %v1853 = vadd.f32 0.0, %v1852
  %v1854 = vpop.f32.mrb[0].mxu0
  %v1855 = vpop.f32.mrb[0].mxu0
  %v1856 = vpop.f32.mrb[0].mxu0
  %1857 = vdwg.mxu0
  %v1862 = vunpack.c.l.b16 %v1665
  %v1863 = vunpack.c.l.b16 %v1666
  %v1864 = vunpack.c.l.b16 %v1667
  %v1865 = vunpack.c.l.b16 %v1668
  %v1866 = vpack.c.b16 %v1863, %v1862
  %v1867 = vpack.c.b16 %v1865, %v1864
  %v1871 = vsel %vm1588, %v1752, 0
  %1873 = vmatprep.subr.bf16.mxu0 0
  %1874 = vmatpush1.bf16.msra.mxu0 %v1866
  %1875 = vmatprep.subr.bf16.mxu0 0
  %1876 = vmatpush1.bf16.msra.mxu0 %v1867
  %1877 = vmatprep.subr.bf16.mxu0 0
  %1878 = vmatpush1.bf16.msra.mxu0 0
  %1879 = vmatprep.subr.bf16.mxu0 0
  %1880 = vmatpush1.bf16.msra.mxu0 0
  %1881 = vmatprep.subr.bf16.mxu0 0
  %1882 = vmatpush1.bf16.msra.mxu0 0
  %1883 = vmatprep.subr.bf16.mxu0 0
  %1884 = vmatpush1.bf16.msra.mxu0 0
  %1885 = vmatprep.subr.bf16.mxu0 0
  %1886 = vmatpush1.bf16.msra.mxu0 0
  %1887 = vmatprep.subr.bf16.mxu0 0
  %1888 = vmatpush1.bf16.msra.mxu0 0
  %1889 = vmatprep.subr.bf16.mxu0 0
  %1890 = vmatpush1.bf16.msra.mxu0 0
  %1891 = vmatprep.subr.bf16.mxu0 0
  %1892 = vmatpush1.bf16.msra.mxu0 0
  %1893 = vmatprep.subr.bf16.mxu0 0
  %1894 = vmatpush1.bf16.msra.mxu0 0
  %1895 = vmatprep.subr.bf16.mxu0 0
  %1896 = vmatpush1.bf16.msra.mxu0 0
  %1897 = vmatprep.subr.bf16.mxu0 0
  %1898 = vmatpush1.bf16.msra.mxu0 0
  %1899 = vmatprep.subr.bf16.mxu0 0
  %1900 = vmatpush1.bf16.msra.mxu0 0
  %1901 = vmatprep.subr.bf16.mxu0 0
  %1902 = vmatpush1.bf16.msra.mxu0 0
  %1903 = vmatprep.subr.bf16.mxu0 0
  %1904 = vmatpush1.bf16.msra.mxu0 0
  %1905 = vmatprep.mubr.bf16.mxu0 0
  %1906 = vmatmul.mubr.bf16.gmra.mrb[0].mxu0 %v1871
  %v1907 = vpop.f32.mrb[0].mxu0
  %v1908 = vadd.f32 %v1853, %v1907
  %v1909 = vpop.f32.mrb[0].mxu0
  %v1910 = vpop.f32.mrb[0].mxu0
  %v1911 = vpop.f32.mrb[0].mxu0
  %1912 = vdwg.mxu0
  %1913 = vset.pattern.permute.xlu0 2
  %1914 = vperm.xlu0 %1913, %v1664
  %v1915 = vpop.permute.xlu0 %1914
  %vm1916 = vcmp.eq.s32.totalorder %v350, %v1915
  %v1917 = vsel %vm1916, 1.0, 0.0
  %v1918 = vpack.c.bf16 %v1917, %v1917
  %v1920 = vsel %vm1588, %v1918, 0
  %1922 = vmatprep.subr.bf16.mxu0 0
  %1923 = vmatpush1.bf16.msra.mxu0 %v1701
  %1924 = vmatprep.subr.bf16.mxu0 0
  %1925 = vmatpush1.bf16.msra.mxu0 %v1702
  %1926 = vmatprep.subr.bf16.mxu0 0
  %1927 = vmatpush1.bf16.msra.mxu0 0
  %1928 = vmatprep.subr.bf16.mxu0 0
  %1929 = vmatpush1.bf16.msra.mxu0 0
  %1930 = vmatprep.subr.bf16.mxu0 0
  %1931 = vmatpush1.bf16.msra.mxu0 0
  %1932 = vmatprep.subr.bf16.mxu0 0
  %1933 = vmatpush1.bf16.msra.mxu0 0
  %1934 = vmatprep.subr.bf16.mxu0 0
  %1935 = vmatpush1.bf16.msra.mxu0 0
  %1936 = vmatprep.subr.bf16.mxu0 0
  %1937 = vmatpush1.bf16.msra.mxu0 0
  %1938 = vmatprep.subr.bf16.mxu0 0
  %1939 = vmatpush1.bf16.msra.mxu0 0
  %1940 = vmatprep.subr.bf16.mxu0 0
  %1941 = vmatpush1.bf16.msra.mxu0 0
  %1942 = vmatprep.subr.bf16.mxu0 0
  %1943 = vmatpush1.bf16.msra.mxu0 0
  %1944 = vmatprep.subr.bf16.mxu0 0
  %1945 = vmatpush1.bf16.msra.mxu0 0
  %1946 = vmatprep.subr.bf16.mxu0 0
  %1947 = vmatpush1.bf16.msra.mxu0 0
  %1948 = vmatprep.subr.bf16.mxu0 0
  %1949 = vmatpush1.bf16.msra.mxu0 0
  %1950 = vmatprep.subr.bf16.mxu0 0
  %1951 = vmatpush1.bf16.msra.mxu0 0
  %1952 = vmatprep.subr.bf16.mxu0 0
  %1953 = vmatpush1.bf16.msra.mxu0 0
  %1954 = vmatprep.mubr.bf16.mxu0 0
  %1955 = vmatmul.mubr.bf16.gmra.mrb[0].mxu0 %v1920
  %v1956 = vpop.f32.mrb[0].mxu0
  %v1957 = vadd.f32 0.0, %v1956
  %v1958 = vpop.f32.mrb[0].mxu0
  %v1959 = vpop.f32.mrb[0].mxu0
  %v1960 = vpop.f32.mrb[0].mxu0
  %1961 = vdwg.mxu0
  %v1962 = vpack.c.bf16 %v1957, %v1957
  %v1967 = vunpack.c.l.b16 %v1673
  %v1968 = vunpack.c.l.b16 %v1674
  %v1969 = vunpack.c.l.b16 %v1675
  %v1970 = vunpack.c.l.b16 %v1676
  %v1971 = vpack.c.b16 %v1968, %v1967
  %v1972 = vpack.c.b16 %v1970, %v1969
  %v1976 = vsel %vm1588, %v1962, 0
  %1978 = vmatprep.subr.bf16.mxu0 0
  %1979 = vmatpush1.bf16.msra.mxu0 %v1971
  %1980 = vmatprep.subr.bf16.mxu0 0
  %1981 = vmatpush1.bf16.msra.mxu0 %v1972
  %1982 = vmatprep.subr.bf16.mxu0 0
  %1983 = vmatpush1.bf16.msra.mxu0 0
  %1984 = vmatprep.subr.bf16.mxu0 0
  %1985 = vmatpush1.bf16.msra.mxu0 0
  %1986 = vmatprep.subr.bf16.mxu0 0
  %1987 = vmatpush1.bf16.msra.mxu0 0
  %1988 = vmatprep.subr.bf16.mxu0 0
  %1989 = vmatpush1.bf16.msra.mxu0 0
  %1990 = vmatprep.subr.bf16.mxu0 0
  %1991 = vmatpush1.bf16.msra.mxu0 0
  %1992 = vmatprep.subr.bf16.mxu0 0
  %1993 = vmatpush1.bf16.msra.mxu0 0
  %1994 = vmatprep.subr.bf16.mxu0 0
  %1995 = vmatpush1.bf16.msra.mxu0 0
  %1996 = vmatprep.subr.bf16.mxu0 0
  %1997 = vmatpush1.bf16.msra.mxu0 0
  %1998 = vmatprep.subr.bf16.mxu0 0
  %1999 = vmatpush1.bf16.msra.mxu0 0
  %2000 = vmatprep.subr.bf16.mxu0 0
  %2001 = vmatpush1.bf16.msra.mxu0 0
  %2002 = vmatprep.subr.bf16.mxu0 0
  %2003 = vmatpush1.bf16.msra.mxu0 0
  %2004 = vmatprep.subr.bf16.mxu0 0
  %2005 = vmatpush1.bf16.msra.mxu0 0
  %2006 = vmatprep.subr.bf16.mxu0 0
  %2007 = vmatpush1.bf16.msra.mxu0 0
  %2008 = vmatprep.subr.bf16.mxu0 0
  %2009 = vmatpush1.bf16.msra.mxu0 0
  %2010 = vmatprep.mubr.bf16.mxu0 0
  %2011 = vmatmul.mubr.bf16.gmra.mrb[0].mxu0 %v1976
  %v2012 = vpop.f32.mrb[0].mxu0
  %v2013 = vadd.f32 0.0, %v2012
  %v2014 = vpop.f32.mrb[0].mxu0
  %v2015 = vpop.f32.mrb[0].mxu0
  %v2016 = vpop.f32.mrb[0].mxu0
  %2017 = vdwg.mxu0
  %v2018 = vadd.f32 %v1908, %v2013
  %2019 = vset.pattern.permute.xlu0 3
  %2020 = vperm.xlu0 %2019, %v1664
  %v2021 = vpop.permute.xlu0 %2020
  %vm2022 = vcmp.eq.s32.totalorder %v350, %v2021
  %v2023 = vsel %vm2022, 1.0, 0.0
  %v2024 = vpack.c.bf16 %v2023, %v2023
  %v2026 = vsel %vm1588, %v2024, 0
  %2028 = vmatprep.subr.bf16.mxu0 0
  %2029 = vmatpush1.bf16.msra.mxu0 %v1701
  %2030 = vmatprep.subr.bf16.mxu0 0
  %2031 = vmatpush1.bf16.msra.mxu0 %v1702
  %2032 = vmatprep.subr.bf16.mxu0 0
  %2033 = vmatpush1.bf16.msra.mxu0 0
  %2034 = vmatprep.subr.bf16.mxu0 0
  %2035 = vmatpush1.bf16.msra.mxu0 0
  %2036 = vmatprep.subr.bf16.mxu0 0
  %2037 = vmatpush1.bf16.msra.mxu0 0
  %2038 = vmatprep.subr.bf16.mxu0 0
  %2039 = vmatpush1.bf16.msra.mxu0 0
  %2040 = vmatprep.subr.bf16.mxu0 0
  %2041 = vmatpush1.bf16.msra.mxu0 0
  %2042 = vmatprep.subr.bf16.mxu0 0
  %2043 = vmatpush1.bf16.msra.mxu0 0
  %2044 = vmatprep.subr.bf16.mxu0 0
  %2045 = vmatpush1.bf16.msra.mxu0 0
  %2046 = vmatprep.subr.bf16.mxu0 0
  %2047 = vmatpush1.bf16.msra.mxu0 0
  %2048 = vmatprep.subr.bf16.mxu0 0
  %2049 = vmatpush1.bf16.msra.mxu0 0
  %2050 = vmatprep.subr.bf16.mxu0 0
  %2051 = vmatpush1.bf16.msra.mxu0 0
  %2052 = vmatprep.subr.bf16.mxu0 0
  %2053 = vmatpush1.bf16.msra.mxu0 0
  %2054 = vmatprep.subr.bf16.mxu0 0
  %2055 = vmatpush1.bf16.msra.mxu0 0
  %2056 = vmatprep.subr.bf16.mxu0 0
  %2057 = vmatpush1.bf16.msra.mxu0 0
  %2058 = vmatprep.subr.bf16.mxu0 0
  %2059 = vmatpush1.bf16.msra.mxu0 0
  %2060 = vmatprep.mubr.bf16.mxu0 0
  %2061 = vmatmul.mubr.bf16.gmra.mrb[0].mxu0 %v2026
  %v2062 = vpop.f32.mrb[0].mxu0
  %v2063 = vadd.f32 0.0, %v2062
  %v2064 = vpop.f32.mrb[0].mxu0
  %v2065 = vpop.f32.mrb[0].mxu0
  %v2066 = vpop.f32.mrb[0].mxu0
  %2067 = vdwg.mxu0
  %v2068 = vpack.c.bf16 %v2063, %v2063
  %v2073 = vunpack.c.l.b16 %v1677
  %v2074 = vunpack.c.l.b16 %v1678
  %v2075 = vunpack.c.l.b16 %v1679
  %v2076 = vunpack.c.l.b16 %v1680
  %v2077 = vpack.c.b16 %v2074, %v2073
  %v2078 = vpack.c.b16 %v2076, %v2075
  %v2082 = vsel %vm1588, %v2068, 0
  %2084 = vmatprep.subr.bf16.mxu0 0
  %2085 = vmatpush1.bf16.msra.mxu0 %v2077
  %2086 = vmatprep.subr.bf16.mxu0 0
  %2087 = vmatpush1.bf16.msra.mxu0 %v2078
  %2088 = vmatprep.subr.bf16.mxu0 0
  %2089 = vmatpush1.bf16.msra.mxu0 0
  %2090 = vmatprep.subr.bf16.mxu0 0
  %2091 = vmatpush1.bf16.msra.mxu0 0
  %2092 = vmatprep.subr.bf16.mxu0 0
  %2093 = vmatpush1.bf16.msra.mxu0 0
  %2094 = vmatprep.subr.bf16.mxu0 0
  %2095 = vmatpush1.bf16.msra.mxu0 0
  %2096 = vmatprep.subr.bf16.mxu0 0
  %2097 = vmatpush1.bf16.msra.mxu0 0
  %2098 = vmatprep.subr.bf16.mxu0 0
  %2099 = vmatpush1.bf16.msra.mxu0 0
  %2100 = vmatprep.subr.bf16.mxu0 0
  %2101 = vmatpush1.bf16.msra.mxu0 0
  %2102 = vmatprep.subr.bf16.mxu0 0
  %2103 = vmatpush1.bf16.msra.mxu0 0
  %2104 = vmatprep.subr.bf16.mxu0 0
  %2105 = vmatpush1.bf16.msra.mxu0 0
  %2106 = vmatprep.subr.bf16.mxu0 0
  %2107 = vmatpush1.bf16.msra.mxu0 0
  %2108 = vmatprep.subr.bf16.mxu0 0
  %2109 = vmatpush1.bf16.msra.mxu0 0
  %2110 = vmatprep.subr.bf16.mxu0 0
  %2111 = vmatpush1.bf16.msra.mxu0 0
  %2112 = vmatprep.subr.bf16.mxu0 0
  %2113 = vmatpush1.bf16.msra.mxu0 0
  %2114 = vmatprep.subr.bf16.mxu0 0
  %2115 = vmatpush1.bf16.msra.mxu0 0
  %2116 = vmatprep.mubr.bf16.mxu0 0
  %2117 = vmatmul.mubr.bf16.gmra.mrb[0].mxu0 %v2082
  %v2118 = vpop.f32.mrb[0].mxu0
  %v2119 = vadd.f32 0.0, %v2118
  %v2120 = vpop.f32.mrb[0].mxu0
  %v2121 = vpop.f32.mrb[0].mxu0
  %v2122 = vpop.f32.mrb[0].mxu0
  %2123 = vdwg.mxu0
  %v2124 = vadd.f32 %v2018, %v2119
  %2125 = vset.pattern.permute.xlu0 4
  %2126 = vperm.xlu0 %2125, %v1664
  %v2127 = vpop.permute.xlu0 %2126
  %vm2128 = vcmp.eq.s32.totalorder %v350, %v2127
  %v2129 = vsel %vm2128, 1.0, 0.0
  %v2130 = vpack.c.bf16 %v2129, %v2129
  %v2132 = vsel %vm1588, %v2130, 0
  %2134 = vmatprep.subr.bf16.mxu0 0
  %2135 = vmatpush1.bf16.msra.mxu0 %v1701
  %2136 = vmatprep.subr.bf16.mxu0 0
  %2137 = vmatpush1.bf16.msra.mxu0 %v1702
  %2138 = vmatprep.subr.bf16.mxu0 0
  %2139 = vmatpush1.bf16.msra.mxu0 0
  %2140 = vmatprep.subr.bf16.mxu0 0
  %2141 = vmatpush1.bf16.msra.mxu0 0
  %2142 = vmatprep.subr.bf16.mxu0 0
  %2143 = vmatpush1.bf16.msra.mxu0 0
  %2144 = vmatprep.subr.bf16.mxu0 0
  %2145 = vmatpush1.bf16.msra.mxu0 0
  %2146 = vmatprep.subr.bf16.mxu0 0
  %2147 = vmatpush1.bf16.msra.mxu0 0
  %2148 = vmatprep.subr.bf16.mxu0 0
  %2149 = vmatpush1.bf16.msra.mxu0 0
  %2150 = vmatprep.subr.bf16.mxu0 0
  %2151 = vmatpush1.bf16.msra.mxu0 0
  %2152 = vmatprep.subr.bf16.mxu0 0
  %2153 = vmatpush1.bf16.msra.mxu0 0
  %2154 = vmatprep.subr.bf16.mxu0 0
  %2155 = vmatpush1.bf16.msra.mxu0 0
  %2156 = vmatprep.subr.bf16.mxu0 0
  %2157 = vmatpush1.bf16.msra.mxu0 0
  %2158 = vmatprep.subr.bf16.mxu0 0
  %2159 = vmatpush1.bf16.msra.mxu0 0
  %2160 = vmatprep.subr.bf16.mxu0 0
  %2161 = vmatpush1.bf16.msra.mxu0 0
  %2162 = vmatprep.subr.bf16.mxu0 0
  %2163 = vmatpush1.bf16.msra.mxu0 0
  %2164 = vmatprep.subr.bf16.mxu0 0
  %2165 = vmatpush1.bf16.msra.mxu0 0
  %2166 = vmatprep.mubr.bf16.mxu0 0
  %2167 = vmatmul.mubr.bf16.gmra.mrb[0].mxu0 %v2132
  %v2168 = vpop.f32.mrb[0].mxu0
  %v2169 = vadd.f32 0.0, %v2168
  %v2170 = vpop.f32.mrb[0].mxu0
  %v2171 = vpop.f32.mrb[0].mxu0
  %v2172 = vpop.f32.mrb[0].mxu0
  %2173 = vdwg.mxu0
  %v2174 = vpack.c.bf16 %v2169, %v2169
  %v2179 = vunpack.c.l.b16 %v1681
  %v2180 = vunpack.c.l.b16 %v1682
  %v2181 = vunpack.c.l.b16 %v1683
  %v2182 = vunpack.c.l.b16 %v1684
  %v2183 = vpack.c.b16 %v2180, %v2179
  %v2184 = vpack.c.b16 %v2182, %v2181
  %v2188 = vsel %vm1588, %v2174, 0
  %2190 = vmatprep.subr.bf16.mxu0 0
  %2191 = vmatpush1.bf16.msra.mxu0 %v2183
  %2192 = vmatprep.subr.bf16.mxu0 0
  %2193 = vmatpush1.bf16.msra.mxu0 %v2184
  %2194 = vmatprep.subr.bf16.mxu0 0
  %2195 = vmatpush1.bf16.msra.mxu0 0
  %2196 = vmatprep.subr.bf16.mxu0 0
  %2197 = vmatpush1.bf16.msra.mxu0 0
  %2198 = vmatprep.subr.bf16.mxu0 0
  %2199 = vmatpush1.bf16.msra.mxu0 0
  %2200 = vmatprep.subr.bf16.mxu0 0
  %2201 = vmatpush1.bf16.msra.mxu0 0
  %2202 = vmatprep.subr.bf16.mxu0 0
  %2203 = vmatpush1.bf16.msra.mxu0 0
  %2204 = vmatprep.subr.bf16.mxu0 0
  %2205 = vmatpush1.bf16.msra.mxu0 0
  %2206 = vmatprep.subr.bf16.mxu0 0
  %2207 = vmatpush1.bf16.msra.mxu0 0
  %2208 = vmatprep.subr.bf16.mxu0 0
  %2209 = vmatpush1.bf16.msra.mxu0 0
  %2210 = vmatprep.subr.bf16.mxu0 0
  %2211 = vmatpush1.bf16.msra.mxu0 0
  %2212 = vmatprep.subr.bf16.mxu0 0
  %2213 = vmatpush1.bf16.msra.mxu0 0
  %2214 = vmatprep.subr.bf16.mxu0 0
  %2215 = vmatpush1.bf16.msra.mxu0 0
  %2216 = vmatprep.subr.bf16.mxu0 0
  %2217 = vmatpush1.bf16.msra.mxu0 0
  %2218 = vmatprep.subr.bf16.mxu0 0
  %2219 = vmatpush1.bf16.msra.mxu0 0
  %2220 = vmatprep.subr.bf16.mxu0 0
  %2221 = vmatpush1.bf16.msra.mxu0 0
  %2222 = vmatprep.mubr.bf16.mxu0 0
  %2223 = vmatmul.mubr.bf16.gmra.mrb[0].mxu0 %v2188
  %v2224 = vpop.f32.mrb[0].mxu0
  %v2225 = vadd.f32 0.0, %v2224
  %v2226 = vpop.f32.mrb[0].mxu0
  %v2227 = vpop.f32.mrb[0].mxu0
  %v2228 = vpop.f32.mrb[0].mxu0
  %2229 = vdwg.mxu0
  %v2230 = vadd.f32 %v2124, %v2225
  %2231 = vset.pattern.permute.xlu0 5
  %2232 = vperm.xlu0 %2231, %v1664
  %v2233 = vpop.permute.xlu0 %2232
  %vm2234 = vcmp.eq.s32.totalorder %v350, %v2233
  %v2235 = vsel %vm2234, 1.0, 0.0
  %v2236 = vpack.c.bf16 %v2235, %v2235
  %v2238 = vsel %vm1588, %v2236, 0
  %2240 = vmatprep.subr.bf16.mxu0 0
  %2241 = vmatpush1.bf16.msra.mxu0 %v1701
  %2242 = vmatprep.subr.bf16.mxu0 0
  %2243 = vmatpush1.bf16.msra.mxu0 %v1702
  %2244 = vmatprep.subr.bf16.mxu0 0
  %2245 = vmatpush1.bf16.msra.mxu0 0
  %2246 = vmatprep.subr.bf16.mxu0 0
  %2247 = vmatpush1.bf16.msra.mxu0 0
  %2248 = vmatprep.subr.bf16.mxu0 0
  %2249 = vmatpush1.bf16.msra.mxu0 0
  %2250 = vmatprep.subr.bf16.mxu0 0
  %2251 = vmatpush1.bf16.msra.mxu0 0
  %2252 = vmatprep.subr.bf16.mxu0 0
  %2253 = vmatpush1.bf16.msra.mxu0 0
  %2254 = vmatprep.subr.bf16.mxu0 0
  %2255 = vmatpush1.bf16.msra.mxu0 0
  %2256 = vmatprep.subr.bf16.mxu0 0
  %2257 = vmatpush1.bf16.msra.mxu0 0
  %2258 = vmatprep.subr.bf16.mxu0 0
  %2259 = vmatpush1.bf16.msra.mxu0 0
  %2260 = vmatprep.subr.bf16.mxu0 0
  %2261 = vmatpush1.bf16.msra.mxu0 0
  %2262 = vmatprep.subr.bf16.mxu0 0
  %2263 = vmatpush1.bf16.msra.mxu0 0
  %2264 = vmatprep.subr.bf16.mxu0 0
  %2265 = vmatpush1.bf16.msra.mxu0 0
  %2266 = vmatprep.subr.bf16.mxu0 0
  %2267 = vmatpush1.bf16.msra.mxu0 0
  %2268 = vmatprep.subr.bf16.mxu0 0
  %2269 = vmatpush1.bf16.msra.mxu0 0
  %2270 = vmatprep.subr.bf16.mxu0 0
  %2271 = vmatpush1.bf16.msra.mxu0 0
  %2272 = vmatprep.mubr.bf16.mxu0 0
  %2273 = vmatmul.mubr.bf16.gmra.mrb[0].mxu0 %v2238
  %v2274 = vpop.f32.mrb[0].mxu0
  %v2275 = vadd.f32 0.0, %v2274
  %v2276 = vpop.f32.mrb[0].mxu0
  %v2277 = vpop.f32.mrb[0].mxu0
  %v2278 = vpop.f32.mrb[0].mxu0
  %2279 = vdwg.mxu0
  %v2280 = vpack.c.bf16 %v2275, %v2275
  %v2285 = vunpack.c.l.b16 %v1685
  %v2286 = vunpack.c.l.b16 %v1686
  %v2287 = vunpack.c.l.b16 %v1687
  %v2288 = vunpack.c.l.b16 %v1688
  %v2289 = vpack.c.b16 %v2286, %v2285
  %v2290 = vpack.c.b16 %v2288, %v2287
  %v2294 = vsel %vm1588, %v2280, 0
  %2296 = vmatprep.subr.bf16.mxu0 0
  %2297 = vmatpush1.bf16.msra.mxu0 %v2289
  %2298 = vmatprep.subr.bf16.mxu0 0
  %2299 = vmatpush1.bf16.msra.mxu0 %v2290
  %2300 = vmatprep.subr.bf16.mxu0 0
  %2301 = vmatpush1.bf16.msra.mxu0 0
  %2302 = vmatprep.subr.bf16.mxu0 0
  %2303 = vmatpush1.bf16.msra.mxu0 0
  %2304 = vmatprep.subr.bf16.mxu0 0
  %2305 = vmatpush1.bf16.msra.mxu0 0
  %2306 = vmatprep.subr.bf16.mxu0 0
  %2307 = vmatpush1.bf16.msra.mxu0 0
  %2308 = vmatprep.subr.bf16.mxu0 0
  %2309 = vmatpush1.bf16.msra.mxu0 0
  %2310 = vmatprep.subr.bf16.mxu0 0
  %2311 = vmatpush1.bf16.msra.mxu0 0
  %2312 = vmatprep.subr.bf16.mxu0 0
  %2313 = vmatpush1.bf16.msra.mxu0 0
  %2314 = vmatprep.subr.bf16.mxu0 0
  %2315 = vmatpush1.bf16.msra.mxu0 0
  %2316 = vmatprep.subr.bf16.mxu0 0
  %2317 = vmatpush1.bf16.msra.mxu0 0
  %2318 = vmatprep.subr.bf16.mxu0 0
  %2319 = vmatpush1.bf16.msra.mxu0 0
  %2320 = vmatprep.subr.bf16.mxu0 0
  %2321 = vmatpush1.bf16.msra.mxu0 0
  %2322 = vmatprep.subr.bf16.mxu0 0
  %2323 = vmatpush1.bf16.msra.mxu0 0
  %2324 = vmatprep.subr.bf16.mxu0 0
  %2325 = vmatpush1.bf16.msra.mxu0 0
  %2326 = vmatprep.subr.bf16.mxu0 0
  %2327 = vmatpush1.bf16.msra.mxu0 0
  %2328 = vmatprep.mubr.bf16.mxu0 0
  %2329 = vmatmul.mubr.bf16.gmra.mrb[0].mxu0 %v2294
  %v2330 = vpop.f32.mrb[0].mxu0
  %v2331 = vadd.f32 0.0, %v2330
  %v2332 = vpop.f32.mrb[0].mxu0
  %v2333 = vpop.f32.mrb[0].mxu0
  %v2334 = vpop.f32.mrb[0].mxu0
  %2335 = vdwg.mxu0
  %v2336 = vadd.f32 %v2230, %v2331
  %2337 = vset.pattern.permute.xlu0 6
  %2338 = vperm.xlu0 %2337, %v1664
  %v2339 = vpop.permute.xlu0 %2338
  %vm2340 = vcmp.eq.s32.totalorder %v350, %v2339
  %v2341 = vsel %vm2340, 1.0, 0.0
  %v2342 = vpack.c.bf16 %v2341, %v2341
  %v2344 = vsel %vm1588, %v2342, 0
  %2346 = vmatprep.subr.bf16.mxu0 0
  %2347 = vmatpush1.bf16.msra.mxu0 %v1701
  %2348 = vmatprep.subr.bf16.mxu0 0
  %2349 = vmatpush1.bf16.msra.mxu0 %v1702
  %2350 = vmatprep.subr.bf16.mxu0 0
  %2351 = vmatpush1.bf16.msra.mxu0 0
  %2352 = vmatprep.subr.bf16.mxu0 0
  %2353 = vmatpush1.bf16.msra.mxu0 0
  %2354 = vmatprep.subr.bf16.mxu0 0
  %2355 = vmatpush1.bf16.msra.mxu0 0
  %2356 = vmatprep.subr.bf16.mxu0 0
  %2357 = vmatpush1.bf16.msra.mxu0 0
  %2358 = vmatprep.subr.bf16.mxu0 0
  %2359 = vmatpush1.bf16.msra.mxu0 0
  %2360 = vmatprep.subr.bf16.mxu0 0
  %2361 = vmatpush1.bf16.msra.mxu0 0
  %2362 = vmatprep.subr.bf16.mxu0 0
  %2363 = vmatpush1.bf16.msra.mxu0 0
  %2364 = vmatprep.subr.bf16.mxu0 0
  %2365 = vmatpush1.bf16.msra.mxu0 0
  %2366 = vmatprep.subr.bf16.mxu0 0
  %2367 = vmatpush1.bf16.msra.mxu0 0
  %2368 = vmatprep.subr.bf16.mxu0 0
  %2369 = vmatpush1.bf16.msra.mxu0 0
  %2370 = vmatprep.subr.bf16.mxu0 0
  %2371 = vmatpush1.bf16.msra.mxu0 0
  %2372 = vmatprep.subr.bf16.mxu0 0
  %2373 = vmatpush1.bf16.msra.mxu0 0
  %2374 = vmatprep.subr.bf16.mxu0 0
  %2375 = vmatpush1.bf16.msra.mxu0 0
  %2376 = vmatprep.subr.bf16.mxu0 0
  %2377 = vmatpush1.bf16.msra.mxu0 0
  %2378 = vmatprep.mubr.bf16.mxu0 0
  %2379 = vmatmul.mubr.bf16.gmra.mrb[0].mxu0 %v2344
  %v2380 = vpop.f32.mrb[0].mxu0
  %v2381 = vadd.f32 0.0, %v2380
  %v2382 = vpop.f32.mrb[0].mxu0
  %v2383 = vpop.f32.mrb[0].mxu0
  %v2384 = vpop.f32.mrb[0].mxu0
  %2385 = vdwg.mxu0
  %v2386 = vpack.c.bf16 %v2381, %v2381
  %v2391 = vunpack.c.l.b16 %v1689
  %v2392 = vunpack.c.l.b16 %v1690
  %v2393 = vunpack.c.l.b16 %v1691
  %v2394 = vunpack.c.l.b16 %v1692
  %v2395 = vpack.c.b16 %v2392, %v2391
  %v2396 = vpack.c.b16 %v2394, %v2393
  %v2400 = vsel %vm1588, %v2386, 0
  %2402 = vmatprep.subr.bf16.mxu0 0
  %2403 = vmatpush1.bf16.msra.mxu0 %v2395
  %2404 = vmatprep.subr.bf16.mxu0 0
  %2405 = vmatpush1.bf16.msra.mxu0 %v2396
  %2406 = vmatprep.subr.bf16.mxu0 0
  %2407 = vmatpush1.bf16.msra.mxu0 0
  %2408 = vmatprep.subr.bf16.mxu0 0
  %2409 = vmatpush1.bf16.msra.mxu0 0
  %2410 = vmatprep.subr.bf16.mxu0 0
  %2411 = vmatpush1.bf16.msra.mxu0 0
  %2412 = vmatprep.subr.bf16.mxu0 0
  %2413 = vmatpush1.bf16.msra.mxu0 0
  %2414 = vmatprep.subr.bf16.mxu0 0
  %2415 = vmatpush1.bf16.msra.mxu0 0
  %2416 = vmatprep.subr.bf16.mxu0 0
  %2417 = vmatpush1.bf16.msra.mxu0 0
  %2418 = vmatprep.subr.bf16.mxu0 0
  %2419 = vmatpush1.bf16.msra.mxu0 0
  %2420 = vmatprep.subr.bf16.mxu0 0
  %2421 = vmatpush1.bf16.msra.mxu0 0
  %2422 = vmatprep.subr.bf16.mxu0 0
  %2423 = vmatpush1.bf16.msra.mxu0 0
  %2424 = vmatprep.subr.bf16.mxu0 0
  %2425 = vmatpush1.bf16.msra.mxu0 0
  %2426 = vmatprep.subr.bf16.mxu0 0
  %2427 = vmatpush1.bf16.msra.mxu0 0
  %2428 = vmatprep.subr.bf16.mxu0 0
  %2429 = vmatpush1.bf16.msra.mxu0 0
  %2430 = vmatprep.subr.bf16.mxu0 0
  %2431 = vmatpush1.bf16.msra.mxu0 0
  %2432 = vmatprep.subr.bf16.mxu0 0
  %2433 = vmatpush1.bf16.msra.mxu0 0
  %2434 = vmatprep.mubr.bf16.mxu0 0
  %2435 = vmatmul.mubr.bf16.gmra.mrb[0].mxu0 %v2400
  %v2436 = vpop.f32.mrb[0].mxu0
  %v2437 = vadd.f32 0.0, %v2436
  %v2438 = vpop.f32.mrb[0].mxu0
  %v2439 = vpop.f32.mrb[0].mxu0
  %v2440 = vpop.f32.mrb[0].mxu0
  %2441 = vdwg.mxu0
  %v2442 = vadd.f32 %v2336, %v2437
  %2443 = vset.pattern.permute.xlu0 7
  %2444 = vperm.xlu0 %2443, %v1664
  %v2445 = vpop.permute.xlu0 %2444
  %vm2446 = vcmp.eq.s32.totalorder %v350, %v2445
  %v2447 = vsel %vm2446, 1.0, 0.0
  %v2448 = vpack.c.bf16 %v2447, %v2447
  %v2450 = vsel %vm1588, %v2448, 0
  %2452 = vmatprep.subr.bf16.mxu0 0
  %2453 = vmatpush1.bf16.msra.mxu0 %v1701
  %2454 = vmatprep.subr.bf16.mxu0 0
  %2455 = vmatpush1.bf16.msra.mxu0 %v1702
  %2456 = vmatprep.subr.bf16.mxu0 0
  %2457 = vmatpush1.bf16.msra.mxu0 0
  %2458 = vmatprep.subr.bf16.mxu0 0
  %2459 = vmatpush1.bf16.msra.mxu0 0
  %2460 = vmatprep.subr.bf16.mxu0 0
  %2461 = vmatpush1.bf16.msra.mxu0 0
  %2462 = vmatprep.subr.bf16.mxu0 0
  %2463 = vmatpush1.bf16.msra.mxu0 0
  %2464 = vmatprep.subr.bf16.mxu0 0
  %2465 = vmatpush1.bf16.msra.mxu0 0
  %2466 = vmatprep.subr.bf16.mxu0 0
  %2467 = vmatpush1.bf16.msra.mxu0 0
  %2468 = vmatprep.subr.bf16.mxu0 0
  %2469 = vmatpush1.bf16.msra.mxu0 0
  %2470 = vmatprep.subr.bf16.mxu0 0
  %2471 = vmatpush1.bf16.msra.mxu0 0
  %2472 = vmatprep.subr.bf16.mxu0 0
  %2473 = vmatpush1.bf16.msra.mxu0 0
  %2474 = vmatprep.subr.bf16.mxu0 0
  %2475 = vmatpush1.bf16.msra.mxu0 0
  %2476 = vmatprep.subr.bf16.mxu0 0
  %2477 = vmatpush1.bf16.msra.mxu0 0
  %2478 = vmatprep.subr.bf16.mxu0 0
  %2479 = vmatpush1.bf16.msra.mxu0 0
  %2480 = vmatprep.subr.bf16.mxu0 0
  %2481 = vmatpush1.bf16.msra.mxu0 0
  %2482 = vmatprep.subr.bf16.mxu0 0
  %2483 = vmatpush1.bf16.msra.mxu0 0
  %2484 = vmatprep.mubr.bf16.mxu0 0
  %2485 = vmatmul.mubr.bf16.gmra.mrb[0].mxu0 %v2450
  %v2486 = vpop.f32.mrb[0].mxu0
  %v2487 = vadd.f32 0.0, %v2486
  %v2488 = vpop.f32.mrb[0].mxu0
  %v2489 = vpop.f32.mrb[0].mxu0
  %v2490 = vpop.f32.mrb[0].mxu0
  %2491 = vdwg.mxu0
  %v2492 = vpack.c.bf16 %v2487, %v2487
  %v2497 = vunpack.c.l.b16 %v1693
  %v2498 = vunpack.c.l.b16 %v1694
  %v2499 = vunpack.c.l.b16 %v1695
  %v2500 = vunpack.c.l.b16 %v1696
  %v2501 = vpack.c.b16 %v2498, %v2497
  %v2502 = vpack.c.b16 %v2500, %v2499
  %v2506 = vsel %vm1588, %v2492, 0
  %2508 = vmatprep.subr.bf16.mxu0 0
  %2509 = vmatpush1.bf16.msra.mxu0 %v2501
  %2510 = vmatprep.subr.bf16.mxu0 0
  %2511 = vmatpush1.bf16.msra.mxu0 %v2502
  %2512 = vmatprep.subr.bf16.mxu0 0
  %2513 = vmatpush1.bf16.msra.mxu0 0
  %2514 = vmatprep.subr.bf16.mxu0 0
  %2515 = vmatpush1.bf16.msra.mxu0 0
  %2516 = vmatprep.subr.bf16.mxu0 0
  %2517 = vmatpush1.bf16.msra.mxu0 0
  %2518 = vmatprep.subr.bf16.mxu0 0
  %2519 = vmatpush1.bf16.msra.mxu0 0
  %2520 = vmatprep.subr.bf16.mxu0 0
  %2521 = vmatpush1.bf16.msra.mxu0 0
  %2522 = vmatprep.subr.bf16.mxu0 0
  %2523 = vmatpush1.bf16.msra.mxu0 0
  %2524 = vmatprep.subr.bf16.mxu0 0
  %2525 = vmatpush1.bf16.msra.mxu0 0
  %2526 = vmatprep.subr.bf16.mxu0 0
  %2527 = vmatpush1.bf16.msra.mxu0 0
  %2528 = vmatprep.subr.bf16.mxu0 0
  %2529 = vmatpush1.bf16.msra.mxu0 0
  %2530 = vmatprep.subr.bf16.mxu0 0
  %2531 = vmatpush1.bf16.msra.mxu0 0
  %2532 = vmatprep.subr.bf16.mxu0 0
  %2533 = vmatpush1.bf16.msra.mxu0 0
  %2534 = vmatprep.subr.bf16.mxu0 0
  %2535 = vmatpush1.bf16.msra.mxu0 0
  %2536 = vmatprep.subr.bf16.mxu0 0
  %2537 = vmatpush1.bf16.msra.mxu0 0
  %2538 = vmatprep.subr.bf16.mxu0 0
  %2539 = vmatpush1.bf16.msra.mxu0 0
  %2540 = vmatprep.mubr.bf16.mxu0 0
  %2541 = vmatmul.mubr.bf16.gmra.mrb[0].mxu0 %v2506
  %v2542 = vpop.f32.mrb[0].mxu0
  %v2543 = vadd.f32 0.0, %v2542
  %v2544 = vpop.f32.mrb[0].mxu0
  %v2545 = vpop.f32.mrb[0].mxu0
  %v2546 = vpop.f32.mrb[0].mxu0
  %2547 = vdwg.mxu0
  %v2548 = vadd.f32 %v2442, %v2543
  %2549 = vset.pattern.permute.xlu0 8
  %2550 = vperm.xlu0 %2549, %v1664
  %v2551 = vpop.permute.xlu0 %2550
  %vm2552 = vcmp.eq.s32.totalorder %v350, %v2551
  %v2553 = vsel %vm2552, 1.0, 0.0
  %v2554 = vpack.c.bf16 %v2553, %v2553
  %v2556 = vsel %vm1588, %v2554, 0
  %2558 = vmatprep.subr.bf16.mxu0 0
  %2559 = vmatpush1.bf16.msra.mxu0 %v1701
  %2560 = vmatprep.subr.bf16.mxu0 0
  %2561 = vmatpush1.bf16.msra.mxu0 %v1702
  %2562 = vmatprep.subr.bf16.mxu0 0
  %2563 = vmatpush1.bf16.msra.mxu0 0
  %2564 = vmatprep.subr.bf16.mxu0 0
  %2565 = vmatpush1.bf16.msra.mxu0 0
  %2566 = vmatprep.subr.bf16.mxu0 0
  %2567 = vmatpush1.bf16.msra.mxu0 0
  %2568 = vmatprep.subr.bf16.mxu0 0
  %2569 = vmatpush1.bf16.msra.mxu0 0
  %2570 = vmatprep.subr.bf16.mxu0 0
  %2571 = vmatpush1.bf16.msra.mxu0 0
  %2572 = vmatprep.subr.bf16.mxu0 0
  %2573 = vmatpush1.bf16.msra.mxu0 0
  %2574 = vmatprep.subr.bf16.mxu0 0
  %2575 = vmatpush1.bf16.msra.mxu0 0
  %2576 = vmatprep.subr.bf16.mxu0 0
  %2577 = vmatpush1.bf16.msra.mxu0 0
  %2578 = vmatprep.subr.bf16.mxu0 0
  %2579 = vmatpush1.bf16.msra.mxu0 0
  %2580 = vmatprep.subr.bf16.mxu0 0
  %2581 = vmatpush1.bf16.msra.mxu0 0
  %2582 = vmatprep.subr.bf16.mxu0 0
  %2583 = vmatpush1.bf16.msra.mxu0 0
  %2584 = vmatprep.subr.bf16.mxu0 0
  %2585 = vmatpush1.bf16.msra.mxu0 0
  %2586 = vmatprep.subr.bf16.mxu0 0
  %2587 = vmatpush1.bf16.msra.mxu0 0
  %2588 = vmatprep.subr.bf16.mxu0 0
  %2589 = vmatpush1.bf16.msra.mxu0 0
  %2590 = vmatprep.mubr.bf16.mxu0 0
  %2591 = vmatmul.mubr.bf16.gmra.mrb[0].mxu0 %v2556
  %v2592 = vpop.f32.mrb[0].mxu0
  %v2593 = vadd.f32 0.0, %v2592
  %v2594 = vpop.f32.mrb[0].mxu0
  %v2595 = vpop.f32.mrb[0].mxu0
  %v2596 = vpop.f32.mrb[0].mxu0
  %2597 = vdwg.mxu0
  %v2598 = vpack.c.bf16 %v2593, %v2593
  %v2603 = vunpack.c.l.b16 %v1697
  %v2604 = vunpack.c.l.b16 %v1698
  %v2605 = vunpack.c.l.b16 %v1699
  %v2606 = vunpack.c.l.b16 %v1700
  %v2607 = vpack.c.b16 %v2604, %v2603
  %v2608 = vpack.c.b16 %v2606, %v2605
  %v2612 = vsel %vm1588, %v2598, 0
  %2614 = vmatprep.subr.bf16.mxu0 0
  %2615 = vmatpush1.bf16.msra.mxu0 %v2607
  %2616 = vmatprep.subr.bf16.mxu0 0
  %2617 = vmatpush1.bf16.msra.mxu0 %v2608
  %2618 = vmatprep.subr.bf16.mxu0 0
  %2619 = vmatpush1.bf16.msra.mxu0 0
  %2620 = vmatprep.subr.bf16.mxu0 0
  %2621 = vmatpush1.bf16.msra.mxu0 0
  %2622 = vmatprep.subr.bf16.mxu0 0
  %2623 = vmatpush1.bf16.msra.mxu0 0
  %2624 = vmatprep.subr.bf16.mxu0 0
  %2625 = vmatpush1.bf16.msra.mxu0 0
  %2626 = vmatprep.subr.bf16.mxu0 0
  %2627 = vmatpush1.bf16.msra.mxu0 0
  %2628 = vmatprep.subr.bf16.mxu0 0
  %2629 = vmatpush1.bf16.msra.mxu0 0
  %2630 = vmatprep.subr.bf16.mxu0 0
  %2631 = vmatpush1.bf16.msra.mxu0 0
  %2632 = vmatprep.subr.bf16.mxu0 0
  %2633 = vmatpush1.bf16.msra.mxu0 0
  %2634 = vmatprep.subr.bf16.mxu0 0
  %2635 = vmatpush1.bf16.msra.mxu0 0
  %2636 = vmatprep.subr.bf16.mxu0 0
  %2637 = vmatpush1.bf16.msra.mxu0 0
  %2638 = vmatprep.subr.bf16.mxu0 0
  %2639 = vmatpush1.bf16.msra.mxu0 0
  %2640 = vmatprep.subr.bf16.mxu0 0
  %2641 = vmatpush1.bf16.msra.mxu0 0
  %2642 = vmatprep.subr.bf16.mxu0 0
  %2643 = vmatpush1.bf16.msra.mxu0 0
  %2644 = vmatprep.subr.bf16.mxu0 0
  %2645 = vmatpush1.bf16.msra.mxu0 0
  %2646 = vmatprep.mubr.bf16.mxu0 0
  %2647 = vmatmul.mubr.bf16.gmra.mrb[0].mxu0 %v2612
  %v2648 = vpop.f32.mrb[0].mxu0
  %v2649 = vadd.f32 0.0, %v2648
  %v2650 = vpop.f32.mrb[0].mxu0
  %v2651 = vpop.f32.mrb[0].mxu0
  %v2652 = vpop.f32.mrb[0].mxu0
  %2653 = vdwg.mxu0
  %v2654 = vadd.f32 %v2548, %v2649
  %v2655 = vld [vmem:[%s9] sm:$0x1]
  %v2656 = vld [vmem:[%s10] sm:$0x1]
  %vm2657 = vcmask 523264
  %v2658 = vsel %vm2657, %v2654, 0.0
  %v2659 = vrot.slane %v2658, 4
  %v2660 = vadd.f32 %v2658, %v2659
  %v2661 = vrot.slane %v2660, 2
  %v2662 = vadd.f32 %v2660, %v2661
  %v2663 = vrot.slane %v2662, 1
  %v2664 = vadd.f32 %v2662, %v2663
  %v2665 = vrcp.pop 8.0
  %v2666 = vmul.f32 %v2664, %v2665
  %v2667 = vsub.f32 %v2654, %v2666
  %v2668 = vmul.f32 %v2667, %v2667
  %v2669 = vsel %vm2657, %v2668, 0.0
  %v2670 = vrot.slane %v2669, 4
  %v2671 = vadd.f32 %v2669, %v2670
  %v2672 = vrot.slane %v2671, 2
  %v2673 = vadd.f32 %v2671, %v2672
  %v2674 = vrot.slane %v2673, 1
  %v2675 = vadd.f32 %v2673, %v2674
  %v2676 = vmul.f32 %v2675, %v2665
  %v2677 = vadd.f32 %v2676, 1e-05
  %v2678 = vrsqrt.pop %v2677
  %v2679 = vmul.f32 %v2667, %v2678
  %v2681 = vlaneseq
  %v2682 = vshrl.u32 %v2681, 7
  %v2683 = vsub.s32 0, %v2682
  %v2684 = vrot.slane %v2655, %v2683
  %v2686 = vmul.f32 %v2679, %v2684
  %v2688 = vlaneseq
  %v2689 = vshrl.u32 %v2688, 7
  %v2690 = vsub.s32 0, %v2689
  %v2691 = vrot.slane %v2656, %v2690
  %v2693 = vadd.f32 %v2686, %v2691
  %vm2694 = vcmp.gt.f32.partialorder %v2693, 0.0
  %v2695 = vmul.f32 %v2693, 0.2
  %v2696 = vsel %vm2694, %v2693, %v2695
  %v2697 = vld [vmem:[%s11] sm:$0xff]
  %v2698 = vld [vmem:[%s12] sm:$0xf]
  %v2699 = vld [vmem:[%s12 + $0x4] sm:$0xf]
  %v2700 = vld [vmem:[%s12 + $0x8] sm:$0xf]
  %v2701 = vld [vmem:[%s12 + $0xc] sm:$0xf]
  %v2702 = vld [vmem:[%s12 + $0x10] sm:$0xf]
  %v2703 = vld [vmem:[%s12 + $0x14] sm:$0xf]
  %v2704 = vld [vmem:[%s12 + $0x18] sm:$0xf]
  %v2705 = vld [vmem:[%s12 + $0x1c] sm:$0xf]
  %v2706 = vld [vmem:[%s12 + $0x20] sm:$0xf]
  %v2707 = vld [vmem:[%s12 + $0x24] sm:$0xf]
  %v2708 = vld [vmem:[%s12 + $0x28] sm:$0xf]
  %v2709 = vld [vmem:[%s12 + $0x2c] sm:$0xf]
  %v2710 = vld [vmem:[%s12 + $0x30] sm:$0xf]
  %v2711 = vld [vmem:[%s12 + $0x34] sm:$0xf]
  %v2712 = vld [vmem:[%s12 + $0x38] sm:$0xf]
  %v2713 = vld [vmem:[%s12 + $0x3c] sm:$0xf]
  %v2714 = vld [vmem:[%s12 + $0x40] sm:$0xf]
  %v2715 = vld [vmem:[%s12 + $0x44] sm:$0xf]
  %v2716 = vld [vmem:[%s12 + $0x48] sm:$0xf]
  %v2717 = vld [vmem:[%s12 + $0x4c] sm:$0xf]
  %v2718 = vld [vmem:[%s12 + $0x50] sm:$0xf]
  %v2719 = vld [vmem:[%s12 + $0x54] sm:$0xf]
  %v2720 = vld [vmem:[%s12 + $0x58] sm:$0xf]
  %v2721 = vld [vmem:[%s12 + $0x5c] sm:$0xf]
  %v2722 = vld [vmem:[%s12 + $0x60] sm:$0xf]
  %v2723 = vld [vmem:[%s12 + $0x64] sm:$0xf]
  %v2724 = vld [vmem:[%s12 + $0x68] sm:$0xf]
  %v2725 = vld [vmem:[%s12 + $0x6c] sm:$0xf]
  %v2726 = vld [vmem:[%s12 + $0x70] sm:$0xf]
  %v2727 = vld [vmem:[%s12 + $0x74] sm:$0xf]
  %v2728 = vld [vmem:[%s12 + $0x78] sm:$0xf]
  %v2729 = vld [vmem:[%s12 + $0x7c] sm:$0xf]
  %v2730 = vld [vmem:[%s12 + $0x80] sm:$0xf]
  %v2731 = vld [vmem:[%s12 + $0x84] sm:$0xf]
  %v2732 = vld [vmem:[%s12 + $0x88] sm:$0xf]
  %v2733 = vld [vmem:[%s12 + $0x8c] sm:$0xf]
  %v2734 = vld [vmem:[%s12 + $0x90] sm:$0xf]
  %v2735 = vld [vmem:[%s12 + $0x94] sm:$0xf]
  %v2736 = vld [vmem:[%s12 + $0x98] sm:$0xf]
  %v2737 = vld [vmem:[%s12 + $0x9c] sm:$0xf]
  %v2738 = vld [vmem:[%s12 + $0xa0] sm:$0xf]
  %v2739 = vld [vmem:[%s12 + $0xa4] sm:$0xf]
  %v2740 = vld [vmem:[%s12 + $0xa8] sm:$0xf]
  %v2741 = vld [vmem:[%s12 + $0xac] sm:$0xf]
  %v2742 = vld [vmem:[%s12 + $0xb0] sm:$0xf]
  %v2743 = vld [vmem:[%s12 + $0xb4] sm:$0xf]
  %v2744 = vld [vmem:[%s12 + $0xb8] sm:$0xf]
  %v2745 = vld [vmem:[%s12 + $0xbc] sm:$0xf]
  %v2746 = vld [vmem:[%s12 + $0xc0] sm:$0xf]
  %v2747 = vld [vmem:[%s12 + $0xc4] sm:$0xf]
  %v2748 = vld [vmem:[%s12 + $0xc8] sm:$0xf]
  %v2749 = vld [vmem:[%s12 + $0xcc] sm:$0xf]
  %v2750 = vld [vmem:[%s12 + $0xd0] sm:$0xf]
  %v2751 = vld [vmem:[%s12 + $0xd4] sm:$0xf]
  %v2752 = vld [vmem:[%s12 + $0xd8] sm:$0xf]
  %v2753 = vld [vmem:[%s12 + $0xdc] sm:$0xf]
  %v2754 = vld [vmem:[%s12 + $0xe0] sm:$0xf]
  %v2755 = vld [vmem:[%s12 + $0xe4] sm:$0xf]
  %v2756 = vld [vmem:[%s12 + $0xe8] sm:$0xf]
  %v2757 = vld [vmem:[%s12 + $0xec] sm:$0xf]
  %v2758 = vld [vmem:[%s12 + $0xf0] sm:$0xf]
  %v2759 = vld [vmem:[%s12 + $0xf4] sm:$0xf]
  %v2760 = vld [vmem:[%s12 + $0xf8] sm:$0xf]
  %v2761 = vld [vmem:[%s12 + $0xfc] sm:$0xf]
  %v2762 = vld [vmem:[%s12 + $0x100] sm:$0xf]
  %v2763 = vld [vmem:[%s12 + $0x104] sm:$0xf]
  %v2764 = vld [vmem:[%s12 + $0x108] sm:$0xf]
  %v2765 = vld [vmem:[%s12 + $0x10c] sm:$0xf]
  %v2766 = vld [vmem:[%s12 + $0x110] sm:$0xf]
  %v2767 = vld [vmem:[%s12 + $0x114] sm:$0xf]
  %v2768 = vld [vmem:[%s12 + $0x118] sm:$0xf]
  %v2769 = vld [vmem:[%s12 + $0x11c] sm:$0xf]
  %v2770 = vpack.c.bf16 %v2696, %v2696
  %2771 = vset.pattern.permute.xlu0 0
  %2772 = vperm.xlu0 %2771, %v2697
  %v2773 = vpop.permute.xlu0 %2772
  %vm2774 = vcmp.eq.s32.totalorder %v350, %v2773
  %v2775 = vsel %vm2774, 1.0, 0.0
  %v2776 = vpack.c.bf16 %v2775, %v2775
  %vm2777 = vcmask 64512
  %v2779 = vsel %vm2777, %v2776, 0
  %vm2781 = vcmask 1043456
  %v2783 = vsel %vm2781, %v2770, 0
  %2785 = vmatprep.subr.bf16.mxu0 0
  %2786 = vmatpush1.bf16.msra.mxu0 %v2783
  %2787 = vmatprep.subr.bf16.mxu0 0
  %2788 = vmatpush1.bf16.msra.mxu0 0
  %2789 = vmatprep.subr.bf16.mxu0 0
  %2790 = vmatpush1.bf16.msra.mxu0 0
  %2791 = vmatprep.subr.bf16.mxu0 0
  %2792 = vmatpush1.bf16.msra.mxu0 0
  %2793 = vmatprep.subr.bf16.mxu0 0
  %2794 = vmatpush1.bf16.msra.mxu0 0
  %2795 = vmatprep.subr.bf16.mxu0 0
  %2796 = vmatpush1.bf16.msra.mxu0 0
  %2797 = vmatprep.subr.bf16.mxu0 0
  %2798 = vmatpush1.bf16.msra.mxu0 0
  %2799 = vmatprep.subr.bf16.mxu0 0
  %2800 = vmatpush1.bf16.msra.mxu0 0
  %2801 = vmatprep.subr.bf16.mxu0 0
  %2802 = vmatpush1.bf16.msra.mxu0 0
  %2803 = vmatprep.subr.bf16.mxu0 0
  %2804 = vmatpush1.bf16.msra.mxu0 0
  %2805 = vmatprep.subr.bf16.mxu0 0
  %2806 = vmatpush1.bf16.msra.mxu0 0
  %2807 = vmatprep.subr.bf16.mxu0 0
  %2808 = vmatpush1.bf16.msra.mxu0 0
  %2809 = vmatprep.subr.bf16.mxu0 0
  %2810 = vmatpush1.bf16.msra.mxu0 0
  %2811 = vmatprep.subr.bf16.mxu0 0
  %2812 = vmatpush1.bf16.msra.mxu0 0
  %2813 = vmatprep.subr.bf16.mxu0 0
  %2814 = vmatpush1.bf16.msra.mxu0 0
  %2815 = vmatprep.subr.bf16.mxu0 0
  %2816 = vmatpush1.bf16.msra.mxu0 0
  %2817 = vmatprep.mubr.bf16.mxu0 0
  %2818 = vmatmul.mubr.bf16.gmra.mrb[0].mxu0 %v2779
  %v2819 = vpop.f32.mrb[0].mxu0
  %v2820 = vadd.f32 0.0, %v2819
  %v2821 = vpop.f32.mrb[0].mxu0
  %v2822 = vpop.f32.mrb[0].mxu0
  %v2823 = vpop.f32.mrb[0].mxu0
  %2824 = vdwg.mxu0
  %v2825 = vpack.c.bf16 %v2820, %v2820
  %2826 = vset.pattern.permute.xlu0 1
  %2827 = vperm.xlu0 %2826, %v2697
  %v2828 = vpop.permute.xlu0 %2827
  %vm2829 = vcmp.eq.s32.totalorder %v350, %v2828
  %v2830 = vsel %vm2829, 1.0, 0.0
  %v2831 = vpack.c.bf16 %v2830, %v2830
  %v2833 = vsel %vm2777, %v2831, 0
  %2835 = vmatprep.subr.bf16.mxu0 0
  %2836 = vmatpush1.bf16.msra.mxu0 %v2783
  %2837 = vmatprep.subr.bf16.mxu0 0
  %2838 = vmatpush1.bf16.msra.mxu0 0
  %2839 = vmatprep.subr.bf16.mxu0 0
  %2840 = vmatpush1.bf16.msra.mxu0 0
  %2841 = vmatprep.subr.bf16.mxu0 0
  %2842 = vmatpush1.bf16.msra.mxu0 0
  %2843 = vmatprep.subr.bf16.mxu0 0
  %2844 = vmatpush1.bf16.msra.mxu0 0
  %2845 = vmatprep.subr.bf16.mxu0 0
  %2846 = vmatpush1.bf16.msra.mxu0 0
  %2847 = vmatprep.subr.bf16.mxu0 0
  %2848 = vmatpush1.bf16.msra.mxu0 0
  %2849 = vmatprep.subr.bf16.mxu0 0
  %2850 = vmatpush1.bf16.msra.mxu0 0
  %2851 = vmatprep.subr.bf16.mxu0 0
  %2852 = vmatpush1.bf16.msra.mxu0 0
  %2853 = vmatprep.subr.bf16.mxu0 0
  %2854 = vmatpush1.bf16.msra.mxu0 0
  %2855 = vmatprep.subr.bf16.mxu0 0
  %2856 = vmatpush1.bf16.msra.mxu0 0
  %2857 = vmatprep.subr.bf16.mxu0 0
  %2858 = vmatpush1.bf16.msra.mxu0 0
  %2859 = vmatprep.subr.bf16.mxu0 0
  %2860 = vmatpush1.bf16.msra.mxu0 0
  %2861 = vmatprep.subr.bf16.mxu0 0
  %2862 = vmatpush1.bf16.msra.mxu0 0
  %2863 = vmatprep.subr.bf16.mxu0 0
  %2864 = vmatpush1.bf16.msra.mxu0 0
  %2865 = vmatprep.subr.bf16.mxu0 0
  %2866 = vmatpush1.bf16.msra.mxu0 0
  %2867 = vmatprep.mubr.bf16.mxu0 0
  %2868 = vmatmul.mubr.bf16.gmra.mrb[0].mxu0 %v2833
  %v2869 = vpop.f32.mrb[0].mxu0
  %v2870 = vadd.f32 0.0, %v2869
  %v2871 = vpop.f32.mrb[0].mxu0
  %v2872 = vpop.f32.mrb[0].mxu0
  %v2873 = vpop.f32.mrb[0].mxu0
  %2874 = vdwg.mxu0
  %v2875 = vpack.c.bf16 %v2870, %v2870
  %v2884 = vunpack.c.l.b16 %v2706
  %v2885 = vunpack.c.l.b16 %v2707
  %v2886 = vunpack.c.l.b16 %v2708
  %v2887 = vunpack.c.l.b16 %v2709
  %v2888 = vunpack.c.l.b16 %v2710
  %v2889 = vunpack.c.l.b16 %v2711
  %v2890 = vunpack.c.l.b16 %v2712
  %v2891 = vunpack.c.l.b16 %v2713
  %v2892 = vpack.c.b16 %v2885, %v2884
  %v2893 = vpack.c.b16 %v2887, %v2886
  %v2894 = vpack.c.b16 %v2889, %v2888
  %v2895 = vpack.c.b16 %v2891, %v2890
  %v2901 = vsel %vm2657, %v2875, 0
  %2903 = vmatprep.subr.bf16.mxu0 0
  %2904 = vmatpush1.bf16.msra.mxu0 %v2892
  %2905 = vmatprep.subr.bf16.mxu0 0
  %2906 = vmatpush1.bf16.msra.mxu0 %v2893
  %2907 = vmatprep.subr.bf16.mxu0 0
  %2908 = vmatpush1.bf16.msra.mxu0 %v2894
  %2909 = vmatprep.subr.bf16.mxu0 0
  %2910 = vmatpush1.bf16.msra.mxu0 %v2895
  %2911 = vmatprep.subr.bf16.mxu0 0
  %2912 = vmatpush1.bf16.msra.mxu0 0
  %2913 = vmatprep.subr.bf16.mxu0 0
  %2914 = vmatpush1.bf16.msra.mxu0 0
  %2915 = vmatprep.subr.bf16.mxu0 0
  %2916 = vmatpush1.bf16.msra.mxu0 0
  %2917 = vmatprep.subr.bf16.mxu0 0
  %2918 = vmatpush1.bf16.msra.mxu0 0
  %2919 = vmatprep.subr.bf16.mxu0 0
  %2920 = vmatpush1.bf16.msra.mxu0 0
  %2921 = vmatprep.subr.bf16.mxu0 0
  %2922 = vmatpush1.bf16.msra.mxu0 0
  %2923 = vmatprep.subr.bf16.mxu0 0
  %2924 = vmatpush1.bf16.msra.mxu0 0
  %2925 = vmatprep.subr.bf16.mxu0 0
  %2926 = vmatpush1.bf16.msra.mxu0 0
  %2927 = vmatprep.subr.bf16.mxu0 0
  %2928 = vmatpush1.bf16.msra.mxu0 0
  %2929 = vmatprep.subr.bf16.mxu0 0
  %2930 = vmatpush1.bf16.msra.mxu0 0
  %2931 = vmatprep.subr.bf16.mxu0 0
  %2932 = vmatpush1.bf16.msra.mxu0 0
  %2933 = vmatprep.subr.bf16.mxu0 0
  %2934 = vmatpush1.bf16.msra.mxu0 0
  %2935 = vmatprep.mubr.bf16.mxu0 0
  %2936 = vmatmul.mubr.bf16.gmra.mrb[0].mxu0 %v2901
  %v2937 = vpop.f32.mrb[0].mxu0
  %v2938 = vadd.f32 0.0, %v2937
  %v2939 = vpop.f32.mrb[0].mxu0
  %v2940 = vpop.f32.mrb[0].mxu0
  %v2941 = vpop.f32.mrb[0].mxu0
  %2942 = vdwg.mxu0
  %v2951 = vunpack.c.l.b16 %v2698
  %v2952 = vunpack.c.l.b16 %v2699
  %v2953 = vunpack.c.l.b16 %v2700
  %v2954 = vunpack.c.l.b16 %v2701
  %v2955 = vunpack.c.l.b16 %v2702
  %v2956 = vunpack.c.l.b16 %v2703
  %v2957 = vunpack.c.l.b16 %v2704
  %v2958 = vunpack.c.l.b16 %v2705
  %v2959 = vpack.c.b16 %v2952, %v2951
  %v2960 = vpack.c.b16 %v2954, %v2953
  %v2961 = vpack.c.b16 %v2956, %v2955
  %v2962 = vpack.c.b16 %v2958, %v2957
  %v2968 = vsel %vm2657, %v2825, 0
  %2970 = vmatprep.subr.bf16.mxu0 0
  %2971 = vmatpush1.bf16.msra.mxu0 %v2959
  %2972 = vmatprep.subr.bf16.mxu0 0
  %2973 = vmatpush1.bf16.msra.mxu0 %v2960
  %2974 = vmatprep.subr.bf16.mxu0 0
  %2975 = vmatpush1.bf16.msra.mxu0 %v2961
  %2976 = vmatprep.subr.bf16.mxu0 0
  %2977 = vmatpush1.bf16.msra.mxu0 %v2962
  %2978 = vmatprep.subr.bf16.mxu0 0
  %2979 = vmatpush1.bf16.msra.mxu0 0
  %2980 = vmatprep.subr.bf16.mxu0 0
  %2981 = vmatpush1.bf16.msra.mxu0 0
  %2982 = vmatprep.subr.bf16.mxu0 0
  %2983 = vmatpush1.bf16.msra.mxu0 0
  %2984 = vmatprep.subr.bf16.mxu0 0
  %2985 = vmatpush1.bf16.msra.mxu0 0
  %2986 = vmatprep.subr.bf16.mxu0 0
  %2987 = vmatpush1.bf16.msra.mxu0 0
  %2988 = vmatprep.subr.bf16.mxu0 0
  %2989 = vmatpush1.bf16.msra.mxu0 0
  %2990 = vmatprep.subr.bf16.mxu0 0
  %2991 = vmatpush1.bf16.msra.mxu0 0
  %2992 = vmatprep.subr.bf16.mxu0 0
  %2993 = vmatpush1.bf16.msra.mxu0 0
  %2994 = vmatprep.subr.bf16.mxu0 0
  %2995 = vmatpush1.bf16.msra.mxu0 0
  %2996 = vmatprep.subr.bf16.mxu0 0
  %2997 = vmatpush1.bf16.msra.mxu0 0
  %2998 = vmatprep.subr.bf16.mxu0 0
  %2999 = vmatpush1.bf16.msra.mxu0 0
  %3000 = vmatprep.subr.bf16.mxu0 0
  %3001 = vmatpush1.bf16.msra.mxu0 0
  %3002 = vmatprep.mubr.bf16.mxu0 0
  %3003 = vmatmul.mubr.bf16.gmra.mrb[0].mxu0 %v2968
  %v3004 = vpop.f32.mrb[0].mxu0
  %v3005 = vadd.f32 %v2938, %v3004
  %v3006 = vpop.f32.mrb[0].mxu0
  %v3007 = vpop.f32.mrb[0].mxu0
  %v3008 = vpop.f32.mrb[0].mxu0
  %3009 = vdwg.mxu0
  %3010 = vset.pattern.permute.xlu0 2
  %3011 = vperm.xlu0 %3010, %v2697
  %v3012 = vpop.permute.xlu0 %3011
  %vm3013 = vcmp.eq.s32.totalorder %v350, %v3012
  %v3014 = vsel %vm3013, 1.0, 0.0
  %v3015 = vpack.c.bf16 %v3014, %v3014
  %v3017 = vsel %vm2777, %v3015, 0
  %3019 = vmatprep.subr.bf16.mxu0 0
  %3020 = vmatpush1.bf16.msra.mxu0 %v2783
  %3021 = vmatprep.subr.bf16.mxu0 0
  %3022 = vmatpush1.bf16.msra.mxu0 0
  %3023 = vmatprep.subr.bf16.mxu0 0
  %3024 = vmatpush1.bf16.msra.mxu0 0
  %3025 = vmatprep.subr.bf16.mxu0 0
  %3026 = vmatpush1.bf16.msra.mxu0 0
  %3027 = vmatprep.subr.bf16.mxu0 0
  %3028 = vmatpush1.bf16.msra.mxu0 0
  %3029 = vmatprep.subr.bf16.mxu0 0
  %3030 = vmatpush1.bf16.msra.mxu0 0
  %3031 = vmatprep.subr.bf16.mxu0 0
  %3032 = vmatpush1.bf16.msra.mxu0 0
  %3033 = vmatprep.subr.bf16.mxu0 0
  %3034 = vmatpush1.bf16.msra.mxu0 0
  %3035 = vmatprep.subr.bf16.mxu0 0
  %3036 = vmatpush1.bf16.msra.mxu0 0
  %3037 = vmatprep.subr.bf16.mxu0 0
  %3038 = vmatpush1.bf16.msra.mxu0 0
  %3039 = vmatprep.subr.bf16.mxu0 0
  %3040 = vmatpush1.bf16.msra.mxu0 0
  %3041 = vmatprep.subr.bf16.mxu0 0
  %3042 = vmatpush1.bf16.msra.mxu0 0
  %3043 = vmatprep.subr.bf16.mxu0 0
  %3044 = vmatpush1.bf16.msra.mxu0 0
  %3045 = vmatprep.subr.bf16.mxu0 0
  %3046 = vmatpush1.bf16.msra.mxu0 0
  %3047 = vmatprep.subr.bf16.mxu0 0
  %3048 = vmatpush1.bf16.msra.mxu0 0
  %3049 = vmatprep.subr.bf16.mxu0 0
  %3050 = vmatpush1.bf16.msra.mxu0 0
  %3051 = vmatprep.mubr.bf16.mxu0 0
  %3052 = vmatmul.mubr.bf16.gmra.mrb[0].mxu0 %v3017
  %v3053 = vpop.f32.mrb[0].mxu0
  %v3054 = vadd.f32 0.0, %v3053
  %v3055 = vpop.f32.mrb[0].mxu0
  %v3056 = vpop.f32.mrb[0].mxu0
  %v3057 = vpop.f32.mrb[0].mxu0
  %3058 = vdwg.mxu0
  %v3059 = vpack.c.bf16 %v3054, %v3054
  %v3068 = vunpack.c.l.b16 %v2714
  %v3069 = vunpack.c.l.b16 %v2715
  %v3070 = vunpack.c.l.b16 %v2716
  %v3071 = vunpack.c.l.b16 %v2717
  %v3072 = vunpack.c.l.b16 %v2718
  %v3073 = vunpack.c.l.b16 %v2719
  %v3074 = vunpack.c.l.b16 %v2720
  %v3075 = vunpack.c.l.b16 %v2721
  %v3076 = vpack.c.b16 %v3069, %v3068
  %v3077 = vpack.c.b16 %v3071, %v3070
  %v3078 = vpack.c.b16 %v3073, %v3072
  %v3079 = vpack.c.b16 %v3075, %v3074
  %v3085 = vsel %vm2657, %v3059, 0
  %3087 = vmatprep.subr.bf16.mxu0 0
  %3088 = vmatpush1.bf16.msra.mxu0 %v3076
  %3089 = vmatprep.subr.bf16.mxu0 0
  %3090 = vmatpush1.bf16.msra.mxu0 %v3077
  %3091 = vmatprep.subr.bf16.mxu0 0
  %3092 = vmatpush1.bf16.msra.mxu0 %v3078
  %3093 = vmatprep.subr.bf16.mxu0 0
  %3094 = vmatpush1.bf16.msra.mxu0 %v3079
  %3095 = vmatprep.subr.bf16.mxu0 0
  %3096 = vmatpush1.bf16.msra.mxu0 0
  %3097 = vmatprep.subr.bf16.mxu0 0
  %3098 = vmatpush1.bf16.msra.mxu0 0
  %3099 = vmatprep.subr.bf16.mxu0 0
  %3100 = vmatpush1.bf16.msra.mxu0 0
  %3101 = vmatprep.subr.bf16.mxu0 0
  %3102 = vmatpush1.bf16.msra.mxu0 0
  %3103 = vmatprep.subr.bf16.mxu0 0
  %3104 = vmatpush1.bf16.msra.mxu0 0
  %3105 = vmatprep.subr.bf16.mxu0 0
  %3106 = vmatpush1.bf16.msra.mxu0 0
  %3107 = vmatprep.subr.bf16.mxu0 0
  %3108 = vmatpush1.bf16.msra.mxu0 0
  %3109 = vmatprep.subr.bf16.mxu0 0
  %3110 = vmatpush1.bf16.msra.mxu0 0
  %3111 = vmatprep.subr.bf16.mxu0 0
  %3112 = vmatpush1.bf16.msra.mxu0 0
  %3113 = vmatprep.subr.bf16.mxu0 0
  %3114 = vmatpush1.bf16.msra.mxu0 0
  %3115 = vmatprep.subr.bf16.mxu0 0
  %3116 = vmatpush1.bf16.msra.mxu0 0
  %3117 = vmatprep.subr.bf16.mxu0 0
  %3118 = vmatpush1.bf16.msra.mxu0 0
  %3119 = vmatprep.mubr.bf16.mxu0 0
  %3120 = vmatmul.mubr.bf16.gmra.mrb[0].mxu0 %v3085
  %v3121 = vpop.f32.mrb[0].mxu0
  %v3122 = vadd.f32 0.0, %v3121
  %v3123 = vpop.f32.mrb[0].mxu0
  %v3124 = vpop.f32.mrb[0].mxu0
  %v3125 = vpop.f32.mrb[0].mxu0
  %3126 = vdwg.mxu0
  %v3127 = vadd.f32 %v3005, %v3122
  %3128 = vset.pattern.permute.xlu0 3
  %3129 = vperm.xlu0 %3128, %v2697
  %v3130 = vpop.permute.xlu0 %3129
  %vm3131 = vcmp.eq.s32.totalorder %v350, %v3130
  %v3132 = vsel %vm3131, 1.0, 0.0
  %v3133 = vpack.c.bf16 %v3132, %v3132
  %v3135 = vsel %vm2777, %v3133, 0
  %3137 = vmatprep.subr.bf16.mxu0 0
  %3138 = vmatpush1.bf16.msra.mxu0 %v2783
  %3139 = vmatprep.subr.bf16.mxu0 0
  %3140 = vmatpush1.bf16.msra.mxu0 0
  %3141 = vmatprep.subr.bf16.mxu0 0
  %3142 = vmatpush1.bf16.msra.mxu0 0
  %3143 = vmatprep.subr.bf16.mxu0 0
  %3144 = vmatpush1.bf16.msra.mxu0 0
  %3145 = vmatprep.subr.bf16.mxu0 0
  %3146 = vmatpush1.bf16.msra.mxu0 0
  %3147 = vmatprep.subr.bf16.mxu0 0
  %3148 = vmatpush1.bf16.msra.mxu0 0
  %3149 = vmatprep.subr.bf16.mxu0 0
  %3150 = vmatpush1.bf16.msra.mxu0 0
  %3151 = vmatprep.subr.bf16.mxu0 0
  %3152 = vmatpush1.bf16.msra.mxu0 0
  %3153 = vmatprep.subr.bf16.mxu0 0
  %3154 = vmatpush1.bf16.msra.mxu0 0
  %3155 = vmatprep.subr.bf16.mxu0 0
  %3156 = vmatpush1.bf16.msra.mxu0 0
  %3157 = vmatprep.subr.bf16.mxu0 0
  %3158 = vmatpush1.bf16.msra.mxu0 0
  %3159 = vmatprep.subr.bf16.mxu0 0
  %3160 = vmatpush1.bf16.msra.mxu0 0
  %3161 = vmatprep.subr.bf16.mxu0 0
  %3162 = vmatpush1.bf16.msra.mxu0 0
  %3163 = vmatprep.subr.bf16.mxu0 0
  %3164 = vmatpush1.bf16.msra.mxu0 0
  %3165 = vmatprep.subr.bf16.mxu0 0
  %3166 = vmatpush1.bf16.msra.mxu0 0
  %3167 = vmatprep.subr.bf16.mxu0 0
  %3168 = vmatpush1.bf16.msra.mxu0 0
  %3169 = vmatprep.mubr.bf16.mxu0 0
  %3170 = vmatmul.mubr.bf16.gmra.mrb[0].mxu0 %v3135
  %v3171 = vpop.f32.mrb[0].mxu0
  %v3172 = vadd.f32 0.0, %v3171
  %v3173 = vpop.f32.mrb[0].mxu0
  %v3174 = vpop.f32.mrb[0].mxu0
  %v3175 = vpop.f32.mrb[0].mxu0
  %3176 = vdwg.mxu0
  %v3177 = vpack.c.bf16 %v3172, %v3172
  %v3186 = vunpack.c.l.b16 %v2722
  %v3187 = vunpack.c.l.b16 %v2723
  %v3188 = vunpack.c.l.b16 %v2724
  %v3189 = vunpack.c.l.b16 %v2725
  %v3190 = vunpack.c.l.b16 %v2726
  %v3191 = vunpack.c.l.b16 %v2727
  %v3192 = vunpack.c.l.b16 %v2728
  %v3193 = vunpack.c.l.b16 %v2729
  %v3194 = vpack.c.b16 %v3187, %v3186
  %v3195 = vpack.c.b16 %v3189, %v3188
  %v3196 = vpack.c.b16 %v3191, %v3190
  %v3197 = vpack.c.b16 %v3193, %v3192
  %v3203 = vsel %vm2657, %v3177, 0
  %3205 = vmatprep.subr.bf16.mxu0 0
  %3206 = vmatpush1.bf16.msra.mxu0 %v3194
  %3207 = vmatprep.subr.bf16.mxu0 0
  %3208 = vmatpush1.bf16.msra.mxu0 %v3195
  %3209 = vmatprep.subr.bf16.mxu0 0
  %3210 = vmatpush1.bf16.msra.mxu0 %v3196
  %3211 = vmatprep.subr.bf16.mxu0 0
  %3212 = vmatpush1.bf16.msra.mxu0 %v3197
  %3213 = vmatprep.subr.bf16.mxu0 0
  %3214 = vmatpush1.bf16.msra.mxu0 0
  %3215 = vmatprep.subr.bf16.mxu0 0
  %3216 = vmatpush1.bf16.msra.mxu0 0
  %3217 = vmatprep.subr.bf16.mxu0 0
  %3218 = vmatpush1.bf16.msra.mxu0 0
  %3219 = vmatprep.subr.bf16.mxu0 0
  %3220 = vmatpush1.bf16.msra.mxu0 0
  %3221 = vmatprep.subr.bf16.mxu0 0
  %3222 = vmatpush1.bf16.msra.mxu0 0
  %3223 = vmatprep.subr.bf16.mxu0 0
  %3224 = vmatpush1.bf16.msra.mxu0 0
  %3225 = vmatprep.subr.bf16.mxu0 0
  %3226 = vmatpush1.bf16.msra.mxu0 0
  %3227 = vmatprep.subr.bf16.mxu0 0
  %3228 = vmatpush1.bf16.msra.mxu0 0
  %3229 = vmatprep.subr.bf16.mxu0 0
  %3230 = vmatpush1.bf16.msra.mxu0 0
  %3231 = vmatprep.subr.bf16.mxu0 0
  %3232 = vmatpush1.bf16.msra.mxu0 0
  %3233 = vmatprep.subr.bf16.mxu0 0
  %3234 = vmatpush1.bf16.msra.mxu0 0
  %3235 = vmatprep.subr.bf16.mxu0 0
  %3236 = vmatpush1.bf16.msra.mxu0 0
  %3237 = vmatprep.mubr.bf16.mxu0 0
  %3238 = vmatmul.mubr.bf16.gmra.mrb[0].mxu0 %v3203
  %v3239 = vpop.f32.mrb[0].mxu0
  %v3240 = vadd.f32 0.0, %v3239
  %v3241 = vpop.f32.mrb[0].mxu0
  %v3242 = vpop.f32.mrb[0].mxu0
  %v3243 = vpop.f32.mrb[0].mxu0
  %3244 = vdwg.mxu0
  %v3245 = vadd.f32 %v3127, %v3240
  %3246 = vset.pattern.permute.xlu0 4
  %3247 = vperm.xlu0 %3246, %v2697
  %v3248 = vpop.permute.xlu0 %3247
  %vm3249 = vcmp.eq.s32.totalorder %v350, %v3248
  %v3250 = vsel %vm3249, 1.0, 0.0
  %v3251 = vpack.c.bf16 %v3250, %v3250
  %v3253 = vsel %vm2777, %v3251, 0
  %3255 = vmatprep.subr.bf16.mxu0 0
  %3256 = vmatpush1.bf16.msra.mxu0 %v2783
  %3257 = vmatprep.subr.bf16.mxu0 0
  %3258 = vmatpush1.bf16.msra.mxu0 0
  %3259 = vmatprep.subr.bf16.mxu0 0
  %3260 = vmatpush1.bf16.msra.mxu0 0
  %3261 = vmatprep.subr.bf16.mxu0 0
  %3262 = vmatpush1.bf16.msra.mxu0 0
  %3263 = vmatprep.subr.bf16.mxu0 0
  %3264 = vmatpush1.bf16.msra.mxu0 0
  %3265 = vmatprep.subr.bf16.mxu0 0
  %3266 = vmatpush1.bf16.msra.mxu0 0
  %3267 = vmatprep.subr.bf16.mxu0 0
  %3268 = vmatpush1.bf16.msra.mxu0 0
  %3269 = vmatprep.subr.bf16.mxu0 0
  %3270 = vmatpush1.bf16.msra.mxu0 0
  %3271 = vmatprep.subr.bf16.mxu0 0
  %3272 = vmatpush1.bf16.msra.mxu0 0
  %3273 = vmatprep.subr.bf16.mxu0 0
  %3274 = vmatpush1.bf16.msra.mxu0 0
  %3275 = vmatprep.subr.bf16.mxu0 0
  %3276 = vmatpush1.bf16.msra.mxu0 0
  %3277 = vmatprep.subr.bf16.mxu0 0
  %3278 = vmatpush1.bf16.msra.mxu0 0
  %3279 = vmatprep.subr.bf16.mxu0 0
  %3280 = vmatpush1.bf16.msra.mxu0 0
  %3281 = vmatprep.subr.bf16.mxu0 0
  %3282 = vmatpush1.bf16.msra.mxu0 0
  %3283 = vmatprep.subr.bf16.mxu0 0
  %3284 = vmatpush1.bf16.msra.mxu0 0
  %3285 = vmatprep.subr.bf16.mxu0 0
  %3286 = vmatpush1.bf16.msra.mxu0 0
  %3287 = vmatprep.mubr.bf16.mxu0 0
  %3288 = vmatmul.mubr.bf16.gmra.mrb[0].mxu0 %v3253
  %v3289 = vpop.f32.mrb[0].mxu0
  %v3290 = vadd.f32 0.0, %v3289
  %v3291 = vpop.f32.mrb[0].mxu0
  %v3292 = vpop.f32.mrb[0].mxu0
  %v3293 = vpop.f32.mrb[0].mxu0
  %3294 = vdwg.mxu0
  %v3295 = vpack.c.bf16 %v3290, %v3290
  %v3304 = vunpack.c.l.b16 %v2730
  %v3305 = vunpack.c.l.b16 %v2731
  %v3306 = vunpack.c.l.b16 %v2732
  %v3307 = vunpack.c.l.b16 %v2733
  %v3308 = vunpack.c.l.b16 %v2734
  %v3309 = vunpack.c.l.b16 %v2735
  %v3310 = vunpack.c.l.b16 %v2736
  %v3311 = vunpack.c.l.b16 %v2737
  %v3312 = vpack.c.b16 %v3305, %v3304
  %v3313 = vpack.c.b16 %v3307, %v3306
  %v3314 = vpack.c.b16 %v3309, %v3308
  %v3315 = vpack.c.b16 %v3311, %v3310
  %v3321 = vsel %vm2657, %v3295, 0
  %3323 = vmatprep.subr.bf16.mxu0 0
  %3324 = vmatpush1.bf16.msra.mxu0 %v3312
  %3325 = vmatprep.subr.bf16.mxu0 0
  %3326 = vmatpush1.bf16.msra.mxu0 %v3313
  %3327 = vmatprep.subr.bf16.mxu0 0
  %3328 = vmatpush1.bf16.msra.mxu0 %v3314
  %3329 = vmatprep.subr.bf16.mxu0 0
  %3330 = vmatpush1.bf16.msra.mxu0 %v3315
  %3331 = vmatprep.subr.bf16.mxu0 0
  %3332 = vmatpush1.bf16.msra.mxu0 0
  %3333 = vmatprep.subr.bf16.mxu0 0
  %3334 = vmatpush1.bf16.msra.mxu0 0
  %3335 = vmatprep.subr.bf16.mxu0 0
  %3336 = vmatpush1.bf16.msra.mxu0 0
  %3337 = vmatprep.subr.bf16.mxu0 0
  %3338 = vmatpush1.bf16.msra.mxu0 0
  %3339 = vmatprep.subr.bf16.mxu0 0
  %3340 = vmatpush1.bf16.msra.mxu0 0
  %3341 = vmatprep.subr.bf16.mxu0 0
  %3342 = vmatpush1.bf16.msra.mxu0 0
  %3343 = vmatprep.subr.bf16.mxu0 0
  %3344 = vmatpush1.bf16.msra.mxu0 0
  %3345 = vmatprep.subr.bf16.mxu0 0
  %3346 = vmatpush1.bf16.msra.mxu0 0
  %3347 = vmatprep.subr.bf16.mxu0 0
  %3348 = vmatpush1.bf16.msra.mxu0 0
  %3349 = vmatprep.subr.bf16.mxu0 0
  %3350 = vmatpush1.bf16.msra.mxu0 0
  %3351 = vmatprep.subr.bf16.mxu0 0
  %3352 = vmatpush1.bf16.msra.mxu0 0
  %3353 = vmatprep.subr.bf16.mxu0 0
  %3354 = vmatpush1.bf16.msra.mxu0 0
  %3355 = vmatprep.mubr.bf16.mxu0 0
  %3356 = vmatmul.mubr.bf16.gmra.mrb[0].mxu0 %v3321
  %v3357 = vpop.f32.mrb[0].mxu0
  %v3358 = vadd.f32 0.0, %v3357
  %v3359 = vpop.f32.mrb[0].mxu0
  %v3360 = vpop.f32.mrb[0].mxu0
  %v3361 = vpop.f32.mrb[0].mxu0
  %3362 = vdwg.mxu0
  %v3363 = vadd.f32 %v3245, %v3358
  %3364 = vset.pattern.permute.xlu0 5
  %3365 = vperm.xlu0 %3364, %v2697
  %v3366 = vpop.permute.xlu0 %3365
  %vm3367 = vcmp.eq.s32.totalorder %v350, %v3366
  %v3368 = vsel %vm3367, 1.0, 0.0
  %v3369 = vpack.c.bf16 %v3368, %v3368
  %v3371 = vsel %vm2777, %v3369, 0
  %3373 = vmatprep.subr.bf16.mxu0 0
  %3374 = vmatpush1.bf16.msra.mxu0 %v2783
  %3375 = vmatprep.subr.bf16.mxu0 0
  %3376 = vmatpush1.bf16.msra.mxu0 0
  %3377 = vmatprep.subr.bf16.mxu0 0
  %3378 = vmatpush1.bf16.msra.mxu0 0
  %3379 = vmatprep.subr.bf16.mxu0 0
  %3380 = vmatpush1.bf16.msra.mxu0 0
  %3381 = vmatprep.subr.bf16.mxu0 0
  %3382 = vmatpush1.bf16.msra.mxu0 0
  %3383 = vmatprep.subr.bf16.mxu0 0
  %3384 = vmatpush1.bf16.msra.mxu0 0
  %3385 = vmatprep.subr.bf16.mxu0 0
  %3386 = vmatpush1.bf16.msra.mxu0 0
  %3387 = vmatprep.subr.bf16.mxu0 0
  %3388 = vmatpush1.bf16.msra.mxu0 0
  %3389 = vmatprep.subr.bf16.mxu0 0
  %3390 = vmatpush1.bf16.msra.mxu0 0
  %3391 = vmatprep.subr.bf16.mxu0 0
  %3392 = vmatpush1.bf16.msra.mxu0 0
  %3393 = vmatprep.subr.bf16.mxu0 0
  %3394 = vmatpush1.bf16.msra.mxu0 0
  %3395 = vmatprep.subr.bf16.mxu0 0
  %3396 = vmatpush1.bf16.msra.mxu0 0
  %3397 = vmatprep.subr.bf16.mxu0 0
  %3398 = vmatpush1.bf16.msra.mxu0 0
  %3399 = vmatprep.subr.bf16.mxu0 0
  %3400 = vmatpush1.bf16.msra.mxu0 0
  %3401 = vmatprep.subr.bf16.mxu0 0
  %3402 = vmatpush1.bf16.msra.mxu0 0
  %3403 = vmatprep.subr.bf16.mxu0 0
  %3404 = vmatpush1.bf16.msra.mxu0 0
  %3405 = vmatprep.mubr.bf16.mxu0 0
  %3406 = vmatmul.mubr.bf16.gmra.mrb[0].mxu0 %v3371
  %v3407 = vpop.f32.mrb[0].mxu0
  %v3408 = vadd.f32 0.0, %v3407
  %v3409 = vpop.f32.mrb[0].mxu0
  %v3410 = vpop.f32.mrb[0].mxu0
  %v3411 = vpop.f32.mrb[0].mxu0
  %3412 = vdwg.mxu0
  %v3413 = vpack.c.bf16 %v3408, %v3408
  %v3422 = vunpack.c.l.b16 %v2738
  %v3423 = vunpack.c.l.b16 %v2739
  %v3424 = vunpack.c.l.b16 %v2740
  %v3425 = vunpack.c.l.b16 %v2741
  %v3426 = vunpack.c.l.b16 %v2742
  %v3427 = vunpack.c.l.b16 %v2743
  %v3428 = vunpack.c.l.b16 %v2744
  %v3429 = vunpack.c.l.b16 %v2745
  %v3430 = vpack.c.b16 %v3423, %v3422
  %v3431 = vpack.c.b16 %v3425, %v3424
  %v3432 = vpack.c.b16 %v3427, %v3426
  %v3433 = vpack.c.b16 %v3429, %v3428
  %v3439 = vsel %vm2657, %v3413, 0
  %3441 = vmatprep.subr.bf16.mxu0 0
  %3442 = vmatpush1.bf16.msra.mxu0 %v3430
  %3443 = vmatprep.subr.bf16.mxu0 0
  %3444 = vmatpush1.bf16.msra.mxu0 %v3431
  %3445 = vmatprep.subr.bf16.mxu0 0
  %3446 = vmatpush1.bf16.msra.mxu0 %v3432
  %3447 = vmatprep.subr.bf16.mxu0 0
  %3448 = vmatpush1.bf16.msra.mxu0 %v3433
  %3449 = vmatprep.subr.bf16.mxu0 0
  %3450 = vmatpush1.bf16.msra.mxu0 0
  %3451 = vmatprep.subr.bf16.mxu0 0
  %3452 = vmatpush1.bf16.msra.mxu0 0
  %3453 = vmatprep.subr.bf16.mxu0 0
  %3454 = vmatpush1.bf16.msra.mxu0 0
  %3455 = vmatprep.subr.bf16.mxu0 0
  %3456 = vmatpush1.bf16.msra.mxu0 0
  %3457 = vmatprep.subr.bf16.mxu0 0
  %3458 = vmatpush1.bf16.msra.mxu0 0
  %3459 = vmatprep.subr.bf16.mxu0 0
  %3460 = vmatpush1.bf16.msra.mxu0 0
  %3461 = vmatprep.subr.bf16.mxu0 0
  %3462 = vmatpush1.bf16.msra.mxu0 0
  %3463 = vmatprep.subr.bf16.mxu0 0
  %3464 = vmatpush1.bf16.msra.mxu0 0
  %3465 = vmatprep.subr.bf16.mxu0 0
  %3466 = vmatpush1.bf16.msra.mxu0 0
  %3467 = vmatprep.subr.bf16.mxu0 0
  %3468 = vmatpush1.bf16.msra.mxu0 0
  %3469 = vmatprep.subr.bf16.mxu0 0
  %3470 = vmatpush1.bf16.msra.mxu0 0
  %3471 = vmatprep.subr.bf16.mxu0 0
  %3472 = vmatpush1.bf16.msra.mxu0 0
  %3473 = vmatprep.mubr.bf16.mxu0 0
  %3474 = vmatmul.mubr.bf16.gmra.mrb[0].mxu0 %v3439
  %v3475 = vpop.f32.mrb[0].mxu0
  %v3476 = vadd.f32 0.0, %v3475
  %v3477 = vpop.f32.mrb[0].mxu0
  %v3478 = vpop.f32.mrb[0].mxu0
  %v3479 = vpop.f32.mrb[0].mxu0
  %3480 = vdwg.mxu0
  %v3481 = vadd.f32 %v3363, %v3476
  %3482 = vset.pattern.permute.xlu0 6
  %3483 = vperm.xlu0 %3482, %v2697
  %v3484 = vpop.permute.xlu0 %3483
  %vm3485 = vcmp.eq.s32.totalorder %v350, %v3484
  %v3486 = vsel %vm3485, 1.0, 0.0
  %v3487 = vpack.c.bf16 %v3486, %v3486
  %v3489 = vsel %vm2777, %v3487, 0
  %3491 = vmatprep.subr.bf16.mxu0 0
  %3492 = vmatpush1.bf16.msra.mxu0 %v2783
  %3493 = vmatprep.subr.bf16.mxu0 0
  %3494 = vmatpush1.bf16.msra.mxu0 0
  %3495 = vmatprep.subr.bf16.mxu0 0
  %3496 = vmatpush1.bf16.msra.mxu0 0
  %3497 = vmatprep.subr.bf16.mxu0 0
  %3498 = vmatpush1.bf16.msra.mxu0 0
  %3499 = vmatprep.subr.bf16.mxu0 0
  %3500 = vmatpush1.bf16.msra.mxu0 0
  %3501 = vmatprep.subr.bf16.mxu0 0
  %3502 = vmatpush1.bf16.msra.mxu0 0
  %3503 = vmatprep.subr.bf16.mxu0 0
  %3504 = vmatpush1.bf16.msra.mxu0 0
  %3505 = vmatprep.subr.bf16.mxu0 0
  %3506 = vmatpush1.bf16.msra.mxu0 0
  %3507 = vmatprep.subr.bf16.mxu0 0
  %3508 = vmatpush1.bf16.msra.mxu0 0
  %3509 = vmatprep.subr.bf16.mxu0 0
  %3510 = vmatpush1.bf16.msra.mxu0 0
  %3511 = vmatprep.subr.bf16.mxu0 0
  %3512 = vmatpush1.bf16.msra.mxu0 0
  %3513 = vmatprep.subr.bf16.mxu0 0
  %3514 = vmatpush1.bf16.msra.mxu0 0
  %3515 = vmatprep.subr.bf16.mxu0 0
  %3516 = vmatpush1.bf16.msra.mxu0 0
  %3517 = vmatprep.subr.bf16.mxu0 0
  %3518 = vmatpush1.bf16.msra.mxu0 0
  %3519 = vmatprep.subr.bf16.mxu0 0
  %3520 = vmatpush1.bf16.msra.mxu0 0
  %3521 = vmatprep.subr.bf16.mxu0 0
  %3522 = vmatpush1.bf16.msra.mxu0 0
  %3523 = vmatprep.mubr.bf16.mxu0 0
  %3524 = vmatmul.mubr.bf16.gmra.mrb[0].mxu0 %v3489
  %v3525 = vpop.f32.mrb[0].mxu0
  %v3526 = vadd.f32 0.0, %v3525
  %v3527 = vpop.f32.mrb[0].mxu0
  %v3528 = vpop.f32.mrb[0].mxu0
  %v3529 = vpop.f32.mrb[0].mxu0
  %3530 = vdwg.mxu0
  %v3531 = vpack.c.bf16 %v3526, %v3526
  %v3540 = vunpack.c.l.b16 %v2746
  %v3541 = vunpack.c.l.b16 %v2747
  %v3542 = vunpack.c.l.b16 %v2748
  %v3543 = vunpack.c.l.b16 %v2749
  %v3544 = vunpack.c.l.b16 %v2750
  %v3545 = vunpack.c.l.b16 %v2751
  %v3546 = vunpack.c.l.b16 %v2752
  %v3547 = vunpack.c.l.b16 %v2753
  %v3548 = vpack.c.b16 %v3541, %v3540
  %v3549 = vpack.c.b16 %v3543, %v3542
  %v3550 = vpack.c.b16 %v3545, %v3544
  %v3551 = vpack.c.b16 %v3547, %v3546
  %v3557 = vsel %vm2657, %v3531, 0
  %3559 = vmatprep.subr.bf16.mxu0 0
  %3560 = vmatpush1.bf16.msra.mxu0 %v3548
  %3561 = vmatprep.subr.bf16.mxu0 0
  %3562 = vmatpush1.bf16.msra.mxu0 %v3549
  %3563 = vmatprep.subr.bf16.mxu0 0
  %3564 = vmatpush1.bf16.msra.mxu0 %v3550
  %3565 = vmatprep.subr.bf16.mxu0 0
  %3566 = vmatpush1.bf16.msra.mxu0 %v3551
  %3567 = vmatprep.subr.bf16.mxu0 0
  %3568 = vmatpush1.bf16.msra.mxu0 0
  %3569 = vmatprep.subr.bf16.mxu0 0
  %3570 = vmatpush1.bf16.msra.mxu0 0
  %3571 = vmatprep.subr.bf16.mxu0 0
  %3572 = vmatpush1.bf16.msra.mxu0 0
  %3573 = vmatprep.subr.bf16.mxu0 0
  %3574 = vmatpush1.bf16.msra.mxu0 0
  %3575 = vmatprep.subr.bf16.mxu0 0
  %3576 = vmatpush1.bf16.msra.mxu0 0
  %3577 = vmatprep.subr.bf16.mxu0 0
  %3578 = vmatpush1.bf16.msra.mxu0 0
  %3579 = vmatprep.subr.bf16.mxu0 0
  %3580 = vmatpush1.bf16.msra.mxu0 0
  %3581 = vmatprep.subr.bf16.mxu0 0
  %3582 = vmatpush1.bf16.msra.mxu0 0
  %3583 = vmatprep.subr.bf16.mxu0 0
  %3584 = vmatpush1.bf16.msra.mxu0 0
  %3585 = vmatprep.subr.bf16.mxu0 0
  %3586 = vmatpush1.bf16.msra.mxu0 0
  %3587 = vmatprep.subr.bf16.mxu0 0
  %3588 = vmatpush1.bf16.msra.mxu0 0
  %3589 = vmatprep.subr.bf16.mxu0 0
  %3590 = vmatpush1.bf16.msra.mxu0 0
  %3591 = vmatprep.mubr.bf16.mxu0 0
  %3592 = vmatmul.mubr.bf16.gmra.mrb[0].mxu0 %v3557
  %v3593 = vpop.f32.mrb[0].mxu0
  %v3594 = vadd.f32 0.0, %v3593
  %v3595 = vpop.f32.mrb[0].mxu0
  %v3596 = vpop.f32.mrb[0].mxu0
  %v3597 = vpop.f32.mrb[0].mxu0
  %3598 = vdwg.mxu0
  %v3599 = vadd.f32 %v3481, %v3594
  %3600 = vset.pattern.permute.xlu0 7
  %3601 = vperm.xlu0 %3600, %v2697
  %v3602 = vpop.permute.xlu0 %3601
  %vm3603 = vcmp.eq.s32.totalorder %v350, %v3602
  %v3604 = vsel %vm3603, 1.0, 0.0
  %v3605 = vpack.c.bf16 %v3604, %v3604
  %v3607 = vsel %vm2777, %v3605, 0
  %3609 = vmatprep.subr.bf16.mxu0 0
  %3610 = vmatpush1.bf16.msra.mxu0 %v2783
  %3611 = vmatprep.subr.bf16.mxu0 0
  %3612 = vmatpush1.bf16.msra.mxu0 0
  %3613 = vmatprep.subr.bf16.mxu0 0
  %3614 = vmatpush1.bf16.msra.mxu0 0
  %3615 = vmatprep.subr.bf16.mxu0 0
  %3616 = vmatpush1.bf16.msra.mxu0 0
  %3617 = vmatprep.subr.bf16.mxu0 0
  %3618 = vmatpush1.bf16.msra.mxu0 0
  %3619 = vmatprep.subr.bf16.mxu0 0
  %3620 = vmatpush1.bf16.msra.mxu0 0
  %3621 = vmatprep.subr.bf16.mxu0 0
  %3622 = vmatpush1.bf16.msra.mxu0 0
  %3623 = vmatprep.subr.bf16.mxu0 0
  %3624 = vmatpush1.bf16.msra.mxu0 0
  %3625 = vmatprep.subr.bf16.mxu0 0
  %3626 = vmatpush1.bf16.msra.mxu0 0
  %3627 = vmatprep.subr.bf16.mxu0 0
  %3628 = vmatpush1.bf16.msra.mxu0 0
  %3629 = vmatprep.subr.bf16.mxu0 0
  %3630 = vmatpush1.bf16.msra.mxu0 0
  %3631 = vmatprep.subr.bf16.mxu0 0
  %3632 = vmatpush1.bf16.msra.mxu0 0
  %3633 = vmatprep.subr.bf16.mxu0 0
  %3634 = vmatpush1.bf16.msra.mxu0 0
  %3635 = vmatprep.subr.bf16.mxu0 0
  %3636 = vmatpush1.bf16.msra.mxu0 0
  %3637 = vmatprep.subr.bf16.mxu0 0
  %3638 = vmatpush1.bf16.msra.mxu0 0
  %3639 = vmatprep.subr.bf16.mxu0 0
  %3640 = vmatpush1.bf16.msra.mxu0 0
  %3641 = vmatprep.mubr.bf16.mxu0 0
  %3642 = vmatmul.mubr.bf16.gmra.mrb[0].mxu0 %v3607
  %v3643 = vpop.f32.mrb[0].mxu0
  %v3644 = vadd.f32 0.0, %v3643
  %v3645 = vpop.f32.mrb[0].mxu0
  %v3646 = vpop.f32.mrb[0].mxu0
  %v3647 = vpop.f32.mrb[0].mxu0
  %3648 = vdwg.mxu0
  %v3649 = vpack.c.bf16 %v3644, %v3644
  %v3658 = vunpack.c.l.b16 %v2754
  %v3659 = vunpack.c.l.b16 %v2755
  %v3660 = vunpack.c.l.b16 %v2756
  %v3661 = vunpack.c.l.b16 %v2757
  %v3662 = vunpack.c.l.b16 %v2758
  %v3663 = vunpack.c.l.b16 %v2759
  %v3664 = vunpack.c.l.b16 %v2760
  %v3665 = vunpack.c.l.b16 %v2761
  %v3666 = vpack.c.b16 %v3659, %v3658
  %v3667 = vpack.c.b16 %v3661, %v3660
  %v3668 = vpack.c.b16 %v3663, %v3662
  %v3669 = vpack.c.b16 %v3665, %v3664
  %v3675 = vsel %vm2657, %v3649, 0
  %3677 = vmatprep.subr.bf16.mxu0 0
  %3678 = vmatpush1.bf16.msra.mxu0 %v3666
  %3679 = vmatprep.subr.bf16.mxu0 0
  %3680 = vmatpush1.bf16.msra.mxu0 %v3667
  %3681 = vmatprep.subr.bf16.mxu0 0
  %3682 = vmatpush1.bf16.msra.mxu0 %v3668
  %3683 = vmatprep.subr.bf16.mxu0 0
  %3684 = vmatpush1.bf16.msra.mxu0 %v3669
  %3685 = vmatprep.subr.bf16.mxu0 0
  %3686 = vmatpush1.bf16.msra.mxu0 0
  %3687 = vmatprep.subr.bf16.mxu0 0
  %3688 = vmatpush1.bf16.msra.mxu0 0
  %3689 = vmatprep.subr.bf16.mxu0 0
  %3690 = vmatpush1.bf16.msra.mxu0 0
  %3691 = vmatprep.subr.bf16.mxu0 0
  %3692 = vmatpush1.bf16.msra.mxu0 0
  %3693 = vmatprep.subr.bf16.mxu0 0
  %3694 = vmatpush1.bf16.msra.mxu0 0
  %3695 = vmatprep.subr.bf16.mxu0 0
  %3696 = vmatpush1.bf16.msra.mxu0 0
  %3697 = vmatprep.subr.bf16.mxu0 0
  %3698 = vmatpush1.bf16.msra.mxu0 0
  %3699 = vmatprep.subr.bf16.mxu0 0
  %3700 = vmatpush1.bf16.msra.mxu0 0
  %3701 = vmatprep.subr.bf16.mxu0 0
  %3702 = vmatpush1.bf16.msra.mxu0 0
  %3703 = vmatprep.subr.bf16.mxu0 0
  %3704 = vmatpush1.bf16.msra.mxu0 0
  %3705 = vmatprep.subr.bf16.mxu0 0
  %3706 = vmatpush1.bf16.msra.mxu0 0
  %3707 = vmatprep.subr.bf16.mxu0 0
  %3708 = vmatpush1.bf16.msra.mxu0 0
  %3709 = vmatprep.mubr.bf16.mxu0 0
  %3710 = vmatmul.mubr.bf16.gmra.mrb[0].mxu0 %v3675
  %v3711 = vpop.f32.mrb[0].mxu0
  %v3712 = vadd.f32 0.0, %v3711
  %v3713 = vpop.f32.mrb[0].mxu0
  %v3714 = vpop.f32.mrb[0].mxu0
  %v3715 = vpop.f32.mrb[0].mxu0
  %3716 = vdwg.mxu0
  %v3717 = vadd.f32 %v3599, %v3712
  %3718 = vset.pattern.permute.xlu0 8
  %3719 = vperm.xlu0 %3718, %v2697
  %v3720 = vpop.permute.xlu0 %3719
  %vm3721 = vcmp.eq.s32.totalorder %v350, %v3720
  %v3722 = vsel %vm3721, 1.0, 0.0
  %v3723 = vpack.c.bf16 %v3722, %v3722
  %v3725 = vsel %vm2777, %v3723, 0
  %3727 = vmatprep.subr.bf16.mxu0 0
  %3728 = vmatpush1.bf16.msra.mxu0 %v2783
  %3729 = vmatprep.subr.bf16.mxu0 0
  %3730 = vmatpush1.bf16.msra.mxu0 0
  %3731 = vmatprep.subr.bf16.mxu0 0
  %3732 = vmatpush1.bf16.msra.mxu0 0
  %3733 = vmatprep.subr.bf16.mxu0 0
  %3734 = vmatpush1.bf16.msra.mxu0 0
  %3735 = vmatprep.subr.bf16.mxu0 0
  %3736 = vmatpush1.bf16.msra.mxu0 0
  %3737 = vmatprep.subr.bf16.mxu0 0
  %3738 = vmatpush1.bf16.msra.mxu0 0
  %3739 = vmatprep.subr.bf16.mxu0 0
  %3740 = vmatpush1.bf16.msra.mxu0 0
  %3741 = vmatprep.subr.bf16.mxu0 0
  %3742 = vmatpush1.bf16.msra.mxu0 0
  %3743 = vmatprep.subr.bf16.mxu0 0
  %3744 = vmatpush1.bf16.msra.mxu0 0
  %3745 = vmatprep.subr.bf16.mxu0 0
  %3746 = vmatpush1.bf16.msra.mxu0 0
  %3747 = vmatprep.subr.bf16.mxu0 0
  %3748 = vmatpush1.bf16.msra.mxu0 0
  %3749 = vmatprep.subr.bf16.mxu0 0
  %3750 = vmatpush1.bf16.msra.mxu0 0
  %3751 = vmatprep.subr.bf16.mxu0 0
  %3752 = vmatpush1.bf16.msra.mxu0 0
  %3753 = vmatprep.subr.bf16.mxu0 0
  %3754 = vmatpush1.bf16.msra.mxu0 0
  %3755 = vmatprep.subr.bf16.mxu0 0
  %3756 = vmatpush1.bf16.msra.mxu0 0
  %3757 = vmatprep.subr.bf16.mxu0 0
  %3758 = vmatpush1.bf16.msra.mxu0 0
  %3759 = vmatprep.mubr.bf16.mxu0 0
  %3760 = vmatmul.mubr.bf16.gmra.mrb[0].mxu0 %v3725
  %v3761 = vpop.f32.mrb[0].mxu0
  %v3762 = vadd.f32 0.0, %v3761
  %v3763 = vpop.f32.mrb[0].mxu0
  %v3764 = vpop.f32.mrb[0].mxu0
  %v3765 = vpop.f32.mrb[0].mxu0
  %3766 = vdwg.mxu0
  %v3767 = vpack.c.bf16 %v3762, %v3762
  %v3776 = vunpack.c.l.b16 %v2762
  %v3777 = vunpack.c.l.b16 %v2763
  %v3778 = vunpack.c.l.b16 %v2764
  %v3779 = vunpack.c.l.b16 %v2765
  %v3780 = vunpack.c.l.b16 %v2766
  %v3781 = vunpack.c.l.b16 %v2767
  %v3782 = vunpack.c.l.b16 %v2768
  %v3783 = vunpack.c.l.b16 %v2769
  %v3784 = vpack.c.b16 %v3777, %v3776
  %v3785 = vpack.c.b16 %v3779, %v3778
  %v3786 = vpack.c.b16 %v3781, %v3780
  %v3787 = vpack.c.b16 %v3783, %v3782
  %v3793 = vsel %vm2657, %v3767, 0
  %3795 = vmatprep.subr.bf16.mxu0 0
  %3796 = vmatpush1.bf16.msra.mxu0 %v3784
  %3797 = vmatprep.subr.bf16.mxu0 0
  %3798 = vmatpush1.bf16.msra.mxu0 %v3785
  %3799 = vmatprep.subr.bf16.mxu0 0
  %3800 = vmatpush1.bf16.msra.mxu0 %v3786
  %3801 = vmatprep.subr.bf16.mxu0 0
  %3802 = vmatpush1.bf16.msra.mxu0 %v3787
  %3803 = vmatprep.subr.bf16.mxu0 0
  %3804 = vmatpush1.bf16.msra.mxu0 0
  %3805 = vmatprep.subr.bf16.mxu0 0
  %3806 = vmatpush1.bf16.msra.mxu0 0
  %3807 = vmatprep.subr.bf16.mxu0 0
  %3808 = vmatpush1.bf16.msra.mxu0 0
  %3809 = vmatprep.subr.bf16.mxu0 0
  %3810 = vmatpush1.bf16.msra.mxu0 0
  %3811 = vmatprep.subr.bf16.mxu0 0
  %3812 = vmatpush1.bf16.msra.mxu0 0
  %3813 = vmatprep.subr.bf16.mxu0 0
  %3814 = vmatpush1.bf16.msra.mxu0 0
  %3815 = vmatprep.subr.bf16.mxu0 0
  %3816 = vmatpush1.bf16.msra.mxu0 0
  %3817 = vmatprep.subr.bf16.mxu0 0
  %3818 = vmatpush1.bf16.msra.mxu0 0
  %3819 = vmatprep.subr.bf16.mxu0 0
  %3820 = vmatpush1.bf16.msra.mxu0 0
  %3821 = vmatprep.subr.bf16.mxu0 0
  %3822 = vmatpush1.bf16.msra.mxu0 0
  %3823 = vmatprep.subr.bf16.mxu0 0
  %3824 = vmatpush1.bf16.msra.mxu0 0
  %3825 = vmatprep.subr.bf16.mxu0 0
  %3826 = vmatpush1.bf16.msra.mxu0 0
  %3827 = vmatprep.mubr.bf16.mxu0 0
  %3828 = vmatmul.mubr.bf16.gmra.mrb[0].mxu0 %v3793
  %v3829 = vpop.f32.mrb[0].mxu0
  %v3830 = vadd.f32 0.0, %v3829
  %v3831 = vpop.f32.mrb[0].mxu0
  %v3832 = vpop.f32.mrb[0].mxu0
  %v3833 = vpop.f32.mrb[0].mxu0
  %3834 = vdwg.mxu0
  %v3835 = vadd.f32 %v3717, %v3830
  %v3836 = vld [vmem:[%s13] sm:$0x1]
  %v3837 = vld [vmem:[%s14] sm:$0x1]
  %v3838 = vrot.slane %v3835, 4
  %v3839 = vadd.f32 %v3835, %v3838
  %v3840 = vrot.slane %v3839, 2
  %v3841 = vadd.f32 %v3839, %v3840
  %v3842 = vrot.slane %v3841, 1
  %v3843 = vadd.f32 %v3841, %v3842
  %v3844 = vmul.f32 %v3843, %v2665
  %v3845 = vsub.f32 %v3835, %v3844
  %v3846 = vmul.f32 %v3845, %v3845
  %v3847 = vrot.slane %v3846, 4
  %v3848 = vadd.f32 %v3846, %v3847
  %v3849 = vrot.slane %v3848, 2
  %v3850 = vadd.f32 %v3848, %v3849
  %v3851 = vrot.slane %v3850, 1
  %v3852 = vadd.f32 %v3850, %v3851
  %v3853 = vmul.f32 %v3852, %v2665
  %v3854 = vadd.f32 %v3853, 1e-05
  %v3855 = vrsqrt.pop %v3854
  %v3856 = vmul.f32 %v3845, %v3855
  %v3858 = vlaneseq
  %v3859 = vshrl.u32 %v3858, 7
  %v3860 = vsub.s32 0, %v3859
  %v3861 = vrot.slane %v3836, %v3860
  %v3863 = vmul.f32 %v3856, %v3861
  %v3865 = vlaneseq
  %v3866 = vshrl.u32 %v3865, 7
  %v3867 = vsub.s32 0, %v3866
  %v3868 = vrot.slane %v3837, %v3867
  %v3870 = vadd.f32 %v3863, %v3868
  %vm3871 = vcmp.gt.f32.partialorder %v3870, 0.0
  %v3872 = vmul.f32 %v3870, 0.2
  %v3873 = vsel %vm3871, %v3870, %v3872
  %v3874 = vld [vmem:[%s15] sm:$0xff]
  %v3875 = vld [vmem:[%s16] sm:$0xf]
  %v3876 = vld [vmem:[%s16 + $0x4] sm:$0xf]
  %v3877 = vld [vmem:[%s16 + $0x8] sm:$0xf]
  %v3878 = vld [vmem:[%s16 + $0xc] sm:$0xf]
  %v3879 = vld [vmem:[%s16 + $0x10] sm:$0xf]
  %v3880 = vld [vmem:[%s16 + $0x14] sm:$0xf]
  %v3881 = vld [vmem:[%s16 + $0x18] sm:$0xf]
  %v3882 = vld [vmem:[%s16 + $0x1c] sm:$0xf]
  %v3883 = vld [vmem:[%s16 + $0x20] sm:$0xf]
  %v3884 = vld [vmem:[%s16 + $0x24] sm:$0xf]
  %v3885 = vld [vmem:[%s16 + $0x28] sm:$0xf]
  %v3886 = vld [vmem:[%s16 + $0x2c] sm:$0xf]
  %v3887 = vld [vmem:[%s16 + $0x30] sm:$0xf]
  %v3888 = vld [vmem:[%s16 + $0x34] sm:$0xf]
  %v3889 = vld [vmem:[%s16 + $0x38] sm:$0xf]
  %v3890 = vld [vmem:[%s16 + $0x3c] sm:$0xf]
  %v3891 = vld [vmem:[%s16 + $0x40] sm:$0xf]
  %v3892 = vld [vmem:[%s16 + $0x44] sm:$0xf]
  %v3893 = vld [vmem:[%s16 + $0x48] sm:$0xf]
  %v3894 = vld [vmem:[%s16 + $0x4c] sm:$0xf]
  %v3895 = vld [vmem:[%s16 + $0x50] sm:$0xf]
  %v3896 = vld [vmem:[%s16 + $0x54] sm:$0xf]
  %v3897 = vld [vmem:[%s16 + $0x58] sm:$0xf]
  %v3898 = vld [vmem:[%s16 + $0x5c] sm:$0xf]
  %v3899 = vld [vmem:[%s16 + $0x60] sm:$0xf]
  %v3900 = vld [vmem:[%s16 + $0x64] sm:$0xf]
  %v3901 = vld [vmem:[%s16 + $0x68] sm:$0xf]
  %v3902 = vld [vmem:[%s16 + $0x6c] sm:$0xf]
  %v3903 = vld [vmem:[%s16 + $0x70] sm:$0xf]
  %v3904 = vld [vmem:[%s16 + $0x74] sm:$0xf]
  %v3905 = vld [vmem:[%s16 + $0x78] sm:$0xf]
  %v3906 = vld [vmem:[%s16 + $0x7c] sm:$0xf]
  %v3907 = vld [vmem:[%s16 + $0x80] sm:$0xf]
  %v3908 = vld [vmem:[%s16 + $0x84] sm:$0xf]
  %v3909 = vld [vmem:[%s16 + $0x88] sm:$0xf]
  %v3910 = vld [vmem:[%s16 + $0x8c] sm:$0xf]
  %v3911 = vld [vmem:[%s16 + $0x90] sm:$0xf]
  %v3912 = vld [vmem:[%s16 + $0x94] sm:$0xf]
  %v3913 = vld [vmem:[%s16 + $0x98] sm:$0xf]
  %v3914 = vld [vmem:[%s16 + $0x9c] sm:$0xf]
  %v3915 = vld [vmem:[%s16 + $0xa0] sm:$0xf]
  %v3916 = vld [vmem:[%s16 + $0xa4] sm:$0xf]
  %v3917 = vld [vmem:[%s16 + $0xa8] sm:$0xf]
  %v3918 = vld [vmem:[%s16 + $0xac] sm:$0xf]
  %v3919 = vld [vmem:[%s16 + $0xb0] sm:$0xf]
  %v3920 = vld [vmem:[%s16 + $0xb4] sm:$0xf]
  %v3921 = vld [vmem:[%s16 + $0xb8] sm:$0xf]
  %v3922 = vld [vmem:[%s16 + $0xbc] sm:$0xf]
  %v3923 = vld [vmem:[%s16 + $0xc0] sm:$0xf]
  %v3924 = vld [vmem:[%s16 + $0xc4] sm:$0xf]
  %v3925 = vld [vmem:[%s16 + $0xc8] sm:$0xf]
  %v3926 = vld [vmem:[%s16 + $0xcc] sm:$0xf]
  %v3927 = vld [vmem:[%s16 + $0xd0] sm:$0xf]
  %v3928 = vld [vmem:[%s16 + $0xd4] sm:$0xf]
  %v3929 = vld [vmem:[%s16 + $0xd8] sm:$0xf]
  %v3930 = vld [vmem:[%s16 + $0xdc] sm:$0xf]
  %v3931 = vld [vmem:[%s16 + $0xe0] sm:$0xf]
  %v3932 = vld [vmem:[%s16 + $0xe4] sm:$0xf]
  %v3933 = vld [vmem:[%s16 + $0xe8] sm:$0xf]
  %v3934 = vld [vmem:[%s16 + $0xec] sm:$0xf]
  %v3935 = vld [vmem:[%s16 + $0xf0] sm:$0xf]
  %v3936 = vld [vmem:[%s16 + $0xf4] sm:$0xf]
  %v3937 = vld [vmem:[%s16 + $0xf8] sm:$0xf]
  %v3938 = vld [vmem:[%s16 + $0xfc] sm:$0xf]
  %v3939 = vld [vmem:[%s16 + $0x100] sm:$0xf]
  %v3940 = vld [vmem:[%s16 + $0x104] sm:$0xf]
  %v3941 = vld [vmem:[%s16 + $0x108] sm:$0xf]
  %v3942 = vld [vmem:[%s16 + $0x10c] sm:$0xf]
  %v3943 = vld [vmem:[%s16 + $0x110] sm:$0xf]
  %v3944 = vld [vmem:[%s16 + $0x114] sm:$0xf]
  %v3945 = vld [vmem:[%s16 + $0x118] sm:$0xf]
  %v3946 = vld [vmem:[%s16 + $0x11c] sm:$0xf]
  %v3947 = vld [vmem:[%s16 + $0x120] sm:$0xf]
  %v3948 = vld [vmem:[%s16 + $0x124] sm:$0xf]
  %v3949 = vld [vmem:[%s16 + $0x128] sm:$0xf]
  %v3950 = vld [vmem:[%s16 + $0x12c] sm:$0xf]
  %v3951 = vld [vmem:[%s16 + $0x130] sm:$0xf]
  %v3952 = vld [vmem:[%s16 + $0x134] sm:$0xf]
  %v3953 = vld [vmem:[%s16 + $0x138] sm:$0xf]
  %v3954 = vld [vmem:[%s16 + $0x13c] sm:$0xf]
  %v3955 = vld [vmem:[%s16 + $0x140] sm:$0xf]
  %v3956 = vld [vmem:[%s16 + $0x144] sm:$0xf]
  %v3957 = vld [vmem:[%s16 + $0x148] sm:$0xf]
  %v3958 = vld [vmem:[%s16 + $0x14c] sm:$0xf]
  %v3959 = vld [vmem:[%s16 + $0x150] sm:$0xf]
  %v3960 = vld [vmem:[%s16 + $0x154] sm:$0xf]
  %v3961 = vld [vmem:[%s16 + $0x158] sm:$0xf]
  %v3962 = vld [vmem:[%s16 + $0x15c] sm:$0xf]
  %v3963 = vld [vmem:[%s16 + $0x160] sm:$0xf]
  %v3964 = vld [vmem:[%s16 + $0x164] sm:$0xf]
  %v3965 = vld [vmem:[%s16 + $0x168] sm:$0xf]
  %v3966 = vld [vmem:[%s16 + $0x16c] sm:$0xf]
  %v3967 = vld [vmem:[%s16 + $0x170] sm:$0xf]
  %v3968 = vld [vmem:[%s16 + $0x174] sm:$0xf]
  %v3969 = vld [vmem:[%s16 + $0x178] sm:$0xf]
  %v3970 = vld [vmem:[%s16 + $0x17c] sm:$0xf]
  %v3971 = vld [vmem:[%s16 + $0x180] sm:$0xf]
  %v3972 = vld [vmem:[%s16 + $0x184] sm:$0xf]
  %v3973 = vld [vmem:[%s16 + $0x188] sm:$0xf]
  %v3974 = vld [vmem:[%s16 + $0x18c] sm:$0xf]
  %v3975 = vld [vmem:[%s16 + $0x190] sm:$0xf]
  %v3976 = vld [vmem:[%s16 + $0x194] sm:$0xf]
  %v3977 = vld [vmem:[%s16 + $0x198] sm:$0xf]
  %v3978 = vld [vmem:[%s16 + $0x19c] sm:$0xf]
  %v3979 = vld [vmem:[%s16 + $0x1a0] sm:$0xf]
  %v3980 = vld [vmem:[%s16 + $0x1a4] sm:$0xf]
  %v3981 = vld [vmem:[%s16 + $0x1a8] sm:$0xf]
  %v3982 = vld [vmem:[%s16 + $0x1ac] sm:$0xf]
  %v3983 = vld [vmem:[%s16 + $0x1b0] sm:$0xf]
  %v3984 = vld [vmem:[%s16 + $0x1b4] sm:$0xf]
  %v3985 = vld [vmem:[%s16 + $0x1b8] sm:$0xf]
  %v3986 = vld [vmem:[%s16 + $0x1bc] sm:$0xf]
  %v3987 = vld [vmem:[%s16 + $0x1c0] sm:$0xf]
  %v3988 = vld [vmem:[%s16 + $0x1c4] sm:$0xf]
  %v3989 = vld [vmem:[%s16 + $0x1c8] sm:$0xf]
  %v3990 = vld [vmem:[%s16 + $0x1cc] sm:$0xf]
  %v3991 = vld [vmem:[%s16 + $0x1d0] sm:$0xf]
  %v3992 = vld [vmem:[%s16 + $0x1d4] sm:$0xf]
  %v3993 = vld [vmem:[%s16 + $0x1d8] sm:$0xf]
  %v3994 = vld [vmem:[%s16 + $0x1dc] sm:$0xf]
  %v3995 = vld [vmem:[%s16 + $0x1e0] sm:$0xf]
  %v3996 = vld [vmem:[%s16 + $0x1e4] sm:$0xf]
  %v3997 = vld [vmem:[%s16 + $0x1e8] sm:$0xf]
  %v3998 = vld [vmem:[%s16 + $0x1ec] sm:$0xf]
  %v3999 = vld [vmem:[%s16 + $0x1f0] sm:$0xf]
  %v4000 = vld [vmem:[%s16 + $0x1f4] sm:$0xf]
  %v4001 = vld [vmem:[%s16 + $0x1f8] sm:$0xf]
  %v4002 = vld [vmem:[%s16 + $0x1fc] sm:$0xf]
  %v4003 = vld [vmem:[%s16 + $0x200] sm:$0xf]
  %v4004 = vld [vmem:[%s16 + $0x204] sm:$0xf]
  %v4005 = vld [vmem:[%s16 + $0x208] sm:$0xf]
  %v4006 = vld [vmem:[%s16 + $0x20c] sm:$0xf]
  %v4007 = vld [vmem:[%s16 + $0x210] sm:$0xf]
  %v4008 = vld [vmem:[%s16 + $0x214] sm:$0xf]
  %v4009 = vld [vmem:[%s16 + $0x218] sm:$0xf]
  %v4010 = vld [vmem:[%s16 + $0x21c] sm:$0xf]
  %v4011 = vld [vmem:[%s16 + $0x220] sm:$0xf]
  %v4012 = vld [vmem:[%s16 + $0x224] sm:$0xf]
  %v4013 = vld [vmem:[%s16 + $0x228] sm:$0xf]
  %v4014 = vld [vmem:[%s16 + $0x22c] sm:$0xf]
  %v4015 = vld [vmem:[%s16 + $0x230] sm:$0xf]
  %v4016 = vld [vmem:[%s16 + $0x234] sm:$0xf]
  %v4017 = vld [vmem:[%s16 + $0x238] sm:$0xf]
  %v4018 = vld [vmem:[%s16 + $0x23c] sm:$0xf]
  %v4019 = vpack.c.bf16 %v3873, %v3873
  %4020 = vset.pattern.permute.xlu0 0
  %4021 = vperm.xlu0 %4020, %v3874
  %v4022 = vpop.permute.xlu0 %4021
  %vm4023 = vcmp.eq.s32.totalorder %v350, %v4022
  %v4024 = vsel %vm4023, 1.0, 0.0
  %v4025 = vpack.c.bf16 %v4024, %v4024
  %v4027 = vsel %vm2777, %v4025, 0
  %v4030 = vsel %vm2781, %v4019, 0
  %4032 = vmatprep.subr.bf16.mxu0 0
  %4033 = vmatpush1.bf16.msra.mxu0 %v4030
  %4034 = vmatprep.subr.bf16.mxu0 0
  %4035 = vmatpush1.bf16.msra.mxu0 0
  %4036 = vmatprep.subr.bf16.mxu0 0
  %4037 = vmatpush1.bf16.msra.mxu0 0
  %4038 = vmatprep.subr.bf16.mxu0 0
  %4039 = vmatpush1.bf16.msra.mxu0 0
  %4040 = vmatprep.subr.bf16.mxu0 0
  %4041 = vmatpush1.bf16.msra.mxu0 0
  %4042 = vmatprep.subr.bf16.mxu0 0
  %4043 = vmatpush1.bf16.msra.mxu0 0
  %4044 = vmatprep.subr.bf16.mxu0 0
  %4045 = vmatpush1.bf16.msra.mxu0 0
  %4046 = vmatprep.subr.bf16.mxu0 0
  %4047 = vmatpush1.bf16.msra.mxu0 0
  %4048 = vmatprep.subr.bf16.mxu0 0
  %4049 = vmatpush1.bf16.msra.mxu0 0
  %4050 = vmatprep.subr.bf16.mxu0 0
  %4051 = vmatpush1.bf16.msra.mxu0 0
  %4052 = vmatprep.subr.bf16.mxu0 0
  %4053 = vmatpush1.bf16.msra.mxu0 0
  %4054 = vmatprep.subr.bf16.mxu0 0
  %4055 = vmatpush1.bf16.msra.mxu0 0
  %4056 = vmatprep.subr.bf16.mxu0 0
  %4057 = vmatpush1.bf16.msra.mxu0 0
  %4058 = vmatprep.subr.bf16.mxu0 0
  %4059 = vmatpush1.bf16.msra.mxu0 0
  %4060 = vmatprep.subr.bf16.mxu0 0
  %4061 = vmatpush1.bf16.msra.mxu0 0
  %4062 = vmatprep.subr.bf16.mxu0 0
  %4063 = vmatpush1.bf16.msra.mxu0 0
  %4064 = vmatprep.mubr.bf16.mxu0 0
  %4065 = vmatmul.mubr.bf16.gmra.mrb[0].mxu0 %v4027
  %v4066 = vpop.f32.mrb[0].mxu0
  %v4067 = vadd.f32 0.0, %v4066
  %v4068 = vpop.f32.mrb[0].mxu0
  %v4069 = vpop.f32.mrb[0].mxu0
  %v4070 = vpop.f32.mrb[0].mxu0
  %4071 = vdwg.mxu0
  %v4072 = vpack.c.bf16 %v4067, %v4067
  %4073 = vset.pattern.permute.xlu0 1
  %4074 = vperm.xlu0 %4073, %v3874
  %v4075 = vpop.permute.xlu0 %4074
  %vm4076 = vcmp.eq.s32.totalorder %v350, %v4075
  %v4077 = vsel %vm4076, 1.0, 0.0
  %v4078 = vpack.c.bf16 %v4077, %v4077
  %v4080 = vsel %vm2777, %v4078, 0
  %4082 = vmatprep.subr.bf16.mxu0 0
  %4083 = vmatpush1.bf16.msra.mxu0 %v4030
  %4084 = vmatprep.subr.bf16.mxu0 0
  %4085 = vmatpush1.bf16.msra.mxu0 0
  %4086 = vmatprep.subr.bf16.mxu0 0
  %4087 = vmatpush1.bf16.msra.mxu0 0
  %4088 = vmatprep.subr.bf16.mxu0 0
  %4089 = vmatpush1.bf16.msra.mxu0 0
  %4090 = vmatprep.subr.bf16.mxu0 0
  %4091 = vmatpush1.bf16.msra.mxu0 0
  %4092 = vmatprep.subr.bf16.mxu0 0
  %4093 = vmatpush1.bf16.msra.mxu0 0
  %4094 = vmatprep.subr.bf16.mxu0 0
  %4095 = vmatpush1.bf16.msra.mxu0 0
  %4096 = vmatprep.subr.bf16.mxu0 0
  %4097 = vmatpush1.bf16.msra.mxu0 0
  %4098 = vmatprep.subr.bf16.mxu0 0
  %4099 = vmatpush1.bf16.msra.mxu0 0
  %4100 = vmatprep.subr.bf16.mxu0 0
  %4101 = vmatpush1.bf16.msra.mxu0 0
  %4102 = vmatprep.subr.bf16.mxu0 0
  %4103 = vmatpush1.bf16.msra.mxu0 0
  %4104 = vmatprep.subr.bf16.mxu0 0
  %4105 = vmatpush1.bf16.msra.mxu0 0
  %4106 = vmatprep.subr.bf16.mxu0 0
  %4107 = vmatpush1.bf16.msra.mxu0 0
  %4108 = vmatprep.subr.bf16.mxu0 0
  %4109 = vmatpush1.bf16.msra.mxu0 0
  %4110 = vmatprep.subr.bf16.mxu0 0
  %4111 = vmatpush1.bf16.msra.mxu0 0
  %4112 = vmatprep.subr.bf16.mxu0 0
  %4113 = vmatpush1.bf16.msra.mxu0 0
  %4114 = vmatprep.mubr.bf16.mxu0 0
  %4115 = vmatmul.mubr.bf16.gmra.mrb[0].mxu0 %v4080
  %v4116 = vpop.f32.mrb[0].mxu0
  %v4117 = vadd.f32 0.0, %v4116
  %v4118 = vpop.f32.mrb[0].mxu0
  %v4119 = vpop.f32.mrb[0].mxu0
  %v4120 = vpop.f32.mrb[0].mxu0
  %4121 = vdwg.mxu0
  %v4122 = vpack.c.bf16 %v4117, %v4117
  %v4139 = vunpack.c.l.b16 %v3891
  %v4140 = vunpack.c.l.b16 %v3892
  %v4141 = vunpack.c.l.b16 %v3893
  %v4142 = vunpack.c.l.b16 %v3894
  %v4143 = vunpack.c.l.b16 %v3895
  %v4144 = vunpack.c.l.b16 %v3896
  %v4145 = vunpack.c.l.b16 %v3897
  %v4146 = vunpack.c.l.b16 %v3898
  %v4147 = vunpack.c.l.b16 %v3899
  %v4148 = vunpack.c.l.b16 %v3900
  %v4149 = vunpack.c.l.b16 %v3901
  %v4150 = vunpack.c.l.b16 %v3902
  %v4151 = vunpack.c.l.b16 %v3903
  %v4152 = vunpack.c.l.b16 %v3904
  %v4153 = vunpack.c.l.b16 %v3905
  %v4154 = vunpack.c.l.b16 %v3906
  %v4155 = vpack.c.b16 %v4140, %v4139
  %v4156 = vpack.c.b16 %v4142, %v4141
  %v4157 = vpack.c.b16 %v4144, %v4143
  %v4158 = vpack.c.b16 %v4146, %v4145
  %v4159 = vpack.c.b16 %v4148, %v4147
  %v4160 = vpack.c.b16 %v4150, %v4149
  %v4161 = vpack.c.b16 %v4152, %v4151
  %v4162 = vpack.c.b16 %v4154, %v4153
  %4171 = vmatprep.subr.bf16.mxu0 0
  %4172 = vmatpush1.bf16.msra.mxu0 %v4155
  %4173 = vmatprep.subr.bf16.mxu0 0
  %4174 = vmatpush1.bf16.msra.mxu0 %v4156
  %4175 = vmatprep.subr.bf16.mxu0 0
  %4176 = vmatpush1.bf16.msra.mxu0 %v4157
  %4177 = vmatprep.subr.bf16.mxu0 0
  %4178 = vmatpush1.bf16.msra.mxu0 %v4158
  %4179 = vmatprep.subr.bf16.mxu0 0
  %4180 = vmatpush1.bf16.msra.mxu0 %v4159
  %4181 = vmatprep.subr.bf16.mxu0 0
  %4182 = vmatpush1.bf16.msra.mxu0 %v4160
  %4183 = vmatprep.subr.bf16.mxu0 0
  %4184 = vmatpush1.bf16.msra.mxu0 %v4161
  %4185 = vmatprep.subr.bf16.mxu0 0
  %4186 = vmatpush1.bf16.msra.mxu0 %v4162
  %4187 = vmatprep.subr.bf16.mxu0 0
  %4188 = vmatpush1.bf16.msra.mxu0 0
  %4189 = vmatprep.subr.bf16.mxu0 0
  %4190 = vmatpush1.bf16.msra.mxu0 0
  %4191 = vmatprep.subr.bf16.mxu0 0
  %4192 = vmatpush1.bf16.msra.mxu0 0
  %4193 = vmatprep.subr.bf16.mxu0 0
  %4194 = vmatpush1.bf16.msra.mxu0 0
  %4195 = vmatprep.subr.bf16.mxu0 0
  %4196 = vmatpush1.bf16.msra.mxu0 0
  %4197 = vmatprep.subr.bf16.mxu0 0
  %4198 = vmatpush1.bf16.msra.mxu0 0
  %4199 = vmatprep.subr.bf16.mxu0 0
  %4200 = vmatpush1.bf16.msra.mxu0 0
  %4201 = vmatprep.subr.bf16.mxu0 0
  %4202 = vmatpush1.bf16.msra.mxu0 0
  %4203 = vmatprep.mubr.bf16.mxu0 0
  %4204 = vmatmul.mubr.bf16.gmra.mrb[0].mxu0 %v4122
  %v4205 = vpop.f32.mrb[0].mxu0
  %v4206 = vadd.f32 0.0, %v4205
  %v4207 = vpop.f32.mrb[0].mxu0
  %v4208 = vpop.f32.mrb[0].mxu0
  %v4209 = vpop.f32.mrb[0].mxu0
  %4210 = vdwg.mxu0
  %v4227 = vunpack.c.l.b16 %v3875
  %v4228 = vunpack.c.l.b16 %v3876
  %v4229 = vunpack.c.l.b16 %v3877
  %v4230 = vunpack.c.l.b16 %v3878
  %v4231 = vunpack.c.l.b16 %v3879
  %v4232 = vunpack.c.l.b16 %v3880
  %v4233 = vunpack.c.l.b16 %v3881
  %v4234 = vunpack.c.l.b16 %v3882
  %v4235 = vunpack.c.l.b16 %v3883
  %v4236 = vunpack.c.l.b16 %v3884
  %v4237 = vunpack.c.l.b16 %v3885
  %v4238 = vunpack.c.l.b16 %v3886
  %v4239 = vunpack.c.l.b16 %v3887
  %v4240 = vunpack.c.l.b16 %v3888
  %v4241 = vunpack.c.l.b16 %v3889
  %v4242 = vunpack.c.l.b16 %v3890
  %v4243 = vpack.c.b16 %v4228, %v4227
  %v4244 = vpack.c.b16 %v4230, %v4229
  %v4245 = vpack.c.b16 %v4232, %v4231
  %v4246 = vpack.c.b16 %v4234, %v4233
  %v4247 = vpack.c.b16 %v4236, %v4235
  %v4248 = vpack.c.b16 %v4238, %v4237
  %v4249 = vpack.c.b16 %v4240, %v4239
  %v4250 = vpack.c.b16 %v4242, %v4241
  %4259 = vmatprep.subr.bf16.mxu0 0
  %4260 = vmatpush1.bf16.msra.mxu0 %v4243
  %4261 = vmatprep.subr.bf16.mxu0 0
  %4262 = vmatpush1.bf16.msra.mxu0 %v4244
  %4263 = vmatprep.subr.bf16.mxu0 0
  %4264 = vmatpush1.bf16.msra.mxu0 %v4245
  %4265 = vmatprep.subr.bf16.mxu0 0
  %4266 = vmatpush1.bf16.msra.mxu0 %v4246
  %4267 = vmatprep.subr.bf16.mxu0 0
  %4268 = vmatpush1.bf16.msra.mxu0 %v4247
  %4269 = vmatprep.subr.bf16.mxu0 0
  %4270 = vmatpush1.bf16.msra.mxu0 %v4248
  %4271 = vmatprep.subr.bf16.mxu0 0
  %4272 = vmatpush1.bf16.msra.mxu0 %v4249
  %4273 = vmatprep.subr.bf16.mxu0 0
  %4274 = vmatpush1.bf16.msra.mxu0 %v4250
  %4275 = vmatprep.subr.bf16.mxu0 0
  %4276 = vmatpush1.bf16.msra.mxu0 0
  %4277 = vmatprep.subr.bf16.mxu0 0
  %4278 = vmatpush1.bf16.msra.mxu0 0
  %4279 = vmatprep.subr.bf16.mxu0 0
  %4280 = vmatpush1.bf16.msra.mxu0 0
  %4281 = vmatprep.subr.bf16.mxu0 0
  %4282 = vmatpush1.bf16.msra.mxu0 0
  %4283 = vmatprep.subr.bf16.mxu0 0
  %4284 = vmatpush1.bf16.msra.mxu0 0
  %4285 = vmatprep.subr.bf16.mxu0 0
  %4286 = vmatpush1.bf16.msra.mxu0 0
  %4287 = vmatprep.subr.bf16.mxu0 0
  %4288 = vmatpush1.bf16.msra.mxu0 0
  %4289 = vmatprep.subr.bf16.mxu0 0
  %4290 = vmatpush1.bf16.msra.mxu0 0
  %4291 = vmatprep.mubr.bf16.mxu0 0
  %4292 = vmatmul.mubr.bf16.gmra.mrb[0].mxu0 %v4072
  %v4293 = vpop.f32.mrb[0].mxu0
  %v4294 = vadd.f32 %v4206, %v4293
  %v4295 = vpop.f32.mrb[0].mxu0
  %v4296 = vpop.f32.mrb[0].mxu0
  %v4297 = vpop.f32.mrb[0].mxu0
  %4298 = vdwg.mxu0
  %4299 = vset.pattern.permute.xlu0 2
  %4300 = vperm.xlu0 %4299, %v3874
  %v4301 = vpop.permute.xlu0 %4300
  %vm4302 = vcmp.eq.s32.totalorder %v350, %v4301
  %v4303 = vsel %vm4302, 1.0, 0.0
  %v4304 = vpack.c.bf16 %v4303, %v4303
  %v4306 = vsel %vm2777, %v4304, 0
  %4308 = vmatprep.subr.bf16.mxu0 0
  %4309 = vmatpush1.bf16.msra.mxu0 %v4030
  %4310 = vmatprep.subr.bf16.mxu0 0
  %4311 = vmatpush1.bf16.msra.mxu0 0
  %4312 = vmatprep.subr.bf16.mxu0 0
  %4313 = vmatpush1.bf16.msra.mxu0 0
  %4314 = vmatprep.subr.bf16.mxu0 0
  %4315 = vmatpush1.bf16.msra.mxu0 0
  %4316 = vmatprep.subr.bf16.mxu0 0
  %4317 = vmatpush1.bf16.msra.mxu0 0
  %4318 = vmatprep.subr.bf16.mxu0 0
  %4319 = vmatpush1.bf16.msra.mxu0 0
  %4320 = vmatprep.subr.bf16.mxu0 0
  %4321 = vmatpush1.bf16.msra.mxu0 0
  %4322 = vmatprep.subr.bf16.mxu0 0
  %4323 = vmatpush1.bf16.msra.mxu0 0
  %4324 = vmatprep.subr.bf16.mxu0 0
  %4325 = vmatpush1.bf16.msra.mxu0 0
  %4326 = vmatprep.subr.bf16.mxu0 0
  %4327 = vmatpush1.bf16.msra.mxu0 0
  %4328 = vmatprep.subr.bf16.mxu0 0
  %4329 = vmatpush1.bf16.msra.mxu0 0
  %4330 = vmatprep.subr.bf16.mxu0 0
  %4331 = vmatpush1.bf16.msra.mxu0 0
  %4332 = vmatprep.subr.bf16.mxu0 0
  %4333 = vmatpush1.bf16.msra.mxu0 0
  %4334 = vmatprep.subr.bf16.mxu0 0
  %4335 = vmatpush1.bf16.msra.mxu0 0
  %4336 = vmatprep.subr.bf16.mxu0 0
  %4337 = vmatpush1.bf16.msra.mxu0 0
  %4338 = vmatprep.subr.bf16.mxu0 0
  %4339 = vmatpush1.bf16.msra.mxu0 0
  %4340 = vmatprep.mubr.bf16.mxu0 0
  %4341 = vmatmul.mubr.bf16.gmra.mrb[0].mxu0 %v4306
  %v4342 = vpop.f32.mrb[0].mxu0
  %v4343 = vadd.f32 0.0, %v4342
  %v4344 = vpop.f32.mrb[0].mxu0
  %v4345 = vpop.f32.mrb[0].mxu0
  %v4346 = vpop.f32.mrb[0].mxu0
  %4347 = vdwg.mxu0
  %v4348 = vpack.c.bf16 %v4343, %v4343
  %v4365 = vunpack.c.l.b16 %v3907
  %v4366 = vunpack.c.l.b16 %v3908
  %v4367 = vunpack.c.l.b16 %v3909
  %v4368 = vunpack.c.l.b16 %v3910
  %v4369 = vunpack.c.l.b16 %v3911
  %v4370 = vunpack.c.l.b16 %v3912
  %v4371 = vunpack.c.l.b16 %v3913
  %v4372 = vunpack.c.l.b16 %v3914
  %v4373 = vunpack.c.l.b16 %v3915
  %v4374 = vunpack.c.l.b16 %v3916
  %v4375 = vunpack.c.l.b16 %v3917
  %v4376 = vunpack.c.l.b16 %v3918
  %v4377 = vunpack.c.l.b16 %v3919
  %v4378 = vunpack.c.l.b16 %v3920
  %v4379 = vunpack.c.l.b16 %v3921
  %v4380 = vunpack.c.l.b16 %v3922
  %v4381 = vpack.c.b16 %v4366, %v4365
  %v4382 = vpack.c.b16 %v4368, %v4367
  %v4383 = vpack.c.b16 %v4370, %v4369
  %v4384 = vpack.c.b16 %v4372, %v4371
  %v4385 = vpack.c.b16 %v4374, %v4373
  %v4386 = vpack.c.b16 %v4376, %v4375
  %v4387 = vpack.c.b16 %v4378, %v4377
  %v4388 = vpack.c.b16 %v4380, %v4379
  %4397 = vmatprep.subr.bf16.mxu0 0
  %4398 = vmatpush1.bf16.msra.mxu0 %v4381
  %4399 = vmatprep.subr.bf16.mxu0 0
  %4400 = vmatpush1.bf16.msra.mxu0 %v4382
  %4401 = vmatprep.subr.bf16.mxu0 0
  %4402 = vmatpush1.bf16.msra.mxu0 %v4383
  %4403 = vmatprep.subr.bf16.mxu0 0
  %4404 = vmatpush1.bf16.msra.mxu0 %v4384
  %4405 = vmatprep.subr.bf16.mxu0 0
  %4406 = vmatpush1.bf16.msra.mxu0 %v4385
  %4407 = vmatprep.subr.bf16.mxu0 0
  %4408 = vmatpush1.bf16.msra.mxu0 %v4386
  %4409 = vmatprep.subr.bf16.mxu0 0
  %4410 = vmatpush1.bf16.msra.mxu0 %v4387
  %4411 = vmatprep.subr.bf16.mxu0 0
  %4412 = vmatpush1.bf16.msra.mxu0 %v4388
  %4413 = vmatprep.subr.bf16.mxu0 0
  %4414 = vmatpush1.bf16.msra.mxu0 0
  %4415 = vmatprep.subr.bf16.mxu0 0
  %4416 = vmatpush1.bf16.msra.mxu0 0
  %4417 = vmatprep.subr.bf16.mxu0 0
  %4418 = vmatpush1.bf16.msra.mxu0 0
  %4419 = vmatprep.subr.bf16.mxu0 0
  %4420 = vmatpush1.bf16.msra.mxu0 0
  %4421 = vmatprep.subr.bf16.mxu0 0
  %4422 = vmatpush1.bf16.msra.mxu0 0
  %4423 = vmatprep.subr.bf16.mxu0 0
  %4424 = vmatpush1.bf16.msra.mxu0 0
  %4425 = vmatprep.subr.bf16.mxu0 0
  %4426 = vmatpush1.bf16.msra.mxu0 0
  %4427 = vmatprep.subr.bf16.mxu0 0
  %4428 = vmatpush1.bf16.msra.mxu0 0
  %4429 = vmatprep.mubr.bf16.mxu0 0
  %4430 = vmatmul.mubr.bf16.gmra.mrb[0].mxu0 %v4348
  %v4431 = vpop.f32.mrb[0].mxu0
  %v4432 = vadd.f32 0.0, %v4431
  %v4433 = vpop.f32.mrb[0].mxu0
  %v4434 = vpop.f32.mrb[0].mxu0
  %v4435 = vpop.f32.mrb[0].mxu0
  %4436 = vdwg.mxu0
  %v4437 = vadd.f32 %v4294, %v4432
  %4438 = vset.pattern.permute.xlu0 3
  %4439 = vperm.xlu0 %4438, %v3874
  %v4440 = vpop.permute.xlu0 %4439
  %vm4441 = vcmp.eq.s32.totalorder %v350, %v4440
  %v4442 = vsel %vm4441, 1.0, 0.0
  %v4443 = vpack.c.bf16 %v4442, %v4442
  %v4445 = vsel %vm2777, %v4443, 0
  %4447 = vmatprep.subr.bf16.mxu0 0
  %4448 = vmatpush1.bf16.msra.mxu0 %v4030
  %4449 = vmatprep.subr.bf16.mxu0 0
  %4450 = vmatpush1.bf16.msra.mxu0 0
  %4451 = vmatprep.subr.bf16.mxu0 0
  %4452 = vmatpush1.bf16.msra.mxu0 0
  %4453 = vmatprep.subr.bf16.mxu0 0
  %4454 = vmatpush1.bf16.msra.mxu0 0
  %4455 = vmatprep.subr.bf16.mxu0 0
  %4456 = vmatpush1.bf16.msra.mxu0 0
  %4457 = vmatprep.subr.bf16.mxu0 0
  %4458 = vmatpush1.bf16.msra.mxu0 0
  %4459 = vmatprep.subr.bf16.mxu0 0
  %4460 = vmatpush1.bf16.msra.mxu0 0
  %4461 = vmatprep.subr.bf16.mxu0 0
  %4462 = vmatpush1.bf16.msra.mxu0 0
  %4463 = vmatprep.subr.bf16.mxu0 0
  %4464 = vmatpush1.bf16.msra.mxu0 0
  %4465 = vmatprep.subr.bf16.mxu0 0
  %4466 = vmatpush1.bf16.msra.mxu0 0
  %4467 = vmatprep.subr.bf16.mxu0 0
  %4468 = vmatpush1.bf16.msra.mxu0 0
  %4469 = vmatprep.subr.bf16.mxu0 0
  %4470 = vmatpush1.bf16.msra.mxu0 0
  %4471 = vmatprep.subr.bf16.mxu0 0
  %4472 = vmatpush1.bf16.msra.mxu0 0
  %4473 = vmatprep.subr.bf16.mxu0 0
  %4474 = vmatpush1.bf16.msra.mxu0 0
  %4475 = vmatprep.subr.bf16.mxu0 0
  %4476 = vmatpush1.bf16.msra.mxu0 0
  %4477 = vmatprep.subr.bf16.mxu0 0
  %4478 = vmatpush1.bf16.msra.mxu0 0
  %4479 = vmatprep.mubr.bf16.mxu0 0
  %4480 = vmatmul.mubr.bf16.gmra.mrb[0].mxu0 %v4445
  %v4481 = vpop.f32.mrb[0].mxu0
  %v4482 = vadd.f32 0.0, %v4481
  %v4483 = vpop.f32.mrb[0].mxu0
  %v4484 = vpop.f32.mrb[0].mxu0
  %v4485 = vpop.f32.mrb[0].mxu0
  %4486 = vdwg.mxu0
  %v4487 = vpack.c.bf16 %v4482, %v4482
  %v4504 = vunpack.c.l.b16 %v3923
  %v4505 = vunpack.c.l.b16 %v3924
  %v4506 = vunpack.c.l.b16 %v3925
  %v4507 = vunpack.c.l.b16 %v3926
  %v4508 = vunpack.c.l.b16 %v3927
  %v4509 = vunpack.c.l.b16 %v3928
  %v4510 = vunpack.c.l.b16 %v3929
  %v4511 = vunpack.c.l.b16 %v3930
  %v4512 = vunpack.c.l.b16 %v3931
  %v4513 = vunpack.c.l.b16 %v3932
  %v4514 = vunpack.c.l.b16 %v3933
  %v4515 = vunpack.c.l.b16 %v3934
  %v4516 = vunpack.c.l.b16 %v3935
  %v4517 = vunpack.c.l.b16 %v3936
  %v4518 = vunpack.c.l.b16 %v3937
  %v4519 = vunpack.c.l.b16 %v3938
  %v4520 = vpack.c.b16 %v4505, %v4504
  %v4521 = vpack.c.b16 %v4507, %v4506
  %v4522 = vpack.c.b16 %v4509, %v4508
  %v4523 = vpack.c.b16 %v4511, %v4510
  %v4524 = vpack.c.b16 %v4513, %v4512
  %v4525 = vpack.c.b16 %v4515, %v4514
  %v4526 = vpack.c.b16 %v4517, %v4516
  %v4527 = vpack.c.b16 %v4519, %v4518
  %4536 = vmatprep.subr.bf16.mxu0 0
  %4537 = vmatpush1.bf16.msra.mxu0 %v4520
  %4538 = vmatprep.subr.bf16.mxu0 0
  %4539 = vmatpush1.bf16.msra.mxu0 %v4521
  %4540 = vmatprep.subr.bf16.mxu0 0
  %4541 = vmatpush1.bf16.msra.mxu0 %v4522
  %4542 = vmatprep.subr.bf16.mxu0 0
  %4543 = vmatpush1.bf16.msra.mxu0 %v4523
  %4544 = vmatprep.subr.bf16.mxu0 0
  %4545 = vmatpush1.bf16.msra.mxu0 %v4524
  %4546 = vmatprep.subr.bf16.mxu0 0
  %4547 = vmatpush1.bf16.msra.mxu0 %v4525
  %4548 = vmatprep.subr.bf16.mxu0 0
  %4549 = vmatpush1.bf16.msra.mxu0 %v4526
  %4550 = vmatprep.subr.bf16.mxu0 0
  %4551 = vmatpush1.bf16.msra.mxu0 %v4527
  %4552 = vmatprep.subr.bf16.mxu0 0
  %4553 = vmatpush1.bf16.msra.mxu0 0
  %4554 = vmatprep.subr.bf16.mxu0 0
  %4555 = vmatpush1.bf16.msra.mxu0 0
  %4556 = vmatprep.subr.bf16.mxu0 0
  %4557 = vmatpush1.bf16.msra.mxu0 0
  %4558 = vmatprep.subr.bf16.mxu0 0
  %4559 = vmatpush1.bf16.msra.mxu0 0
  %4560 = vmatprep.subr.bf16.mxu0 0
  %4561 = vmatpush1.bf16.msra.mxu0 0
  %4562 = vmatprep.subr.bf16.mxu0 0
  %4563 = vmatpush1.bf16.msra.mxu0 0
  %4564 = vmatprep.subr.bf16.mxu0 0
  %4565 = vmatpush1.bf16.msra.mxu0 0
  %4566 = vmatprep.subr.bf16.mxu0 0
  %4567 = vmatpush1.bf16.msra.mxu0 0
  %4568 = vmatprep.mubr.bf16.mxu0 0
  %4569 = vmatmul.mubr.bf16.gmra.mrb[0].mxu0 %v4487
  %v4570 = vpop.f32.mrb[0].mxu0
  %v4571 = vadd.f32 0.0, %v4570
  %v4572 = vpop.f32.mrb[0].mxu0
  %v4573 = vpop.f32.mrb[0].mxu0
  %v4574 = vpop.f32.mrb[0].mxu0
  %4575 = vdwg.mxu0
  %v4576 = vadd.f32 %v4437, %v4571
  %4577 = vset.pattern.permute.xlu0 4
  %4578 = vperm.xlu0 %4577, %v3874
  %v4579 = vpop.permute.xlu0 %4578
  %vm4580 = vcmp.eq.s32.totalorder %v350, %v4579
  %v4581 = vsel %vm4580, 1.0, 0.0
  %v4582 = vpack.c.bf16 %v4581, %v4581
  %v4584 = vsel %vm2777, %v4582, 0
  %4586 = vmatprep.subr.bf16.mxu0 0
  %4587 = vmatpush1.bf16.msra.mxu0 %v4030
  %4588 = vmatprep.subr.bf16.mxu0 0
  %4589 = vmatpush1.bf16.msra.mxu0 0
  %4590 = vmatprep.subr.bf16.mxu0 0
  %4591 = vmatpush1.bf16.msra.mxu0 0
  %4592 = vmatprep.subr.bf16.mxu0 0
  %4593 = vmatpush1.bf16.msra.mxu0 0
  %4594 = vmatprep.subr.bf16.mxu0 0
  %4595 = vmatpush1.bf16.msra.mxu0 0
  %4596 = vmatprep.subr.bf16.mxu0 0
  %4597 = vmatpush1.bf16.msra.mxu0 0
  %4598 = vmatprep.subr.bf16.mxu0 0
  %4599 = vmatpush1.bf16.msra.mxu0 0
  %4600 = vmatprep.subr.bf16.mxu0 0
  %4601 = vmatpush1.bf16.msra.mxu0 0
  %4602 = vmatprep.subr.bf16.mxu0 0
  %4603 = vmatpush1.bf16.msra.mxu0 0
  %4604 = vmatprep.subr.bf16.mxu0 0
  %4605 = vmatpush1.bf16.msra.mxu0 0
  %4606 = vmatprep.subr.bf16.mxu0 0
  %4607 = vmatpush1.bf16.msra.mxu0 0
  %4608 = vmatprep.subr.bf16.mxu0 0
  %4609 = vmatpush1.bf16.msra.mxu0 0
  %4610 = vmatprep.subr.bf16.mxu0 0
  %4611 = vmatpush1.bf16.msra.mxu0 0
  %4612 = vmatprep.subr.bf16.mxu0 0
  %4613 = vmatpush1.bf16.msra.mxu0 0
  %4614 = vmatprep.subr.bf16.mxu0 0
  %4615 = vmatpush1.bf16.msra.mxu0 0
  %4616 = vmatprep.subr.bf16.mxu0 0
  %4617 = vmatpush1.bf16.msra.mxu0 0
  %4618 = vmatprep.mubr.bf16.mxu0 0
  %4619 = vmatmul.mubr.bf16.gmra.mrb[0].mxu0 %v4584
  %v4620 = vpop.f32.mrb[0].mxu0
  %v4621 = vadd.f32 0.0, %v4620
  %v4622 = vpop.f32.mrb[0].mxu0
  %v4623 = vpop.f32.mrb[0].mxu0
  %v4624 = vpop.f32.mrb[0].mxu0
  %4625 = vdwg.mxu0
  %v4626 = vpack.c.bf16 %v4621, %v4621
  %v4643 = vunpack.c.l.b16 %v3939
  %v4644 = vunpack.c.l.b16 %v3940
  %v4645 = vunpack.c.l.b16 %v3941
  %v4646 = vunpack.c.l.b16 %v3942
  %v4647 = vunpack.c.l.b16 %v3943
  %v4648 = vunpack.c.l.b16 %v3944
  %v4649 = vunpack.c.l.b16 %v3945
  %v4650 = vunpack.c.l.b16 %v3946
  %v4651 = vunpack.c.l.b16 %v3947
  %v4652 = vunpack.c.l.b16 %v3948
  %v4653 = vunpack.c.l.b16 %v3949
  %v4654 = vunpack.c.l.b16 %v3950
  %v4655 = vunpack.c.l.b16 %v3951
  %v4656 = vunpack.c.l.b16 %v3952
  %v4657 = vunpack.c.l.b16 %v3953
  %v4658 = vunpack.c.l.b16 %v3954
  %v4659 = vpack.c.b16 %v4644, %v4643
  %v4660 = vpack.c.b16 %v4646, %v4645
  %v4661 = vpack.c.b16 %v4648, %v4647
  %v4662 = vpack.c.b16 %v4650, %v4649
  %v4663 = vpack.c.b16 %v4652, %v4651
  %v4664 = vpack.c.b16 %v4654, %v4653
  %v4665 = vpack.c.b16 %v4656, %v4655
  %v4666 = vpack.c.b16 %v4658, %v4657
  %4675 = vmatprep.subr.bf16.mxu0 0
  %4676 = vmatpush1.bf16.msra.mxu0 %v4659
  %4677 = vmatprep.subr.bf16.mxu0 0
  %4678 = vmatpush1.bf16.msra.mxu0 %v4660
  %4679 = vmatprep.subr.bf16.mxu0 0
  %4680 = vmatpush1.bf16.msra.mxu0 %v4661
  %4681 = vmatprep.subr.bf16.mxu0 0
  %4682 = vmatpush1.bf16.msra.mxu0 %v4662
  %4683 = vmatprep.subr.bf16.mxu0 0
  %4684 = vmatpush1.bf16.msra.mxu0 %v4663
  %4685 = vmatprep.subr.bf16.mxu0 0
  %4686 = vmatpush1.bf16.msra.mxu0 %v4664
  %4687 = vmatprep.subr.bf16.mxu0 0
  %4688 = vmatpush1.bf16.msra.mxu0 %v4665
  %4689 = vmatprep.subr.bf16.mxu0 0
  %4690 = vmatpush1.bf16.msra.mxu0 %v4666
  %4691 = vmatprep.subr.bf16.mxu0 0
  %4692 = vmatpush1.bf16.msra.mxu0 0
  %4693 = vmatprep.subr.bf16.mxu0 0
  %4694 = vmatpush1.bf16.msra.mxu0 0
  %4695 = vmatprep.subr.bf16.mxu0 0
  %4696 = vmatpush1.bf16.msra.mxu0 0
  %4697 = vmatprep.subr.bf16.mxu0 0
  %4698 = vmatpush1.bf16.msra.mxu0 0
  %4699 = vmatprep.subr.bf16.mxu0 0
  %4700 = vmatpush1.bf16.msra.mxu0 0
  %4701 = vmatprep.subr.bf16.mxu0 0
  %4702 = vmatpush1.bf16.msra.mxu0 0
  %4703 = vmatprep.subr.bf16.mxu0 0
  %4704 = vmatpush1.bf16.msra.mxu0 0
  %4705 = vmatprep.subr.bf16.mxu0 0
  %4706 = vmatpush1.bf16.msra.mxu0 0
  %4707 = vmatprep.mubr.bf16.mxu0 0
  %4708 = vmatmul.mubr.bf16.gmra.mrb[0].mxu0 %v4626
  %v4709 = vpop.f32.mrb[0].mxu0
  %v4710 = vadd.f32 0.0, %v4709
  %v4711 = vpop.f32.mrb[0].mxu0
  %v4712 = vpop.f32.mrb[0].mxu0
  %v4713 = vpop.f32.mrb[0].mxu0
  %4714 = vdwg.mxu0
  %v4715 = vadd.f32 %v4576, %v4710
  %4716 = vset.pattern.permute.xlu0 5
  %4717 = vperm.xlu0 %4716, %v3874
  %v4718 = vpop.permute.xlu0 %4717
  %vm4719 = vcmp.eq.s32.totalorder %v350, %v4718
  %v4720 = vsel %vm4719, 1.0, 0.0
  %v4721 = vpack.c.bf16 %v4720, %v4720
  %v4723 = vsel %vm2777, %v4721, 0
  %4725 = vmatprep.subr.bf16.mxu0 0
  %4726 = vmatpush1.bf16.msra.mxu0 %v4030
  %4727 = vmatprep.subr.bf16.mxu0 0
  %4728 = vmatpush1.bf16.msra.mxu0 0
  %4729 = vmatprep.subr.bf16.mxu0 0
  %4730 = vmatpush1.bf16.msra.mxu0 0
  %4731 = vmatprep.subr.bf16.mxu0 0
  %4732 = vmatpush1.bf16.msra.mxu0 0
  %4733 = vmatprep.subr.bf16.mxu0 0
  %4734 = vmatpush1.bf16.msra.mxu0 0
  %4735 = vmatprep.subr.bf16.mxu0 0
  %4736 = vmatpush1.bf16.msra.mxu0 0
  %4737 = vmatprep.subr.bf16.mxu0 0
  %4738 = vmatpush1.bf16.msra.mxu0 0
  %4739 = vmatprep.subr.bf16.mxu0 0
  %4740 = vmatpush1.bf16.msra.mxu0 0
  %4741 = vmatprep.subr.bf16.mxu0 0
  %4742 = vmatpush1.bf16.msra.mxu0 0
  %4743 = vmatprep.subr.bf16.mxu0 0
  %4744 = vmatpush1.bf16.msra.mxu0 0
  %4745 = vmatprep.subr.bf16.mxu0 0
  %4746 = vmatpush1.bf16.msra.mxu0 0
  %4747 = vmatprep.subr.bf16.mxu0 0
  %4748 = vmatpush1.bf16.msra.mxu0 0
  %4749 = vmatprep.subr.bf16.mxu0 0
  %4750 = vmatpush1.bf16.msra.mxu0 0
  %4751 = vmatprep.subr.bf16.mxu0 0
  %4752 = vmatpush1.bf16.msra.mxu0 0
  %4753 = vmatprep.subr.bf16.mxu0 0
  %4754 = vmatpush1.bf16.msra.mxu0 0
  %4755 = vmatprep.subr.bf16.mxu0 0
  %4756 = vmatpush1.bf16.msra.mxu0 0
  %4757 = vmatprep.mubr.bf16.mxu0 0
  %4758 = vmatmul.mubr.bf16.gmra.mrb[0].mxu0 %v4723
  %v4759 = vpop.f32.mrb[0].mxu0
  %v4760 = vadd.f32 0.0, %v4759
  %v4761 = vpop.f32.mrb[0].mxu0
  %v4762 = vpop.f32.mrb[0].mxu0
  %v4763 = vpop.f32.mrb[0].mxu0
  %4764 = vdwg.mxu0
  %v4765 = vpack.c.bf16 %v4760, %v4760
  %v4782 = vunpack.c.l.b16 %v3955
  %v4783 = vunpack.c.l.b16 %v3956
  %v4784 = vunpack.c.l.b16 %v3957
  %v4785 = vunpack.c.l.b16 %v3958
  %v4786 = vunpack.c.l.b16 %v3959
  %v4787 = vunpack.c.l.b16 %v3960
  %v4788 = vunpack.c.l.b16 %v3961
  %v4789 = vunpack.c.l.b16 %v3962
  %v4790 = vunpack.c.l.b16 %v3963
  %v4791 = vunpack.c.l.b16 %v3964
  %v4792 = vunpack.c.l.b16 %v3965
  %v4793 = vunpack.c.l.b16 %v3966
  %v4794 = vunpack.c.l.b16 %v3967
  %v4795 = vunpack.c.l.b16 %v3968
  %v4796 = vunpack.c.l.b16 %v3969
  %v4797 = vunpack.c.l.b16 %v3970
  %v4798 = vpack.c.b16 %v4783, %v4782
  %v4799 = vpack.c.b16 %v4785, %v4784
  %v4800 = vpack.c.b16 %v4787, %v4786
  %v4801 = vpack.c.b16 %v4789, %v4788
  %v4802 = vpack.c.b16 %v4791, %v4790
  %v4803 = vpack.c.b16 %v4793, %v4792
  %v4804 = vpack.c.b16 %v4795, %v4794
  %v4805 = vpack.c.b16 %v4797, %v4796
  %4814 = vmatprep.subr.bf16.mxu0 0
  %4815 = vmatpush1.bf16.msra.mxu0 %v4798
  %4816 = vmatprep.subr.bf16.mxu0 0
  %4817 = vmatpush1.bf16.msra.mxu0 %v4799
  %4818 = vmatprep.subr.bf16.mxu0 0
  %4819 = vmatpush1.bf16.msra.mxu0 %v4800
  %4820 = vmatprep.subr.bf16.mxu0 0
  %4821 = vmatpush1.bf16.msra.mxu0 %v4801
  %4822 = vmatprep.subr.bf16.mxu0 0
  %4823 = vmatpush1.bf16.msra.mxu0 %v4802
  %4824 = vmatprep.subr.bf16.mxu0 0
  %4825 = vmatpush1.bf16.msra.mxu0 %v4803
  %4826 = vmatprep.subr.bf16.mxu0 0
  %4827 = vmatpush1.bf16.msra.mxu0 %v4804
  %4828 = vmatprep.subr.bf16.mxu0 0
  %4829 = vmatpush1.bf16.msra.mxu0 %v4805
  %4830 = vmatprep.subr.bf16.mxu0 0
  %4831 = vmatpush1.bf16.msra.mxu0 0
  %4832 = vmatprep.subr.bf16.mxu0 0
  %4833 = vmatpush1.bf16.msra.mxu0 0
  %4834 = vmatprep.subr.bf16.mxu0 0
  %4835 = vmatpush1.bf16.msra.mxu0 0
  %4836 = vmatprep.subr.bf16.mxu0 0
  %4837 = vmatpush1.bf16.msra.mxu0 0
  %4838 = vmatprep.subr.bf16.mxu0 0
  %4839 = vmatpush1.bf16.msra.mxu0 0
  %4840 = vmatprep.subr.bf16.mxu0 0
  %4841 = vmatpush1.bf16.msra.mxu0 0
  %4842 = vmatprep.subr.bf16.mxu0 0
  %4843 = vmatpush1.bf16.msra.mxu0 0
  %4844 = vmatprep.subr.bf16.mxu0 0
  %4845 = vmatpush1.bf16.msra.mxu0 0
  %4846 = vmatprep.mubr.bf16.mxu0 0
  %4847 = vmatmul.mubr.bf16.gmra.mrb[0].mxu0 %v4765
  %v4848 = vpop.f32.mrb[0].mxu0
  %v4849 = vadd.f32 0.0, %v4848
  %v4850 = vpop.f32.mrb[0].mxu0
  %v4851 = vpop.f32.mrb[0].mxu0
  %v4852 = vpop.f32.mrb[0].mxu0
  %4853 = vdwg.mxu0
  %v4854 = vadd.f32 %v4715, %v4849
  %4855 = vset.pattern.permute.xlu0 6
  %4856 = vperm.xlu0 %4855, %v3874
  %v4857 = vpop.permute.xlu0 %4856
  %vm4858 = vcmp.eq.s32.totalorder %v350, %v4857
  %v4859 = vsel %vm4858, 1.0, 0.0
  %v4860 = vpack.c.bf16 %v4859, %v4859
  %v4862 = vsel %vm2777, %v4860, 0
  %4864 = vmatprep.subr.bf16.mxu0 0
  %4865 = vmatpush1.bf16.msra.mxu0 %v4030
  %4866 = vmatprep.subr.bf16.mxu0 0
  %4867 = vmatpush1.bf16.msra.mxu0 0
  %4868 = vmatprep.subr.bf16.mxu0 0
  %4869 = vmatpush1.bf16.msra.mxu0 0
  %4870 = vmatprep.subr.bf16.mxu0 0
  %4871 = vmatpush1.bf16.msra.mxu0 0
  %4872 = vmatprep.subr.bf16.mxu0 0
  %4873 = vmatpush1.bf16.msra.mxu0 0
  %4874 = vmatprep.subr.bf16.mxu0 0
  %4875 = vmatpush1.bf16.msra.mxu0 0
  %4876 = vmatprep.subr.bf16.mxu0 0
  %4877 = vmatpush1.bf16.msra.mxu0 0
  %4878 = vmatprep.subr.bf16.mxu0 0
  %4879 = vmatpush1.bf16.msra.mxu0 0
  %4880 = vmatprep.subr.bf16.mxu0 0
  %4881 = vmatpush1.bf16.msra.mxu0 0
  %4882 = vmatprep.subr.bf16.mxu0 0
  %4883 = vmatpush1.bf16.msra.mxu0 0
  %4884 = vmatprep.subr.bf16.mxu0 0
  %4885 = vmatpush1.bf16.msra.mxu0 0
  %4886 = vmatprep.subr.bf16.mxu0 0
  %4887 = vmatpush1.bf16.msra.mxu0 0
  %4888 = vmatprep.subr.bf16.mxu0 0
  %4889 = vmatpush1.bf16.msra.mxu0 0
  %4890 = vmatprep.subr.bf16.mxu0 0
  %4891 = vmatpush1.bf16.msra.mxu0 0
  %4892 = vmatprep.subr.bf16.mxu0 0
  %4893 = vmatpush1.bf16.msra.mxu0 0
  %4894 = vmatprep.subr.bf16.mxu0 0
  %4895 = vmatpush1.bf16.msra.mxu0 0
  %4896 = vmatprep.mubr.bf16.mxu0 0
  %4897 = vmatmul.mubr.bf16.gmra.mrb[0].mxu0 %v4862
  %v4898 = vpop.f32.mrb[0].mxu0
  %v4899 = vadd.f32 0.0, %v4898
  %v4900 = vpop.f32.mrb[0].mxu0
  %v4901 = vpop.f32.mrb[0].mxu0
  %v4902 = vpop.f32.mrb[0].mxu0
  %4903 = vdwg.mxu0
  %v4904 = vpack.c.bf16 %v4899, %v4899
  %v4921 = vunpack.c.l.b16 %v3971
  %v4922 = vunpack.c.l.b16 %v3972
  %v4923 = vunpack.c.l.b16 %v3973
  %v4924 = vunpack.c.l.b16 %v3974
  %v4925 = vunpack.c.l.b16 %v3975
  %v4926 = vunpack.c.l.b16 %v3976
  %v4927 = vunpack.c.l.b16 %v3977
  %v4928 = vunpack.c.l.b16 %v3978
  %v4929 = vunpack.c.l.b16 %v3979
  %v4930 = vunpack.c.l.b16 %v3980
  %v4931 = vunpack.c.l.b16 %v3981
  %v4932 = vunpack.c.l.b16 %v3982
  %v4933 = vunpack.c.l.b16 %v3983
  %v4934 = vunpack.c.l.b16 %v3984
  %v4935 = vunpack.c.l.b16 %v3985
  %v4936 = vunpack.c.l.b16 %v3986
  %v4937 = vpack.c.b16 %v4922, %v4921
  %v4938 = vpack.c.b16 %v4924, %v4923
  %v4939 = vpack.c.b16 %v4926, %v4925
  %v4940 = vpack.c.b16 %v4928, %v4927
  %v4941 = vpack.c.b16 %v4930, %v4929
  %v4942 = vpack.c.b16 %v4932, %v4931
  %v4943 = vpack.c.b16 %v4934, %v4933
  %v4944 = vpack.c.b16 %v4936, %v4935
  %4953 = vmatprep.subr.bf16.mxu0 0
  %4954 = vmatpush1.bf16.msra.mxu0 %v4937
  %4955 = vmatprep.subr.bf16.mxu0 0
  %4956 = vmatpush1.bf16.msra.mxu0 %v4938
  %4957 = vmatprep.subr.bf16.mxu0 0
  %4958 = vmatpush1.bf16.msra.mxu0 %v4939
  %4959 = vmatprep.subr.bf16.mxu0 0
  %4960 = vmatpush1.bf16.msra.mxu0 %v4940
  %4961 = vmatprep.subr.bf16.mxu0 0
  %4962 = vmatpush1.bf16.msra.mxu0 %v4941
  %4963 = vmatprep.subr.bf16.mxu0 0
  %4964 = vmatpush1.bf16.msra.mxu0 %v4942
  %4965 = vmatprep.subr.bf16.mxu0 0
  %4966 = vmatpush1.bf16.msra.mxu0 %v4943
  %4967 = vmatprep.subr.bf16.mxu0 0
  %4968 = vmatpush1.bf16.msra.mxu0 %v4944
  %4969 = vmatprep.subr.bf16.mxu0 0
  %4970 = vmatpush1.bf16.msra.mxu0 0
  %4971 = vmatprep.subr.bf16.mxu0 0
  %4972 = vmatpush1.bf16.msra.mxu0 0
  %4973 = vmatprep.subr.bf16.mxu0 0
  %4974 = vmatpush1.bf16.msra.mxu0 0
  %4975 = vmatprep.subr.bf16.mxu0 0
  %4976 = vmatpush1.bf16.msra.mxu0 0
  %4977 = vmatprep.subr.bf16.mxu0 0
  %4978 = vmatpush1.bf16.msra.mxu0 0
  %4979 = vmatprep.subr.bf16.mxu0 0
  %4980 = vmatpush1.bf16.msra.mxu0 0
  %4981 = vmatprep.subr.bf16.mxu0 0
  %4982 = vmatpush1.bf16.msra.mxu0 0
  %4983 = vmatprep.subr.bf16.mxu0 0
  %4984 = vmatpush1.bf16.msra.mxu0 0
  %4985 = vmatprep.mubr.bf16.mxu0 0
  %4986 = vmatmul.mubr.bf16.gmra.mrb[0].mxu0 %v4904
  %v4987 = vpop.f32.mrb[0].mxu0
  %v4988 = vadd.f32 0.0, %v4987
  %v4989 = vpop.f32.mrb[0].mxu0
  %v4990 = vpop.f32.mrb[0].mxu0
  %v4991 = vpop.f32.mrb[0].mxu0
  %4992 = vdwg.mxu0
  %v4993 = vadd.f32 %v4854, %v4988
  %4994 = vset.pattern.permute.xlu0 7
  %4995 = vperm.xlu0 %4994, %v3874
  %v4996 = vpop.permute.xlu0 %4995
  %vm4997 = vcmp.eq.s32.totalorder %v350, %v4996
  %v4998 = vsel %vm4997, 1.0, 0.0
  %v4999 = vpack.c.bf16 %v4998, %v4998
  %v5001 = vsel %vm2777, %v4999, 0
  %5003 = vmatprep.subr.bf16.mxu0 0
  %5004 = vmatpush1.bf16.msra.mxu0 %v4030
  %5005 = vmatprep.subr.bf16.mxu0 0
  %5006 = vmatpush1.bf16.msra.mxu0 0
  %5007 = vmatprep.subr.bf16.mxu0 0
  %5008 = vmatpush1.bf16.msra.mxu0 0
  %5009 = vmatprep.subr.bf16.mxu0 0
  %5010 = vmatpush1.bf16.msra.mxu0 0
  %5011 = vmatprep.subr.bf16.mxu0 0
  %5012 = vmatpush1.bf16.msra.mxu0 0
  %5013 = vmatprep.subr.bf16.mxu0 0
  %5014 = vmatpush1.bf16.msra.mxu0 0
  %5015 = vmatprep.subr.bf16.mxu0 0
  %5016 = vmatpush1.bf16.msra.mxu0 0
  %5017 = vmatprep.subr.bf16.mxu0 0
  %5018 = vmatpush1.bf16.msra.mxu0 0
  %5019 = vmatprep.subr.bf16.mxu0 0
  %5020 = vmatpush1.bf16.msra.mxu0 0
  %5021 = vmatprep.subr.bf16.mxu0 0
  %5022 = vmatpush1.bf16.msra.mxu0 0
  %5023 = vmatprep.subr.bf16.mxu0 0
  %5024 = vmatpush1.bf16.msra.mxu0 0
  %5025 = vmatprep.subr.bf16.mxu0 0
  %5026 = vmatpush1.bf16.msra.mxu0 0
  %5027 = vmatprep.subr.bf16.mxu0 0
  %5028 = vmatpush1.bf16.msra.mxu0 0
  %5029 = vmatprep.subr.bf16.mxu0 0
  %5030 = vmatpush1.bf16.msra.mxu0 0
  %5031 = vmatprep.subr.bf16.mxu0 0
  %5032 = vmatpush1.bf16.msra.mxu0 0
  %5033 = vmatprep.subr.bf16.mxu0 0
  %5034 = vmatpush1.bf16.msra.mxu0 0
  %5035 = vmatprep.mubr.bf16.mxu0 0
  %5036 = vmatmul.mubr.bf16.gmra.mrb[0].mxu0 %v5001
  %v5037 = vpop.f32.mrb[0].mxu0
  %v5038 = vadd.f32 0.0, %v5037
  %v5039 = vpop.f32.mrb[0].mxu0
  %v5040 = vpop.f32.mrb[0].mxu0
  %v5041 = vpop.f32.mrb[0].mxu0
  %5042 = vdwg.mxu0
  %v5043 = vpack.c.bf16 %v5038, %v5038
  %v5060 = vunpack.c.l.b16 %v3987
  %v5061 = vunpack.c.l.b16 %v3988
  %v5062 = vunpack.c.l.b16 %v3989
  %v5063 = vunpack.c.l.b16 %v3990
  %v5064 = vunpack.c.l.b16 %v3991
  %v5065 = vunpack.c.l.b16 %v3992
  %v5066 = vunpack.c.l.b16 %v3993
  %v5067 = vunpack.c.l.b16 %v3994
  %v5068 = vunpack.c.l.b16 %v3995
  %v5069 = vunpack.c.l.b16 %v3996
  %v5070 = vunpack.c.l.b16 %v3997
  %v5071 = vunpack.c.l.b16 %v3998
  %v5072 = vunpack.c.l.b16 %v3999
  %v5073 = vunpack.c.l.b16 %v4000
  %v5074 = vunpack.c.l.b16 %v4001
  %v5075 = vunpack.c.l.b16 %v4002
  %v5076 = vpack.c.b16 %v5061, %v5060
  %v5077 = vpack.c.b16 %v5063, %v5062
  %v5078 = vpack.c.b16 %v5065, %v5064
  %v5079 = vpack.c.b16 %v5067, %v5066
  %v5080 = vpack.c.b16 %v5069, %v5068
  %v5081 = vpack.c.b16 %v5071, %v5070
  %v5082 = vpack.c.b16 %v5073, %v5072
  %v5083 = vpack.c.b16 %v5075, %v5074
  %5092 = vmatprep.subr.bf16.mxu0 0
  %5093 = vmatpush1.bf16.msra.mxu0 %v5076
  %5094 = vmatprep.subr.bf16.mxu0 0
  %5095 = vmatpush1.bf16.msra.mxu0 %v5077
  %5096 = vmatprep.subr.bf16.mxu0 0
  %5097 = vmatpush1.bf16.msra.mxu0 %v5078
  %5098 = vmatprep.subr.bf16.mxu0 0
  %5099 = vmatpush1.bf16.msra.mxu0 %v5079
  %5100 = vmatprep.subr.bf16.mxu0 0
  %5101 = vmatpush1.bf16.msra.mxu0 %v5080
  %5102 = vmatprep.subr.bf16.mxu0 0
  %5103 = vmatpush1.bf16.msra.mxu0 %v5081
  %5104 = vmatprep.subr.bf16.mxu0 0
  %5105 = vmatpush1.bf16.msra.mxu0 %v5082
  %5106 = vmatprep.subr.bf16.mxu0 0
  %5107 = vmatpush1.bf16.msra.mxu0 %v5083
  %5108 = vmatprep.subr.bf16.mxu0 0
  %5109 = vmatpush1.bf16.msra.mxu0 0
  %5110 = vmatprep.subr.bf16.mxu0 0
  %5111 = vmatpush1.bf16.msra.mxu0 0
  %5112 = vmatprep.subr.bf16.mxu0 0
  %5113 = vmatpush1.bf16.msra.mxu0 0
  %5114 = vmatprep.subr.bf16.mxu0 0
  %5115 = vmatpush1.bf16.msra.mxu0 0
  %5116 = vmatprep.subr.bf16.mxu0 0
  %5117 = vmatpush1.bf16.msra.mxu0 0
  %5118 = vmatprep.subr.bf16.mxu0 0
  %5119 = vmatpush1.bf16.msra.mxu0 0
  %5120 = vmatprep.subr.bf16.mxu0 0
  %5121 = vmatpush1.bf16.msra.mxu0 0
  %5122 = vmatprep.subr.bf16.mxu0 0
  %5123 = vmatpush1.bf16.msra.mxu0 0
  %5124 = vmatprep.mubr.bf16.mxu0 0
  %5125 = vmatmul.mubr.bf16.gmra.mrb[0].mxu0 %v5043
  %v5126 = vpop.f32.mrb[0].mxu0
  %v5127 = vadd.f32 0.0, %v5126
  %v5128 = vpop.f32.mrb[0].mxu0
  %v5129 = vpop.f32.mrb[0].mxu0
  %v5130 = vpop.f32.mrb[0].mxu0
  %5131 = vdwg.mxu0
  %v5132 = vadd.f32 %v4993, %v5127
  %5133 = vset.pattern.permute.xlu0 8
  %5134 = vperm.xlu0 %5133, %v3874
  %v5135 = vpop.permute.xlu0 %5134
  %vm5136 = vcmp.eq.s32.totalorder %v350, %v5135
  %v5137 = vsel %vm5136, 1.0, 0.0
  %v5138 = vpack.c.bf16 %v5137, %v5137
  %v5140 = vsel %vm2777, %v5138, 0
  %5142 = vmatprep.subr.bf16.mxu0 0
  %5143 = vmatpush1.bf16.msra.mxu0 %v4030
  %5144 = vmatprep.subr.bf16.mxu0 0
  %5145 = vmatpush1.bf16.msra.mxu0 0
  %5146 = vmatprep.subr.bf16.mxu0 0
  %5147 = vmatpush1.bf16.msra.mxu0 0
  %5148 = vmatprep.subr.bf16.mxu0 0
  %5149 = vmatpush1.bf16.msra.mxu0 0
  %5150 = vmatprep.subr.bf16.mxu0 0
  %5151 = vmatpush1.bf16.msra.mxu0 0
  %5152 = vmatprep.subr.bf16.mxu0 0
  %5153 = vmatpush1.bf16.msra.mxu0 0
  %5154 = vmatprep.subr.bf16.mxu0 0
  %5155 = vmatpush1.bf16.msra.mxu0 0
  %5156 = vmatprep.subr.bf16.mxu0 0
  %5157 = vmatpush1.bf16.msra.mxu0 0
  %5158 = vmatprep.subr.bf16.mxu0 0
  %5159 = vmatpush1.bf16.msra.mxu0 0
  %5160 = vmatprep.subr.bf16.mxu0 0
  %5161 = vmatpush1.bf16.msra.mxu0 0
  %5162 = vmatprep.subr.bf16.mxu0 0
  %5163 = vmatpush1.bf16.msra.mxu0 0
  %5164 = vmatprep.subr.bf16.mxu0 0
  %5165 = vmatpush1.bf16.msra.mxu0 0
  %5166 = vmatprep.subr.bf16.mxu0 0
  %5167 = vmatpush1.bf16.msra.mxu0 0
  %5168 = vmatprep.subr.bf16.mxu0 0
  %5169 = vmatpush1.bf16.msra.mxu0 0
  %5170 = vmatprep.subr.bf16.mxu0 0
  %5171 = vmatpush1.bf16.msra.mxu0 0
  %5172 = vmatprep.subr.bf16.mxu0 0
  %5173 = vmatpush1.bf16.msra.mxu0 0
  %5174 = vmatprep.mubr.bf16.mxu0 0
  %5175 = vmatmul.mubr.bf16.gmra.mrb[0].mxu0 %v5140
  %v5176 = vpop.f32.mrb[0].mxu0
  %v5177 = vadd.f32 0.0, %v5176
  %v5178 = vpop.f32.mrb[0].mxu0
  %v5179 = vpop.f32.mrb[0].mxu0
  %v5180 = vpop.f32.mrb[0].mxu0
  %5181 = vdwg.mxu0
  %v5182 = vpack.c.bf16 %v5177, %v5177
  %v5199 = vunpack.c.l.b16 %v4003
  %v5200 = vunpack.c.l.b16 %v4004
  %v5201 = vunpack.c.l.b16 %v4005
  %v5202 = vunpack.c.l.b16 %v4006
  %v5203 = vunpack.c.l.b16 %v4007
  %v5204 = vunpack.c.l.b16 %v4008
  %v5205 = vunpack.c.l.b16 %v4009
  %v5206 = vunpack.c.l.b16 %v4010
  %v5207 = vunpack.c.l.b16 %v4011
  %v5208 = vunpack.c.l.b16 %v4012
  %v5209 = vunpack.c.l.b16 %v4013
  %v5210 = vunpack.c.l.b16 %v4014
  %v5211 = vunpack.c.l.b16 %v4015
  %v5212 = vunpack.c.l.b16 %v4016
  %v5213 = vunpack.c.l.b16 %v4017
  %v5214 = vunpack.c.l.b16 %v4018
  %v5215 = vpack.c.b16 %v5200, %v5199
  %v5216 = vpack.c.b16 %v5202, %v5201
  %v5217 = vpack.c.b16 %v5204, %v5203
  %v5218 = vpack.c.b16 %v5206, %v5205
  %v5219 = vpack.c.b16 %v5208, %v5207
  %v5220 = vpack.c.b16 %v5210, %v5209
  %v5221 = vpack.c.b16 %v5212, %v5211
  %v5222 = vpack.c.b16 %v5214, %v5213
  %5231 = vmatprep.subr.bf16.mxu0 0
  %5232 = vmatpush1.bf16.msra.mxu0 %v5215
  %5233 = vmatprep.subr.bf16.mxu0 0
  %5234 = vmatpush1.bf16.msra.mxu0 %v5216
  %5235 = vmatprep.subr.bf16.mxu0 0
  %5236 = vmatpush1.bf16.msra.mxu0 %v5217
  %5237 = vmatprep.subr.bf16.mxu0 0
  %5238 = vmatpush1.bf16.msra.mxu0 %v5218
  %5239 = vmatprep.subr.bf16.mxu0 0
  %5240 = vmatpush1.bf16.msra.mxu0 %v5219
  %5241 = vmatprep.subr.bf16.mxu0 0
  %5242 = vmatpush1.bf16.msra.mxu0 %v5220
  %5243 = vmatprep.subr.bf16.mxu0 0
  %5244 = vmatpush1.bf16.msra.mxu0 %v5221
  %5245 = vmatprep.subr.bf16.mxu0 0
  %5246 = vmatpush1.bf16.msra.mxu0 %v5222
  %5247 = vmatprep.subr.bf16.mxu0 0
  %5248 = vmatpush1.bf16.msra.mxu0 0
  %5249 = vmatprep.subr.bf16.mxu0 0
  %5250 = vmatpush1.bf16.msra.mxu0 0
  %5251 = vmatprep.subr.bf16.mxu0 0
  %5252 = vmatpush1.bf16.msra.mxu0 0
  %5253 = vmatprep.subr.bf16.mxu0 0
  %5254 = vmatpush1.bf16.msra.mxu0 0
  %5255 = vmatprep.subr.bf16.mxu0 0
  %5256 = vmatpush1.bf16.msra.mxu0 0
  %5257 = vmatprep.subr.bf16.mxu0 0
  %5258 = vmatpush1.bf16.msra.mxu0 0
  %5259 = vmatprep.subr.bf16.mxu0 0
  %5260 = vmatpush1.bf16.msra.mxu0 0
  %5261 = vmatprep.subr.bf16.mxu0 0
  %5262 = vmatpush1.bf16.msra.mxu0 0
  %5263 = vmatprep.mubr.bf16.mxu0 0
  %5264 = vmatmul.mubr.bf16.gmra.mrb[0].mxu0 %v5182
  %v5265 = vpop.f32.mrb[0].mxu0
  %v5266 = vadd.f32 0.0, %v5265
  %v5267 = vpop.f32.mrb[0].mxu0
  %v5268 = vpop.f32.mrb[0].mxu0
  %v5269 = vpop.f32.mrb[0].mxu0
  %5270 = vdwg.mxu0
  %v5271 = vadd.f32 %v5132, %v5266
  %v5272 = vld [vmem:[#allocation2] sm:$0x1]
  %v5274 = vlaneseq
  %v5275 = vshrl.u32 %v5274, 7
  %v5276 = vsub.s32 0, %v5275
  %v5277 = vrot.slane %v5272, %v5276
  %v5279 = vadd.f32 %v5271, %v5277
  %vm5280 = vcmask 7168
  %5281 = vst.msk [vmem:[%s18] sm:$0xff] %vm5280, %v5279
  // Predicated region
  $region74: #{patch_discriminator_forward.1} parent=0 // pred_check
    _
  $region75: #{patch_discriminator_forward.1} parent=0 // pred_check_branch
    %5283 = sbr.rel (0) target = $region77
  $region76: #{patch_discriminator_forward.1} parent=0 // pred_region
    _
  $region77: #{patch_discriminator_forward.1} parent=0 // pred_fallthru
    _
  // Predicated region
  $region78: #{patch_discriminator_forward.1} parent=0 // pred_check
    _
  $region79: #{patch_discriminator_forward.1} parent=0 // pred_check_branch
    %5285 = sbr.rel (0) target = $region81
  $region80: #{patch_discriminator_forward.1} parent=0 // pred_region
    _
  $region81: #{patch_discriminator_forward.1} parent=0 // pred_fallthru
    _

</llo_original>
